<compile_context>
chip_gen: v7x
topology: tpu7x:2x2x1
jax: 0.10.0
libtpu: 0.0.40
codegen_flags: <defaults>
</compile_context>

<pallas_src>
import functools
import math

import jax
import jax.numpy as jnp
from jax.experimental import pallas as pl
from jax.experimental.pallas import tpu as pltpu


# ---------------------------------------------------------------------------
# kernel
# ---------------------------------------------------------------------------
def transformer_kernel(x_ref, *refs, wlayout, vlayout, WD, D):
    """One tile of T = tile_s sequences; everything is 2-D and lane-dense."""
    o_ref = refs[-1]
    vec_ref = refs[-2]
    slabs = refs[:-2]
    bf16 = jnp.bfloat16
    f32 = jnp.float32

    def wmat(name):                               # bf16 matmul weight slice
        si, off, cols = wlayout[name]
        return slabs[si][:, off:off + cols]

    def vrow(name):                               # f32 (1, cols) vector slice
        off, cols = vlayout[name]
        return vec_ref[0:1, off:off + cols]

    def layernorm(z, wname, bname, eps=1e-5):
        mu = jnp.mean(z, axis=-1, keepdims=True)
        var = jnp.mean((z - mu) ** 2, axis=-1, keepdims=True)
        return (z - mu) * jax.lax.rsqrt(var + eps) * vrow(wname) + vrow(bname)

    # --- fused token embedding + positional add: (T, W*F) @ (W*F, W*D) ------
    x = x_ref[...].astype(bf16)
    h = jnp.dot(x, wmat("w_emb"), preferred_element_type=f32) + vrow("b_emb")

    # --- fused K | V | tiled-scaled-Q(last) | last-position passthrough -----
    kvq = (jnp.dot(h.astype(bf16), wmat("w_kvq"), preferred_element_type=f32)
           + vrow("b_kvq"))                                   # (T, 3*WD + D)
    k = kvq[:, :WD]                      # (T, WD)   k[t, w*D + d]
    v = kvq[:, WD:2 * WD]                # (T, WD)   v[t, w*D + d]
    q = kvq[:, 2 * WD:3 * WD]            # (T, WD)   q(last)/sqrt(hd), tiled over w
    h_last = kvq[:, 3 * WD:]             # (T, D)    embedding of last position

    # --- attention scores per (head, window): (T, H*W), lane-dense 2-D ------
    s = jnp.dot((q * k).astype(bf16), wmat("pt"), preferred_element_type=f32)
    # Per-row max is uniform within every head's W-group, so subtracting it is
    # exactly the same softmax as a per-head max (shift invariance).
    m = jnp.max(s, axis=-1, keepdims=True)
    e = jnp.exp(s - m)
    # per-head denominator, already broadcast back to (T, H*W) by the matmul
    denom = jnp.dot(e.astype(bf16), wmat("msum"), preferred_element_type=f32)
    p = e * pl.reciprocal(denom, approx=True)                 # attention probs

    # --- context + fused output projection (MXU, no sublane reductions) -----
    p_wd = jnp.dot(p.astype(bf16), wmat("p_expand"),
                   preferred_element_type=f32)                # (T, WD)
    attn = (jnp.dot((p_wd * v).astype(bf16), wmat("wo_wd"),
                    preferred_element_type=f32) + vrow("bo"))  # (T, D)

    # --- post-norm encoder tail, last position only (dropout = id in eval) --
    h1 = layernorm(h_last + attn, "ln1w", "ln1b")
    ff = jnp.maximum(
        jnp.dot(h1.astype(bf16), wmat("w1"), preferred_element_type=f32)
        + vrow("b1"), 0.0)
    ff = (jnp.dot(ff.astype(bf16), wmat("w2"), preferred_element_type=f32)
          + vrow("b2"))
    h2 = layernorm(h1 + ff, "ln2w", "ln2b")

    # --- relu -> fc, emitted as a lane-dense (1, T) row ----------------------
    last = jnp.maximum(h2, 0.0)
    score = jnp.einsum('kd,td->kt', vrow("fcwt").astype(bf16),
                       last.astype(bf16),
                       preferred_element_type=f32) + vrow("fcb")   # (1, T)
    o_ref[0] = score


# ---------------------------------------------------------------------------
# parameter derivation / packing (host side, done once)
# ---------------------------------------------------------------------------
def _round_up(x, m):
    return (x + m - 1) // m * m


def init_params(key, feat, window, dim, dim_ff):
    ks = jax.random.split(key, 16)
    n = lambda k, s, scale=0.05: jax.random.normal(k, s, jnp.float32) * scale
    return {
        "wt": n(ks[0], (feat, dim)),   "bt": n(ks[1], (1, dim)),
        "pos": n(ks[2], (window, dim)),
        "wq": n(ks[3], (dim, dim)),    "bq": n(ks[4], (1, dim)),
        "wk": n(ks[5], (dim, dim)),    "bk": n(ks[6], (1, dim)),
        "wv": n(ks[7], (dim, dim)),    "bv": n(ks[8], (1, dim)),
        "wo": n(ks[9], (dim, dim)),    "bo": n(ks[10], (1, dim)),
        "ln1w": jnp.ones((1, dim), jnp.float32),
        "ln1b": jnp.zeros((1, dim), jnp.float32),
        "w1": n(ks[11], (dim, dim_ff)), "b1": n(ks[12], (1, dim_ff)),
        "w2": n(ks[13], (dim_ff, dim)), "b2": n(ks[14], (1, dim)),
        "ln2w": jnp.ones((1, dim), jnp.float32),
        "ln2b": jnp.zeros((1, dim), jnp.float32),
        "fcw": n(ks[15], (dim, 1)),
        "fcb": jnp.zeros((1, 1), jnp.float32),
    }


def _derive_kernel_params(params, *, window, feat, dim, num_heads):
    """Build the fused / indicator weights used by the kernel."""
    W, F, D, H = window, feat, dim, num_heads
    hd = D // H
    WD, WF, HW = W * D, W * F, H * W
    scale = 1.0 / math.sqrt(hd)
    eyeW = jnp.eye(W, dtype=jnp.float32)

    # fused token embedding + positional add
    w_emb = jnp.einsum('wv,fd->wfvd', eyeW, params["wt"]).reshape(WF, WD)
    b_emb = jnp.tile(params["bt"], (1, W)) + params["pos"].reshape(1, WD)

    # fused K | V | tiled-scaled-Q(last pos) | last-position identity block
    kblk = jnp.einsum('wv,de->wdve', eyeW, params["wk"]).reshape(WD, WD)
    vblk = jnp.einsum('wv,de->wdve', eyeW, params["wv"]).reshape(WD, WD)
    qblk = jnp.zeros((WD, WD), jnp.float32).at[(W - 1) * D:, :].set(
        jnp.tile(params["wq"] * scale, (1, W)))
    lastblk = jnp.zeros((WD, D), jnp.float32).at[(W - 1) * D:, :].set(
        jnp.eye(D, dtype=jnp.float32))
    w_kvq = jnp.concatenate([kblk, vblk, qblk, lastblk], axis=1)
    b_kvq = jnp.concatenate(
        [jnp.tile(params["bk"], (1, W)),
         jnp.tile(params["bv"], (1, W)),
         jnp.tile(params["bq"] * scale, (1, W)),
         jnp.zeros((1, D), jnp.float32)], axis=1)

    # indicator matrices (per-head segment sums / expansions, all MXU work)
    head_sel = (jnp.arange(D, dtype=jnp.int32)[None, :] // hd
                == jnp.arange(H, dtype=jnp.int32)[:, None]).astype(jnp.float32)
    p_expand = jnp.einsum('wv,hd->hwvd', eyeW, head_sel).reshape(HW, WD)
    pt = p_expand.T                                             # (WD, HW)
    msum = jnp.kron(jnp.eye(H, dtype=jnp.float32),
                    jnp.ones((W, W), jnp.float32))              # (HW, HW)

    # attention output projection fused with the sum over window positions
    wo_wd = jnp.tile(params["wo"], (W, 1))                      # (WD, D)

    return {
        "w_emb": w_emb, "w_kvq": w_kvq, "pt": pt, "msum": msum,
        "p_expand": p_expand, "wo_wd": wo_wd,
        "w1": params["w1"], "w2": params["w2"],
        "b_emb": b_emb, "b_kvq": b_kvq, "bo": params["bo"],
        "ln1w": params["ln1w"], "ln1b": params["ln1b"],
        "b1": params["b1"], "b2": params["b2"],
        "ln2w": params["ln2w"], "ln2b": params["ln2b"],
        "fcwt": params["fcw"].T, "fcb": params["fcb"],
    }


def _pack_cols(arrays, dtype):
    """Pack same-row-count 2-D arrays along columns at 128-aligned offsets."""
    rows = arrays[0].shape[0]
    offs, off = [], 0
    for a in arrays:
        assert a.ndim == 2 and a.shape[0] == rows
        offs.append(off)
        off = _round_up(off + a.shape[1], 128)
    slab = jnp.zeros((rows, off), dtype)
    for a, o in zip(arrays, offs):
        slab = slab.at[:, o:o + a.shape[1]].set(a.astype(dtype))
    return slab, offs


def _pack_params(kp):
    wnames = ["w_emb", "w_kvq", "pt", "msum", "p_expand", "wo_wd", "w1", "w2"]
    groups = {}
    for n in wnames:
        groups.setdefault(int(kp[n].shape[0]), []).append(n)
    slabs, wlayout = [], {}
    for si, (rows, names) in enumerate(sorted(groups.items())):
        slab, offs = _pack_cols([kp[n] for n in names], jnp.bfloat16)
        slabs.append(slab)
        for n, o in zip(names, offs):
            wlayout[n] = (si, o, int(kp[n].shape[1]))

    vnames = ["b_emb", "b_kvq", "bo", "ln1w", "ln1b", "b1", "b2",
              "ln2w", "ln2b", "fcwt", "fcb"]
    vec, voffs = _pack_cols([kp[n] for n in vnames], jnp.float32)
    vlayout = {n: (o, int(kp[n].shape[1])) for n, o in zip(vnames, voffs)}
    return slabs, wlayout, vec, vlayout


# ---------------------------------------------------------------------------
# wrapper
# ---------------------------------------------------------------------------
def transformer_forward(x, params, *, window, feat, dim, num_heads, tile_s=256):
    batch, assets, faug = x.shape
    assert faug == window * feat
    assert dim % num_heads == 0
    S = batch * assets

    # lane-dense output: tile_s must be a multiple of 128
    tile_s = max(128, min(_round_up(tile_s, 128), _round_up(S, 128)))
    num_tiles = pl.cdiv(S, tile_s)
    S_pad = num_tiles * tile_s

    xs = x.reshape(S, window * feat).astype(jnp.float32)
    if S_pad != S:
        xs = jnp.pad(xs, ((0, S_pad - S), (0, 0)))

    kp = _derive_kernel_params(params, window=window, feat=feat,
                               dim=dim, num_heads=num_heads)
    slabs, wlayout, vec, vlayout = _pack_params(kp)

    kernel = functools.partial(transformer_kernel, wlayout=wlayout,
                               vlayout=vlayout, WD=window * dim, D=dim)

    in_specs = [pl.BlockSpec((tile_s, window * feat), lambda i: (i, 0))]
    for slab in slabs:                       # full-array, constant index map:
        in_specs.append(pl.BlockSpec(slab.shape, lambda i: (0, 0)))
    in_specs.append(pl.BlockSpec(vec.shape, lambda i: (0, 0)))

    out = pl.pallas_call(
        kernel,
        out_shape=jax.ShapeDtypeStruct((num_tiles, 1, tile_s), jnp.float32),
        grid_spec=pltpu.PrefetchScalarGridSpec(
            num_scalar_prefetch=0,
            grid=(num_tiles,),
            in_specs=in_specs,
            out_specs=pl.BlockSpec((1, 1, tile_s), lambda i: (i, 0, 0)),
        ),
        compiler_params=pltpu.CompilerParams(
            dimension_semantics=("parallel",)),
    )(xs, *slabs, vec)

    return out.reshape(S_pad)[:S].reshape(batch, assets)


# ---------------------------------------------------------------------------
# pure-JAX f32 reference (same math as the PyTorch module, eval mode)
# ---------------------------------------------------------------------------
def reference_forward(x, params, *, window, feat, dim, num_heads):
    batch, assets, _ = x.shape
    S = batch * assets
    dh = dim // num_heads
    xs = x.reshape(S, window, feat).astype(jnp.float32)

    h = jnp.einsum('swf,fd->swd', xs, params["wt"]) + params["bt"] + params["pos"][None]
    q = jnp.einsum('swd,de->swe', h, params["wq"]) + params["bq"]
    k = jnp.einsum('swd,de->swe', h, params["wk"]) + params["bk"]
    v = jnp.einsum('swd,de->swe', h, params["wv"]) + params["bv"]
    qh = q.reshape(S, window, num_heads, dh)
    kh = k.reshape(S, window, num_heads, dh)
    vh = v.reshape(S, window, num_heads, dh)
    s = jnp.einsum('sqhd,skhd->shqk', qh, kh) / math.sqrt(dh)
    p = jax.nn.softmax(s, axis=-1)
    ctx = jnp.einsum('shqk,skhd->sqhd', p, vh).reshape(S, window, dim)
    attn = jnp.einsum('swd,de->swe', ctx, params["wo"]) + params["bo"]

    def ln(z, w, b, eps=1e-5):
        mu = z.mean(-1, keepdims=True)
        var = ((z - mu) ** 2).mean(-1, keepdims=True)
        return (z - mu) / jnp.sqrt(var + eps) * w + b

    h1 = ln(h + attn, params["ln1w"], params["ln1b"])
    ffn = jnp.maximum(jnp.einsum('swd,df->swf', h1, params["w1"]) + params["b1"], 0.0)
    ffn = jnp.einsum('swf,fd->swd', ffn, params["w2"]) + params["b2"]
    h2 = ln(h1 + ffn, params["ln2w"], params["ln2b"])
    last = jnp.maximum(h2[:, -1, :], 0.0)
    score = last @ params["fcw"] + params["fcb"]
    return score.reshape(batch, assets)


# ---------------------------------------------------------------------------
# main
# ---------------------------------------------------------------------------
if __name__ == "__main__":
    BATCH = 16         # batch_size
    ASSETS = 32        # num_assets          -> S = 512 sequences
    WINDOW = 8         # model_args['window_size']
    FEAT = 4           # model_args['num_features_original']
    DIM = 32           # DIM_EMBEDDING
    NUM_HEADS = 4      # NUM_HEADS
    DIM_FF = 32        # DIM_FEEDFORWARD
    TILE_S = 256       # 2 lane-dense tiles -> even grid for v7x's 2 TCs

    key = jax.random.PRNGKey(0)
    kx, kp = jax.random.split(key)

    # input: (batch, num_assets, num_features_augmented = window*feat)
    x = jax.random.normal(kx, (BATCH, ASSETS, WINDOW * FEAT), jnp.float32)
    params = init_params(kp, FEAT, WINDOW, DIM, DIM_FF)

    scores = transformer_forward(
        x, params, window=WINDOW, feat=FEAT, dim=DIM, num_heads=NUM_HEADS,
        tile_s=TILE_S)
    scores = jax.block_until_ready(scores)

    ref = reference_forward(
        x, params, window=WINDOW, feat=FEAT, dim=DIM, num_heads=NUM_HEADS)
    ref = jax.block_until_ready(ref)

    assert scores.shape == (BATCH, ASSETS)
    assert bool(jnp.all(jnp.isfinite(scores)))
    # bf16 matmul inputs (f32 accumulation) + approx reciprocal -> small drift
    err = float(jnp.max(jnp.abs(scores - ref)))
    assert err < 3e-2, f"max abs error vs f32 reference: {err}"
    print("KERNEL_OK")
</pallas_src>

<mosaic_0001>
module attributes {stable_mosaic.version = 11 : i64} {
  func.func @transformer_kernel(%arg0: i32, %arg1: memref<256x32xf32, #tpu.memory_space<vmem>>, %arg2: memref<32x896xbf16, #tpu.memory_space<vmem>>, %arg3: memref<256x1152xbf16, #tpu.memory_space<vmem>>, %arg4: memref<1x2304xf32, #tpu.memory_space<vmem>>, %arg5: memref<1x1x256xf32, #tpu.memory_space<vmem>>) attributes {dimension_semantics = [#tpu.dimension_semantics<parallel>], iteration_bounds = array<i64: 2>, scalar_prefetch = 0 : i64, scratch_operands = 0 : i64, tpu.core_type = #tpu.core_type<tc>, window_params = [{transform_indices = @transform_0, window_bounds = array<i64: 256, 32>}, {pipeline_mode = #tpu.pipeline_mode<synchronous>, transform_indices = @transform_1, window_bounds = array<i64: 32, 896>}, {pipeline_mode = #tpu.pipeline_mode<synchronous>, transform_indices = @transform_2, window_bounds = array<i64: 256, 1152>}, {pipeline_mode = #tpu.pipeline_mode<synchronous>, transform_indices = @transform_3, window_bounds = array<i64: 1, 2304>}, {transform_indices = @transform_4, window_bounds = array<i64: 1, 1, 256>}]} {
    %c0 = arith.constant 0 : index
    %c0_0 = arith.constant 0 : index
    %0 = vector.load %arg1[%c0, %c0_0] : memref<256x32xf32, #tpu.memory_space<vmem>>, vector<256x32xf32>
    %1 = arith.truncf %0 : vector<256x32xf32> to vector<256x32xbf16>
    %c0_1 = arith.constant 0 : index
    %c0_2 = arith.constant 0 : index
    %2 = vector.load %arg2[%c0_1, %c0_2] : memref<32x896xbf16, #tpu.memory_space<vmem>>, vector<32x256xbf16>
    %cst = arith.constant dense<0.000000e+00> : vector<256x256xf32>
    %3 = tpu.matmul %1, %2, %cst {dimension_numbers = #tpu.dot_dimension_numbers<[1], [0], [0], [1], [0, 0, 1, 1], [], []>} : vector<256x32xbf16>, vector<32x256xbf16>, vector<256x256xf32> -> vector<256x256xf32>
    %c0_3 = arith.constant 0 : index
    %c0_4 = arith.constant 0 : index
    %4 = vector.load %arg4[%c0_3, %c0_4] : memref<1x2304xf32, #tpu.memory_space<vmem>>, vector<1x256xf32>
    %5 = vector.broadcast %4 : vector<1x256xf32> to vector<256x256xf32>
    %6 = arith.addf %3, %5 : vector<256x256xf32>
    %7 = arith.truncf %6 : vector<256x256xf32> to vector<256x256xbf16>
    %c0_5 = arith.constant 0 : index
    %c0_6 = arith.constant 0 : index
    %8 = vector.load %arg3[%c0_5, %c0_6] : memref<256x1152xbf16, #tpu.memory_space<vmem>>, vector<256x800xbf16>
    %cst_7 = arith.constant dense<0.000000e+00> : vector<256x800xf32>
    %9 = tpu.matmul %7, %8, %cst_7 {dimension_numbers = #tpu.dot_dimension_numbers<[1], [0], [0], [1], [0, 0, 1, 1], [], []>} : vector<256x256xbf16>, vector<256x800xbf16>, vector<256x800xf32> -> vector<256x800xf32>
    %c0_8 = arith.constant 0 : index
    %c256 = arith.constant 256 : index
    %10 = vector.load %arg4[%c0_8, %c256] : memref<1x2304xf32, #tpu.memory_space<vmem>>, vector<1x800xf32>
    %11 = vector.broadcast %10 : vector<1x800xf32> to vector<256x800xf32>
    %12 = arith.addf %9, %11 : vector<256x800xf32>
    %13 = vector.extract_strided_slice %12 {offsets = [0, 0], sizes = [256, 256], strides = [1, 1]} : vector<256x800xf32> to vector<256x256xf32>
    %14 = vector.extract_strided_slice %12 {offsets = [0, 256], sizes = [256, 256], strides = [1, 1]} : vector<256x800xf32> to vector<256x256xf32>
    %15 = vector.extract_strided_slice %12 {offsets = [0, 512], sizes = [256, 256], strides = [1, 1]} : vector<256x800xf32> to vector<256x256xf32>
    %16 = vector.extract_strided_slice %12 {offsets = [0, 768], sizes = [256, 32], strides = [1, 1]} : vector<256x800xf32> to vector<256x32xf32>
    %17 = arith.mulf %15, %13 : vector<256x256xf32>
    %18 = arith.truncf %17 : vector<256x256xf32> to vector<256x256xbf16>
    %c0_9 = arith.constant 0 : index
    %c896 = arith.constant 896 : index
    %19 = vector.load %arg3[%c0_9, %c896] : memref<256x1152xbf16, #tpu.memory_space<vmem>>, vector<256x32xbf16>
    %cst_10 = arith.constant dense<0.000000e+00> : vector<256x32xf32>
    %20 = tpu.matmul %18, %19, %cst_10 {dimension_numbers = #tpu.dot_dimension_numbers<[1], [0], [0], [1], [0, 0, 1, 1], [], []>} : vector<256x256xbf16>, vector<256x32xbf16>, vector<256x32xf32> -> vector<256x32xf32>
    %cst_11 = arith.constant dense<0xFF800000> : vector<256xf32>
    %21 = vector.multi_reduction <maximumf>, %20, %cst_11 [1] : vector<256x32xf32> to vector<256xf32>
    %22 = vector.shape_cast %21 : vector<256xf32> to vector<256x1xf32>
    %23 = vector.broadcast %22 : vector<256x1xf32> to vector<256x32xf32>
    %24 = arith.subf %20, %23 : vector<256x32xf32>
    %25 = math.exp %24 : vector<256x32xf32>
    %26 = arith.truncf %25 : vector<256x32xf32> to vector<256x32xbf16>
    %c0_12 = arith.constant 0 : index
    %c256_13 = arith.constant 256 : index
    %27 = vector.load %arg2[%c0_12, %c256_13] : memref<32x896xbf16, #tpu.memory_space<vmem>>, vector<32x32xbf16>
    %cst_14 = arith.constant dense<0.000000e+00> : vector<256x32xf32>
    %28 = tpu.matmul %26, %27, %cst_14 {dimension_numbers = #tpu.dot_dimension_numbers<[1], [0], [0], [1], [0, 0, 1, 1], [], []>} : vector<256x32xbf16>, vector<32x32xbf16>, vector<256x32xf32> -> vector<256x32xf32>
    %29 = tpu.reciprocal %28 {approx = true} : vector<256x32xf32> -> vector<256x32xf32>
    %30 = arith.mulf %25, %29 : vector<256x32xf32>
    %31 = arith.truncf %30 : vector<256x32xf32> to vector<256x32xbf16>
    %c0_15 = arith.constant 0 : index
    %c384 = arith.constant 384 : index
    %32 = vector.load %arg2[%c0_15, %c384] : memref<32x896xbf16, #tpu.memory_space<vmem>>, vector<32x256xbf16>
    %cst_16 = arith.constant dense<0.000000e+00> : vector<256x256xf32>
    %33 = tpu.matmul %31, %32, %cst_16 {dimension_numbers = #tpu.dot_dimension_numbers<[1], [0], [0], [1], [0, 0, 1, 1], [], []>} : vector<256x32xbf16>, vector<32x256xbf16>, vector<256x256xf32> -> vector<256x256xf32>
    %34 = arith.mulf %33, %14 : vector<256x256xf32>
    %35 = arith.truncf %34 : vector<256x256xf32> to vector<256x256xbf16>
    %c0_17 = arith.constant 0 : index
    %c1024 = arith.constant 1024 : index
    %36 = vector.load %arg3[%c0_17, %c1024] : memref<256x1152xbf16, #tpu.memory_space<vmem>>, vector<256x32xbf16>
    %cst_18 = arith.constant dense<0.000000e+00> : vector<256x32xf32>
    %37 = tpu.matmul %35, %36, %cst_18 {dimension_numbers = #tpu.dot_dimension_numbers<[1], [0], [0], [1], [0, 0, 1, 1], [], []>} : vector<256x256xbf16>, vector<256x32xbf16>, vector<256x32xf32> -> vector<256x32xf32>
    %c0_19 = arith.constant 0 : index
    %c1152 = arith.constant 1152 : index
    %38 = vector.load %arg4[%c0_19, %c1152] : memref<1x2304xf32, #tpu.memory_space<vmem>>, vector<1x32xf32>
    %39 = vector.broadcast %38 : vector<1x32xf32> to vector<256x32xf32>
    %40 = arith.addf %37, %39 : vector<256x32xf32>
    %41 = arith.addf %16, %40 : vector<256x32xf32>
    %cst_20 = arith.constant dense<0.000000e+00> : vector<256xf32>
    %42 = vector.multi_reduction <add>, %41, %cst_20 [1] : vector<256x32xf32> to vector<256xf32>
    %43 = vector.shape_cast %42 : vector<256xf32> to vector<256x1xf32>
    %cst_21 = arith.constant 3.200000e+01 : f32
    %44 = vector.broadcast %cst_21 : f32 to vector<256x1xf32>
    %45 = arith.divf %43, %44 : vector<256x1xf32>
    %46 = vector.broadcast %45 : vector<256x1xf32> to vector<256x32xf32>
    %47 = arith.subf %41, %46 : vector<256x32xf32>
    %48 = arith.mulf %47, %47 : vector<256x32xf32>
    %cst_22 = arith.constant dense<0.000000e+00> : vector<256xf32>
    %49 = vector.multi_reduction <add>, %48, %cst_22 [1] : vector<256x32xf32> to vector<256xf32>
    %50 = vector.shape_cast %49 : vector<256xf32> to vector<256x1xf32>
    %cst_23 = arith.constant 3.200000e+01 : f32
    %51 = vector.broadcast %cst_23 : f32 to vector<256x1xf32>
    %52 = arith.divf %50, %51 : vector<256x1xf32>
    %53 = vector.broadcast %45 : vector<256x1xf32> to vector<256x32xf32>
    %54 = arith.subf %41, %53 : vector<256x32xf32>
    %cst_24 = arith.constant 9.99999974E-6 : f32
    %55 = vector.broadcast %cst_24 : f32 to vector<256x1xf32>
    %56 = arith.addf %52, %55 : vector<256x1xf32>
    %57 = math.rsqrt %56 : vector<256x1xf32>
    %58 = vector.broadcast %57 : vector<256x1xf32> to vector<256x32xf32>
    %59 = arith.mulf %54, %58 : vector<256x32xf32>
    %c0_25 = arith.constant 0 : index
    %c1280 = arith.constant 1280 : index
    %60 = vector.load %arg4[%c0_25, %c1280] : memref<1x2304xf32, #tpu.memory_space<vmem>>, vector<1x32xf32>
    %61 = vector.broadcast %60 : vector<1x32xf32> to vector<256x32xf32>
    %62 = arith.mulf %59, %61 : vector<256x32xf32>
    %c0_26 = arith.constant 0 : index
    %c1408 = arith.constant 1408 : index
    %63 = vector.load %arg4[%c0_26, %c1408] : memref<1x2304xf32, #tpu.memory_space<vmem>>, vector<1x32xf32>
    %64 = vector.broadcast %63 : vector<1x32xf32> to vector<256x32xf32>
    %65 = arith.addf %62, %64 : vector<256x32xf32>
    %66 = arith.truncf %65 : vector<256x32xf32> to vector<256x32xbf16>
    %c0_27 = arith.constant 0 : index
    %c640 = arith.constant 640 : index
    %67 = vector.load %arg2[%c0_27, %c640] : memref<32x896xbf16, #tpu.memory_space<vmem>>, vector<32x32xbf16>
    %cst_28 = arith.constant dense<0.000000e+00> : vector<256x32xf32>
    %68 = tpu.matmul %66, %67, %cst_28 {dimension_numbers = #tpu.dot_dimension_numbers<[1], [0], [0], [1], [0, 0, 1, 1], [], []>} : vector<256x32xbf16>, vector<32x32xbf16>, vector<256x32xf32> -> vector<256x32xf32>
    %c0_29 = arith.constant 0 : index
    %c1536 = arith.constant 1536 : index
    %69 = vector.load %arg4[%c0_29, %c1536] : memref<1x2304xf32, #tpu.memory_space<vmem>>, vector<1x32xf32>
    %70 = vector.broadcast %69 : vector<1x32xf32> to vector<256x32xf32>
    %71 = arith.addf %68, %70 : vector<256x32xf32>
    %cst_30 = arith.constant 0.000000e+00 : f32
    %72 = vector.broadcast %cst_30 : f32 to vector<256x32xf32>
    %73 = arith.maximumf %71, %72 : vector<256x32xf32>
    %74 = arith.truncf %73 : vector<256x32xf32> to vector<256x32xbf16>
    %c0_31 = arith.constant 0 : index
    %c768 = arith.constant 768 : index
    %75 = vector.load %arg2[%c0_31, %c768] : memref<32x896xbf16, #tpu.memory_space<vmem>>, vector<32x32xbf16>
    %cst_32 = arith.constant dense<0.000000e+00> : vector<256x32xf32>
    %76 = tpu.matmul %74, %75, %cst_32 {dimension_numbers = #tpu.dot_dimension_numbers<[1], [0], [0], [1], [0, 0, 1, 1], [], []>} : vector<256x32xbf16>, vector<32x32xbf16>, vector<256x32xf32> -> vector<256x32xf32>
    %c0_33 = arith.constant 0 : index
    %c1664 = arith.constant 1664 : index
    %77 = vector.load %arg4[%c0_33, %c1664] : memref<1x2304xf32, #tpu.memory_space<vmem>>, vector<1x32xf32>
    %78 = vector.broadcast %77 : vector<1x32xf32> to vector<256x32xf32>
    %79 = arith.addf %76, %78 : vector<256x32xf32>
    %80 = arith.addf %65, %79 : vector<256x32xf32>
    %cst_34 = arith.constant dense<0.000000e+00> : vector<256xf32>
    %81 = vector.multi_reduction <add>, %80, %cst_34 [1] : vector<256x32xf32> to vector<256xf32>
    %82 = vector.shape_cast %81 : vector<256xf32> to vector<256x1xf32>
    %cst_35 = arith.constant 3.200000e+01 : f32
    %83 = vector.broadcast %cst_35 : f32 to vector<256x1xf32>
    %84 = arith.divf %82, %83 : vector<256x1xf32>
    %85 = vector.broadcast %84 : vector<256x1xf32> to vector<256x32xf32>
    %86 = arith.subf %80, %85 : vector<256x32xf32>
    %87 = arith.mulf %86, %86 : vector<256x32xf32>
    %cst_36 = arith.constant dense<0.000000e+00> : vector<256xf32>
    %88 = vector.multi_reduction <add>, %87, %cst_36 [1] : vector<256x32xf32> to vector<256xf32>
    %89 = vector.shape_cast %88 : vector<256xf32> to vector<256x1xf32>
    %cst_37 = arith.constant 3.200000e+01 : f32
    %90 = vector.broadcast %cst_37 : f32 to vector<256x1xf32>
    %91 = arith.divf %89, %90 : vector<256x1xf32>
    %92 = vector.broadcast %84 : vector<256x1xf32> to vector<256x32xf32>
    %93 = arith.subf %80, %92 : vector<256x32xf32>
    %cst_38 = arith.constant 9.99999974E-6 : f32
    %94 = vector.broadcast %cst_38 : f32 to vector<256x1xf32>
    %95 = arith.addf %91, %94 : vector<256x1xf32>
    %96 = math.rsqrt %95 : vector<256x1xf32>
    %97 = vector.broadcast %96 : vector<256x1xf32> to vector<256x32xf32>
    %98 = arith.mulf %93, %97 : vector<256x32xf32>
    %c0_39 = arith.constant 0 : index
    %c1792 = arith.constant 1792 : index
    %99 = vector.load %arg4[%c0_39, %c1792] : memref<1x2304xf32, #tpu.memory_space<vmem>>, vector<1x32xf32>
    %100 = vector.broadcast %99 : vector<1x32xf32> to vector<256x32xf32>
    %101 = arith.mulf %98, %100 : vector<256x32xf32>
    %c0_40 = arith.constant 0 : index
    %c1920 = arith.constant 1920 : index
    %102 = vector.load %arg4[%c0_40, %c1920] : memref<1x2304xf32, #tpu.memory_space<vmem>>, vector<1x32xf32>
    %103 = vector.broadcast %102 : vector<1x32xf32> to vector<256x32xf32>
    %104 = arith.addf %101, %103 : vector<256x32xf32>
    %cst_41 = arith.constant 0.000000e+00 : f32
    %105 = vector.broadcast %cst_41 : f32 to vector<256x32xf32>
    %106 = arith.maximumf %104, %105 : vector<256x32xf32>
    %c0_42 = arith.constant 0 : index
    %c2048 = arith.constant 2048 : index
    %107 = vector.load %arg4[%c0_42, %c2048] : memref<1x2304xf32, #tpu.memory_space<vmem>>, vector<1x32xf32>
    %108 = arith.truncf %107 : vector<1x32xf32> to vector<1x32xbf16>
    %109 = arith.truncf %106 : vector<256x32xf32> to vector<256x32xbf16>
    "tpu.trace_start"() <{level = 10 : i32, message = "kd,td->kt"}> : () -> ()
    %cst_43 = arith.constant dense<0.000000e+00> : vector<1x256xf32>
    %110 = tpu.matmul %108, %109, %cst_43 {dimension_numbers = #tpu.dot_dimension_numbers<[1], [1], [0], [0], [0, 0, 1, 0], [], []>} : vector<1x32xbf16>, vector<256x32xbf16>, vector<1x256xf32> -> vector<1x256xf32>
    "tpu.trace_stop"() : () -> ()
    %c0_44 = arith.constant 0 : index
    %c2176 = arith.constant 2176 : index
    %111 = vector.load %arg4[%c0_44, %c2176] : memref<1x2304xf32, #tpu.memory_space<vmem>>, vector<1x1xf32>
    %112 = vector.broadcast %111 : vector<1x1xf32> to vector<1x256xf32>
    %113 = arith.addf %110, %112 : vector<1x256xf32>
    %c0_45 = arith.constant 0 : index
    %c0_46 = arith.constant 0 : index
    %c0_47 = arith.constant 0 : index
    %114 = vector.load %arg5[%c0_45, %c0_46, %c0_47] : memref<1x1x256xf32, #tpu.memory_space<vmem>>, vector<1x1x256xf32>
    %115 = vector.shape_cast %114 : vector<1x1x256xf32> to vector<1x256xf32>
    %116 = vector.shape_cast %113 : vector<1x256xf32> to vector<1x1x256xf32>
    tpu.vector_store %arg5[%c0_45, %c0_46, %c0_47], %116 {strides = array<i32>} : memref<1x1x256xf32, #tpu.memory_space<vmem>>, vector<1x1x256xf32>,
    return
  }
  func.func @transform_0(%arg0: i32) -> (i32, i32) {
    %c0_i32 = arith.constant 0 : i32
    %c0_i32_0 = arith.constant 0 : i32
    return %arg0, %c0_i32 : i32, i32
  }
  func.func @transform_1(%arg0: i32) -> (i32, i32) {
    %c0_i32 = arith.constant 0 : i32
    %c0_i32_0 = arith.constant 0 : i32
    %c0_i32_1 = arith.constant 0 : i32
    return %c0_i32, %c0_i32_0 : i32, i32
  }
  func.func @transform_2(%arg0: i32) -> (i32, i32) {
    %c0_i32 = arith.constant 0 : i32
    %c0_i32_0 = arith.constant 0 : i32
    %c0_i32_1 = arith.constant 0 : i32
    return %c0_i32, %c0_i32_0 : i32, i32
  }
  func.func @transform_3(%arg0: i32) -> (i32, i32) {
    %c0_i32 = arith.constant 0 : i32
    %c0_i32_0 = arith.constant 0 : i32
    %c0_i32_1 = arith.constant 0 : i32
    return %c0_i32, %c0_i32_0 : i32, i32
  }
  func.func @transform_4(%arg0: i32) -> (i32, i32, i32) {
    %c0_i32 = arith.constant 0 : i32
    %c0_i32_0 = arith.constant 0 : i32
    %c0_i32_1 = arith.constant 0 : i32
    return %arg0, %c0_i32, %c0_i32_0 : i32, i32, i32
  }
}

</mosaic_0001>

<llo_original>
// kernel: tpu_custom_call.1
$region0: #{tpu_custom_call.1}
  #allocation0 [shape = 'u32[]', space=smem, size = 0x4, offset = 0x4, fixed_abs, tag = 'smem constant byte address 0x4 - core index']
  #allocation1 [shape = 'u32[144,128]{1,0:T(1,128)}', space=vmem, size = 0x12000, scoped, tag = 'internal scratch']
  %s0 = inlined_call_operand.vmem [shape: f32[512,32], index: 0, kind: input, shape index: {}]
  %s1 = inlined_call_operand.vmem [shape: bf16[32,896], index: 1, kind: input, shape index: {}]
  %s2 = inlined_call_operand.hbm [shape: bf16[256,1152], index: 2, kind: input, shape index: {}]
  %s3 = inlined_call_operand.vmem [shape: f32[1,2304], index: 3, kind: input, shape index: {}]
  %s4 = inlined_call_operand.hbm [shape: f32[2,1,256], index: 4, kind: output, shape index: {}]
  %s5 = sld [smem:[#allocation0]]
  $region53: #{tpu_custom_call.1} parent=0
    _
  %s7 = ssub.s32 1, %s5
  %s8 = scalar_select 0, %s7, %s5
  $region1: #{tpu_custom_call.1} parent=0
    #allocation2 [shape = 'u8[589824]{0}', space=vmem, size = 0x90000, scoped, tag = 'input window, operand 2, single buffered']
    #allocation3 [shape = 's32[2]{0}', space=sflag, size = 0x8, scoped, tag = 'scoped memory for tpu_custom_call.1']
    #allocation4 [shape = 's32[2]{0}', space=sflag, size = 0x8, scoped, tag = 'scoped memory for tpu_custom_call.1']
    #allocation5 [shape = 'u8[2048]{0}', space=vmem, size = 0x800, scoped, tag = 'output window, operand 0']
    %9 = vsyncpa [#allocation3], 0
    %10 = vsyncpa [#allocation4], 0
    %s11 = scalar_lea.sflag [#allocation4], 1
    %12 = vsyncpa %s11, 0
    loop: start=0, step=1, limit=4
    $region2: #{tpu_custom_call.1} parent=1 // loop_pre_header
      _
    $region3: #{tpu_custom_call.1} parent=1 // loop_header
      %s14 = sphi 0, %s18
      %p15 = scmp.ge.s32.totalorder %s14, 4
      %s24 = sphi 0, %s26
      %s27 = sphi 0, %s24
      %s28 = sphi 0, %s27
      %s44 = sphi 0, %s28
      %s48 = sphi 0, %s48
      %s50 = sphi 0, %s48
      %s51 = sphi 0, %s50
      %s65 = sphi 0, %s51
      %s69 = sphi 0, %s69
      %s71 = sphi 0, %s69
      %s72 = sphi 0, %s71
      %s86 = sphi 0, %s72
      %s90 = sphi 0, %s90
      %s92 = sphi 0, %s90
      %s93 = sphi 0, %s92
      %s107 = sphi 0, %s93
      %s113 = sphi 0, %s115
      %s116 = sphi 0, %s113
      %s117 = sphi 0, %s116
      %s133 = sphi 0, %s117
    $region4: #{tpu_custom_call.1} parent=1 // loop_header_branch
      %17 = sbr.rel (%p15) target = $region8
    $region5: #{tpu_custom_call.1} parent=1 // loop_body
      %s19 = ssub.s32 %s14, 1
      %s20 = ssub.s32 %s14, 2
      %s21 = sadd.s32 %s14, 1
      %s22 = ssub.s32 %s14, %s21
      %p23 = scmp.eq.s32.totalorder %s22, 0
      %s25 = sadd.s32 %s24, 1
      %s26 = scalar_select %p23, %s24, %s25
      %p29 = pneg %p23
      %p30 = scmp.eq.s32.totalorder %s14, 1
      %p31 = por %p29, %p30
      %p32 = scmp.ne.s32.totalorder %s24, %s27
      %p33 = scmp.eq.s32.totalorder %s14, 0
      %p34 = por %p32, %p33
      %p35 = scmp.ne.s32.totalorder %s24, %s27
      %p36 = scmp.eq.s32.totalorder %s19, 1
      %p37 = por %p35, %p36
      %p38 = scmp.ne.s32.totalorder %s27, %s28
      %p39 = scmp.eq.s32.totalorder %s19, 0
      %p40 = por %p38, %p39
      %p41 = scmp.ne.s32.totalorder %s27, %s28
      %p42 = scmp.eq.s32.totalorder %s20, 1
      %p43 = por %p41, %p42
      %p45 = scmp.ne.s32.totalorder %s28, %s44
      %p46 = scmp.eq.s32.totalorder %s20, 0
      %p47 = por %p45, %p46
      %s49 = sadd.s32 %s48, 1
      %p52 = scmp.eq.s32.totalorder %s14, 1
      %p53 = scmp.ne.s32.totalorder %s48, %s50
      %p54 = scmp.eq.s32.totalorder %s14, 0
      %p55 = por %p53, %p54
      %p56 = scmp.ne.s32.totalorder %s48, %s50
      %p57 = scmp.eq.s32.totalorder %s19, 1
      %p58 = por %p56, %p57
      %p59 = scmp.ne.s32.totalorder %s50, %s51
      %p60 = scmp.eq.s32.totalorder %s19, 0
      %p61 = por %p59, %p60
      %p62 = scmp.ne.s32.totalorder %s50, %s51
      %p63 = scmp.eq.s32.totalorder %s20, 1
      %p64 = por %p62, %p63
      %p66 = scmp.ne.s32.totalorder %s51, %s65
      %p67 = scmp.eq.s32.totalorder %s20, 0
      %p68 = por %p66, %p67
      %s70 = sadd.s32 %s69, 1
      %p73 = scmp.eq.s32.totalorder %s14, 1
      %p74 = scmp.ne.s32.totalorder %s69, %s71
      %p75 = scmp.eq.s32.totalorder %s14, 0
      %p76 = por %p74, %p75
      %p77 = scmp.ne.s32.totalorder %s69, %s71
      %p78 = scmp.eq.s32.totalorder %s19, 1
      %p79 = por %p77, %p78
      %p80 = scmp.ne.s32.totalorder %s71, %s72
      %p81 = scmp.eq.s32.totalorder %s19, 0
      %p82 = por %p80, %p81
      %p83 = scmp.ne.s32.totalorder %s71, %s72
      %p84 = scmp.eq.s32.totalorder %s20, 1
      %p85 = por %p83, %p84
      %p87 = scmp.ne.s32.totalorder %s72, %s86
      %p88 = scmp.eq.s32.totalorder %s20, 0
      %p89 = por %p87, %p88
      %s91 = sadd.s32 %s90, 1
      %p94 = scmp.eq.s32.totalorder %s14, 1
      %p95 = scmp.ne.s32.totalorder %s90, %s92
      %p96 = scmp.eq.s32.totalorder %s14, 0
      %p97 = por %p95, %p96
      %p98 = scmp.ne.s32.totalorder %s90, %s92
      %p99 = scmp.eq.s32.totalorder %s19, 1
      %p100 = por %p98, %p99
      %p101 = scmp.ne.s32.totalorder %s92, %s93
      %p102 = scmp.eq.s32.totalorder %s19, 0
      %p103 = por %p101, %p102
      %p104 = scmp.ne.s32.totalorder %s92, %s93
      %p105 = scmp.eq.s32.totalorder %s20, 1
      %p106 = por %p104, %p105
      %p108 = scmp.ne.s32.totalorder %s93, %s107
      %p109 = scmp.eq.s32.totalorder %s20, 0
      %p110 = por %p108, %p109
      %s111 = ssub.s32 %s14, %s21
      %p112 = scmp.eq.s32.totalorder %s111, 0
      %s114 = sadd.s32 %s113, 1
      %s115 = scalar_select %p112, %s113, %s114
      %p118 = pneg %p112
      %p119 = scmp.eq.s32.totalorder %s14, 1
      %p120 = por %p118, %p119
      %p121 = scmp.ne.s32.totalorder %s113, %s116
      %p122 = scmp.eq.s32.totalorder %s14, 0
      %p123 = por %p121, %p122
      %p124 = scmp.ne.s32.totalorder %s113, %s116
      %p125 = scmp.eq.s32.totalorder %s19, 1
      %p126 = por %p124, %p125
      %p127 = scmp.ne.s32.totalorder %s116, %s117
      %p128 = scmp.eq.s32.totalorder %s19, 0
      %p129 = por %p127, %p128
      %p130 = scmp.ne.s32.totalorder %s116, %s117
      %p131 = scmp.eq.s32.totalorder %s20, 1
      %p132 = por %p130, %p131
      %p134 = scmp.ne.s32.totalorder %s117, %s133
      %p135 = scmp.eq.s32.totalorder %s20, 0
      %p136 = por %p134, %p135
      %p137 = scmp.le.s32.totalorder 1, %s14
      %p138 = scmp.lt.s32.totalorder %s14, 3
      %p139 = pnand %p137, %p138
      %p140 = pneg %p139
      // Predicated region
      $region9: #{tpu_custom_call.1} parent=5 // pred_check
        _
      $region10: #{tpu_custom_call.1} parent=5 // pred_check_branch
        %142 = sbr.rel (%p139) target = $region12
      $region11: #{tpu_custom_call.1} parent=5 // pred_region
        %s143 = ssub.s32 %s14, 1
        // Predicated region
        $region13: #{tpu_custom_call.1} parent=11 // pred_check
          %p144 = pneg %p61
        $region14: #{tpu_custom_call.1} parent=11 // pred_check_branch
          %146 = sbr.rel (%p144) target = $region16
        $region15: #{tpu_custom_call.1} parent=11 // pred_region
          _
        $region16: #{tpu_custom_call.1} parent=11 // pred_fallthru
          _
        // Predicated region
        $region17: #{tpu_custom_call.1} parent=11 // pred_check
          %p147 = pneg %p82
        $region18: #{tpu_custom_call.1} parent=11 // pred_check_branch
          %149 = sbr.rel (%p147) target = $region20
        $region19: #{tpu_custom_call.1} parent=11 // pred_region
          %s151 = ssub.s32 18432, 18432
          %152 = vsyncadd [#allocation3], %s151
          %s153 = sshll.u32 [#allocation2], 4
          %s154 = int_to_ptr.vmem [resolvable:$true] %s153
          %159 = dma.hbm_to_vmem [thread:$0]  %s2, 18432, %s154, [#allocation3], 576, 576, 36
        $region20: #{tpu_custom_call.1} parent=11 // pred_fallthru
          _
        // Predicated region
        $region21: #{tpu_custom_call.1} parent=11 // pred_check
          %p160 = pneg %p103
        $region22: #{tpu_custom_call.1} parent=11 // pred_check_branch
          %162 = sbr.rel (%p160) target = $region24
        $region23: #{tpu_custom_call.1} parent=11 // pred_region
          _
        $region24: #{tpu_custom_call.1} parent=11 // pred_fallthru
          _
      $region12: #{tpu_custom_call.1} parent=5 // pred_fallthru
        _
      %p163 = scmp.lt.s32.totalorder %s14, 2
      // Predicated region
      $region25: #{tpu_custom_call.1} parent=5 // pred_check
        %p164 = pneg %p163
      $region26: #{tpu_custom_call.1} parent=5 // pred_check_branch
        %166 = sbr.rel (%p164) target = $region28
      $region27: #{tpu_custom_call.1} parent=5 // pred_region
        // Predicated region
        $region29: #{tpu_custom_call.1} parent=27 // pred_check
          %p167 = pneg %p34
        $region30: #{tpu_custom_call.1} parent=27 // pred_check_branch
          %169 = sbr.rel (%p167) target = $region32
        $region31: #{tpu_custom_call.1} parent=27 // pred_region
          %s170 = smul.u32 32, %s14
          %p171 = scmp.lt.s32.totalorder %s170, 63
          %s172 = scalar_select %p171, %s170, 63
          %s173 = smul.addr %s172, 8
          %s174 = scalar_lea.vmem %s0, %s173
          %s175 = smul.u32 32, %s14
        $region32: #{tpu_custom_call.1} parent=27 // pred_fallthru
          _
      $region28: #{tpu_custom_call.1} parent=5 // pred_fallthru
        _
      %p176 = scmp.le.s32.totalorder 1, %s14
      %p177 = scmp.lt.s32.totalorder %s14, 3
      %p178 = pnand %p176, %p177
      %p179 = pneg %p178
      // Predicated region
      $region33: #{tpu_custom_call.1} parent=5 // pred_check
        _
      $region34: #{tpu_custom_call.1} parent=5 // pred_check_branch
        %181 = sbr.rel (%p178) target = $region36
      $region35: #{tpu_custom_call.1} parent=5 // pred_region
        %s182 = ssub.s32 %s14, 1
        // Predicated region
        $region37: #{tpu_custom_call.1} parent=35 // pred_check
          %p183 = pneg %p82
        $region38: #{tpu_custom_call.1} parent=35 // pred_check_branch
          %185 = sbr.rel (%p183) target = $region40
        $region39: #{tpu_custom_call.1} parent=35 // pred_region
          %186 = dma.done [#allocation3], 18432
        $region40: #{tpu_custom_call.1} parent=35 // pred_fallthru
          _
        %s187 = smul.u32 32, %s19
        %p188 = scmp.lt.s32.totalorder %s187, 63
        %s189 = scalar_select %p188, %s187, 63
        %s190 = smul.addr %s189, 8
        %s191 = scalar_lea.vmem %s0, %s190
        %p192 = pneg %p40
        %p193 = pneg %p37
        %p194 = pneg %p61
        %p195 = pneg %p58
        %p196 = pneg %p82
        %p197 = pneg %p79
        %p198 = pneg %p103
        %p199 = pneg %p100
        %p200 = pneg %p129
        %p201 = pneg %p126
        %s202 = sand.u32 %s116, 1
        %s203 = scalar_lea.sflag [#allocation4], %s202
        %s204 = sand.u32 %s116, 1
        %s205 = smul.addr %s204, 2
        %s206 = scalar_lea.vmem [#allocation5], %s205
        %s207 = smul.u32 32, %s19
        %p208 = scmp.lt.s32.totalorder %s207, 63
        %s209 = scalar_select %p208, %s207, 63
        %s210 = smul.addr %s209, 8
        %s211 = scalar_lea.vmem %s0, %s210
        %s212 = smul.u32 32, %s19
        %v214 = vld [vmem:[%s211] sm:$0xff]
        %v215 = vld [vmem:[%s211 + $0x8] sm:$0xff]
        %v216 = vld [vmem:[%s211 + $0x10] sm:$0xff]
        %v217 = vld [vmem:[%s211 + $0x18] sm:$0xff]
        %v218 = vld [vmem:[%s211 + $0x20] sm:$0xff]
        %v219 = vld [vmem:[%s211 + $0x28] sm:$0xff]
        %v220 = vld [vmem:[%s211 + $0x30] sm:$0xff]
        %v221 = vld [vmem:[%s211 + $0x38] sm:$0xff]
        %v222 = vld [vmem:[%s211 + $0x40] sm:$0xff]
        %v223 = vld [vmem:[%s211 + $0x48] sm:$0xff]
        %v224 = vld [vmem:[%s211 + $0x50] sm:$0xff]
        %v225 = vld [vmem:[%s211 + $0x58] sm:$0xff]
        %v226 = vld [vmem:[%s211 + $0x60] sm:$0xff]
        %v227 = vld [vmem:[%s211 + $0x68] sm:$0xff]
        %v228 = vld [vmem:[%s211 + $0x70] sm:$0xff]
        %v229 = vld [vmem:[%s211 + $0x78] sm:$0xff]
        %v230 = vld [vmem:[%s211 + $0x80] sm:$0xff]
        %v231 = vld [vmem:[%s211 + $0x88] sm:$0xff]
        %v232 = vld [vmem:[%s211 + $0x90] sm:$0xff]
        %v233 = vld [vmem:[%s211 + $0x98] sm:$0xff]
        %v234 = vld [vmem:[%s211 + $0xa0] sm:$0xff]
        %v235 = vld [vmem:[%s211 + $0xa8] sm:$0xff]
        %v236 = vld [vmem:[%s211 + $0xb0] sm:$0xff]
        %v237 = vld [vmem:[%s211 + $0xb8] sm:$0xff]
        %v238 = vld [vmem:[%s211 + $0xc0] sm:$0xff]
        %v239 = vld [vmem:[%s211 + $0xc8] sm:$0xff]
        %v240 = vld [vmem:[%s211 + $0xd0] sm:$0xff]
        %v241 = vld [vmem:[%s211 + $0xd8] sm:$0xff]
        %v242 = vld [vmem:[%s211 + $0xe0] sm:$0xff]
        %v243 = vld [vmem:[%s211 + $0xe8] sm:$0xff]
        %v244 = vld [vmem:[%s211 + $0xf0] sm:$0xff]
        %v245 = vld [vmem:[%s211 + $0xf8] sm:$0xff]
        %v246 = vpack.c.bf16 %v215, %v214
        %v247 = vpack.c.bf16 %v217, %v216
        %v248 = vpack.c.bf16 %v219, %v218
        %v249 = vpack.c.bf16 %v221, %v220
        %v250 = vpack.c.bf16 %v223, %v222
        %v251 = vpack.c.bf16 %v225, %v224
        %v252 = vpack.c.bf16 %v227, %v226
        %v253 = vpack.c.bf16 %v229, %v228
        %v254 = vpack.c.bf16 %v231, %v230
        %v255 = vpack.c.bf16 %v233, %v232
        %v256 = vpack.c.bf16 %v235, %v234
        %v257 = vpack.c.bf16 %v237, %v236
        %v258 = vpack.c.bf16 %v239, %v238
        %v259 = vpack.c.bf16 %v241, %v240
        %v260 = vpack.c.bf16 %v243, %v242
        %v261 = vpack.c.bf16 %v245, %v244
        %v262 = vld [vmem:[%s1] sm:$0xff]
        %v263 = vld [vmem:[%s1 + $0x1c] sm:$0xff]
        %v264 = vld [vmem:[%s1 + $0x38] sm:$0xff]
        %v265 = vld [vmem:[%s1 + $0x54] sm:$0xff]
        %v266 = vld [vmem:[%s3] sm:$0x3]
        %v268 = vlaneseq
        %v269 = vshrl.u32 %v268, 7
        %v270 = vsub.s32 0, %v269
        %v271 = vrot.slane %v266, %v270
        %v272 = vlaneseq
        %v273 = vshrl.u32 %v272, 7
        %v274 = vsub.s32 1, %v273
        %v275 = vrot.slane %v266, %v274
        %v282 = vunpack.c.l.b16 %v262
        %v283 = vunpack.c.h.b16 %v262
        %v284 = vunpack.c.l.b16 %v263
        %v285 = vunpack.c.h.b16 %v263
        %v286 = vunpack.c.l.b16 %v264
        %v287 = vunpack.c.h.b16 %v264
        %v288 = vunpack.c.l.b16 %v265
        %v289 = vunpack.c.h.b16 %v265
        %v290 = vpack.c.b16 %v284, %v282
        %v291 = vpack.c.b16 %v285, %v283
        %v292 = vpack.c.b16 %v288, %v286
        %v293 = vpack.c.b16 %v289, %v287
        %vm298 = vcmask 261120
        %v300 = vsel %vm298, %v246, 0
        %v303 = vsel %vm298, %v247, 0
        %v306 = vsel %vm298, %v248, 0
        %v309 = vsel %vm298, %v249, 0
        %v312 = vsel %vm298, %v250, 0
        %v315 = vsel %vm298, %v251, 0
        %v318 = vsel %vm298, %v252, 0
        %v321 = vsel %vm298, %v253, 0
        %v324 = vsel %vm298, %v254, 0
        %v327 = vsel %vm298, %v255, 0
        %v330 = vsel %vm298, %v256, 0
        %v333 = vsel %vm298, %v257, 0
        %v336 = vsel %vm298, %v258, 0
        %v339 = vsel %vm298, %v259, 0
        %v342 = vsel %vm298, %v260, 0
        %v345 = vsel %vm298, %v261, 0
        %347 = vmatprep.subr.bf16.mxu0 %v291
        %348 = vmatpush1.bf16.msra.mxu0 %v290
        %349 = vmatprep.subr.bf16.mxu0 %v293
        %350 = vmatpush1.bf16.msra.mxu0 %v292
        %351 = vmatprep.subr.bf16.mxu0 0
        %352 = vmatpush1.bf16.msra.mxu0 0
        %353 = vmatprep.subr.bf16.mxu0 0
        %354 = vmatpush1.bf16.msra.mxu0 0
        %355 = vmatprep.subr.bf16.mxu0 0
        %356 = vmatpush1.bf16.msra.mxu0 0
        %357 = vmatprep.subr.bf16.mxu0 0
        %358 = vmatpush1.bf16.msra.mxu0 0
        %359 = vmatprep.subr.bf16.mxu0 0
        %360 = vmatpush1.bf16.msra.mxu0 0
        %361 = vmatprep.subr.bf16.mxu0 0
        %362 = vmatpush1.bf16.msra.mxu0 0
        %363 = vmatprep.subr.bf16.mxu0 0
        %364 = vmatpush1.bf16.msra.mxu0 0
        %365 = vmatprep.subr.bf16.mxu0 0
        %366 = vmatpush1.bf16.msra.mxu0 0
        %367 = vmatprep.subr.bf16.mxu0 0
        %368 = vmatpush1.bf16.msra.mxu0 0
        %369 = vmatprep.subr.bf16.mxu0 0
        %370 = vmatpush1.bf16.msra.mxu0 0
        %371 = vmatprep.subr.bf16.mxu0 0
        %372 = vmatpush1.bf16.msra.mxu0 0
        %373 = vmatprep.subr.bf16.mxu0 0
        %374 = vmatpush1.bf16.msra.mxu0 0
        %375 = vmatprep.subr.bf16.mxu0 0
        %376 = vmatpush1.bf16.msra.mxu0 0
        %377 = vmatprep.subr.bf16.mxu0 0
        %378 = vmatpush1.bf16.msra.mxu0 0
        %379 = vmatprep.mubr.bf16.mxu0 0
        %380 = vmatmul.mubr.bf16.gmra.mrb[0].mxu0 %v300
        %v381 = vpop.f32.mrb[0].mxu0
        %v382 = vadd.f32 %v271, %v381
        %v383 = vpop.f32.mrb[0].mxu0
        %v384 = vadd.f32 %v275, %v383
        %v385 = vpop.f32.mrb[0].mxu0
        %v386 = vadd.f32 %v271, %v385
        %v387 = vpop.f32.mrb[0].mxu0
        %v388 = vadd.f32 %v275, %v387
        %389 = vmatprep.mubr.bf16.mxu0 0
        %390 = vmatmul.mubr.bf16.gmra.mrb[0].mxu0 %v303
        %v391 = vpop.f32.mrb[0].mxu0
        %v392 = vadd.f32 %v271, %v391
        %v393 = vpop.f32.mrb[0].mxu0
        %v394 = vadd.f32 %v275, %v393
        %v395 = vpop.f32.mrb[0].mxu0
        %v396 = vadd.f32 %v271, %v395
        %v397 = vpop.f32.mrb[0].mxu0
        %v398 = vadd.f32 %v275, %v397
        %399 = vmatprep.mubr.bf16.mxu0 0
        %400 = vmatmul.mubr.bf16.gmra.mrb[0].mxu0 %v306
        %v401 = vpop.f32.mrb[0].mxu0
        %v402 = vadd.f32 %v271, %v401
        %v403 = vpop.f32.mrb[0].mxu0
        %v404 = vadd.f32 %v275, %v403
        %v405 = vpop.f32.mrb[0].mxu0
        %v406 = vadd.f32 %v271, %v405
        %v407 = vpop.f32.mrb[0].mxu0
        %v408 = vadd.f32 %v275, %v407
        %409 = vmatprep.mubr.bf16.mxu0 0
        %410 = vmatmul.mubr.bf16.gmra.mrb[0].mxu0 %v309
        %v411 = vpop.f32.mrb[0].mxu0
        %v412 = vadd.f32 %v271, %v411
        %v413 = vpop.f32.mrb[0].mxu0
        %v414 = vadd.f32 %v275, %v413
        %v415 = vpop.f32.mrb[0].mxu0
        %v416 = vadd.f32 %v271, %v415
        %v417 = vpop.f32.mrb[0].mxu0
        %v418 = vadd.f32 %v275, %v417
        %419 = vmatprep.mubr.bf16.mxu0 0
        %420 = vmatmul.mubr.bf16.gmra.mrb[0].mxu0 %v312
        %v421 = vpop.f32.mrb[0].mxu0
        %v422 = vadd.f32 %v271, %v421
        %v423 = vpop.f32.mrb[0].mxu0
        %v424 = vadd.f32 %v275, %v423
        %v425 = vpop.f32.mrb[0].mxu0
        %v426 = vadd.f32 %v271, %v425
        %v427 = vpop.f32.mrb[0].mxu0
        %v428 = vadd.f32 %v275, %v427
        %429 = vmatprep.mubr.bf16.mxu0 0
        %430 = vmatmul.mubr.bf16.gmra.mrb[0].mxu0 %v315
        %v431 = vpop.f32.mrb[0].mxu0
        %v432 = vadd.f32 %v271, %v431
        %v433 = vpop.f32.mrb[0].mxu0
        %v434 = vadd.f32 %v275, %v433
        %v435 = vpop.f32.mrb[0].mxu0
        %v436 = vadd.f32 %v271, %v435
        %v437 = vpop.f32.mrb[0].mxu0
        %v438 = vadd.f32 %v275, %v437
        %439 = vmatprep.mubr.bf16.mxu0 0
        %440 = vmatmul.mubr.bf16.gmra.mrb[0].mxu0 %v318
        %v441 = vpop.f32.mrb[0].mxu0
        %v442 = vadd.f32 %v271, %v441
        %v443 = vpop.f32.mrb[0].mxu0
        %v444 = vadd.f32 %v275, %v443
        %v445 = vpop.f32.mrb[0].mxu0
        %v446 = vadd.f32 %v271, %v445
        %v447 = vpop.f32.mrb[0].mxu0
        %v448 = vadd.f32 %v275, %v447
        %449 = vmatprep.mubr.bf16.mxu0 0
        %450 = vmatmul.mubr.bf16.gmra.mrb[0].mxu0 %v321
        %v451 = vpop.f32.mrb[0].mxu0
        %v452 = vadd.f32 %v271, %v451
        %v453 = vpop.f32.mrb[0].mxu0
        %v454 = vadd.f32 %v275, %v453
        %v455 = vpop.f32.mrb[0].mxu0
        %v456 = vadd.f32 %v271, %v455
        %v457 = vpop.f32.mrb[0].mxu0
        %v458 = vadd.f32 %v275, %v457
        %459 = vmatprep.mubr.bf16.mxu0 0
        %460 = vmatmul.mubr.bf16.gmra.mrb[0].mxu0 %v324
        %v461 = vpop.f32.mrb[0].mxu0
        %v462 = vadd.f32 %v271, %v461
        %v463 = vpop.f32.mrb[0].mxu0
        %v464 = vadd.f32 %v275, %v463
        %v465 = vpop.f32.mrb[0].mxu0
        %v466 = vadd.f32 %v271, %v465
        %v467 = vpop.f32.mrb[0].mxu0
        %v468 = vadd.f32 %v275, %v467
        %469 = vmatprep.mubr.bf16.mxu0 0
        %470 = vmatmul.mubr.bf16.gmra.mrb[0].mxu0 %v327
        %v471 = vpop.f32.mrb[0].mxu0
        %v472 = vadd.f32 %v271, %v471
        %v473 = vpop.f32.mrb[0].mxu0
        %v474 = vadd.f32 %v275, %v473
        %v475 = vpop.f32.mrb[0].mxu0
        %v476 = vadd.f32 %v271, %v475
        %v477 = vpop.f32.mrb[0].mxu0
        %v478 = vadd.f32 %v275, %v477
        %479 = vmatprep.mubr.bf16.mxu0 0
        %480 = vmatmul.mubr.bf16.gmra.mrb[0].mxu0 %v330
        %v481 = vpop.f32.mrb[0].mxu0
        %v482 = vadd.f32 %v271, %v481
        %v483 = vpop.f32.mrb[0].mxu0
        %v484 = vadd.f32 %v275, %v483
        %v485 = vpop.f32.mrb[0].mxu0
        %v486 = vadd.f32 %v271, %v485
        %v487 = vpop.f32.mrb[0].mxu0
        %v488 = vadd.f32 %v275, %v487
        %489 = vmatprep.mubr.bf16.mxu0 0
        %490 = vmatmul.mubr.bf16.gmra.mrb[0].mxu0 %v333
        %v491 = vpop.f32.mrb[0].mxu0
        %v492 = vadd.f32 %v271, %v491
        %v493 = vpop.f32.mrb[0].mxu0
        %v494 = vadd.f32 %v275, %v493
        %v495 = vpop.f32.mrb[0].mxu0
        %v496 = vadd.f32 %v271, %v495
        %v497 = vpop.f32.mrb[0].mxu0
        %v498 = vadd.f32 %v275, %v497
        %499 = vmatprep.mubr.bf16.mxu0 0
        %500 = vmatmul.mubr.bf16.gmra.mrb[0].mxu0 %v336
        %v501 = vpop.f32.mrb[0].mxu0
        %v502 = vadd.f32 %v271, %v501
        %v503 = vpop.f32.mrb[0].mxu0
        %v504 = vadd.f32 %v275, %v503
        %v505 = vpop.f32.mrb[0].mxu0
        %v506 = vadd.f32 %v271, %v505
        %v507 = vpop.f32.mrb[0].mxu0
        %v508 = vadd.f32 %v275, %v507
        %509 = vmatprep.mubr.bf16.mxu0 0
        %510 = vmatmul.mubr.bf16.gmra.mrb[0].mxu0 %v339
        %v511 = vpop.f32.mrb[0].mxu0
        %v512 = vadd.f32 %v271, %v511
        %v513 = vpop.f32.mrb[0].mxu0
        %v514 = vadd.f32 %v275, %v513
        %v515 = vpop.f32.mrb[0].mxu0
        %v516 = vadd.f32 %v271, %v515
        %v517 = vpop.f32.mrb[0].mxu0
        %v518 = vadd.f32 %v275, %v517
        %519 = vmatprep.mubr.bf16.mxu0 0
        %520 = vmatmul.mubr.bf16.gmra.mrb[0].mxu0 %v342
        %v521 = vpop.f32.mrb[0].mxu0
        %v522 = vadd.f32 %v271, %v521
        %v523 = vpop.f32.mrb[0].mxu0
        %v524 = vadd.f32 %v275, %v523
        %v525 = vpop.f32.mrb[0].mxu0
        %v526 = vadd.f32 %v271, %v525
        %v527 = vpop.f32.mrb[0].mxu0
        %v528 = vadd.f32 %v275, %v527
        %529 = vmatprep.mubr.bf16.mxu0 0
        %530 = vmatmul.mubr.bf16.gmra.mrb[0].mxu0 %v345
        %v531 = vpop.f32.mrb[0].mxu0
        %v532 = vadd.f32 %v271, %v531
        %v533 = vpop.f32.mrb[0].mxu0
        %v534 = vadd.f32 %v275, %v533
        %v535 = vpop.f32.mrb[0].mxu0
        %v536 = vadd.f32 %v271, %v535
        %v537 = vpop.f32.mrb[0].mxu0
        %v538 = vadd.f32 %v275, %v537
        %539 = vdwg.mxu0
        %v540 = vpack.c.bf16 %v386, %v382
        %v541 = vpack.c.bf16 %v388, %v384
        %v542 = vpack.c.bf16 %v396, %v392
        %v543 = vpack.c.bf16 %v398, %v394
        %v544 = vpack.c.bf16 %v406, %v402
        %v545 = vpack.c.bf16 %v408, %v404
        %v546 = vpack.c.bf16 %v416, %v412
        %v547 = vpack.c.bf16 %v418, %v414
        %v548 = vpack.c.bf16 %v426, %v422
        %v549 = vpack.c.bf16 %v428, %v424
        %v550 = vpack.c.bf16 %v436, %v432
        %v551 = vpack.c.bf16 %v438, %v434
        %v552 = vpack.c.bf16 %v446, %v442
        %v553 = vpack.c.bf16 %v448, %v444
        %v554 = vpack.c.bf16 %v456, %v452
        %v555 = vpack.c.bf16 %v458, %v454
        %v556 = vpack.c.bf16 %v466, %v462
        %v557 = vpack.c.bf16 %v468, %v464
        %v558 = vpack.c.bf16 %v476, %v472
        %v559 = vpack.c.bf16 %v478, %v474
        %v560 = vpack.c.bf16 %v486, %v482
        %v561 = vpack.c.bf16 %v488, %v484
        %v562 = vpack.c.bf16 %v496, %v492
        %v563 = vpack.c.bf16 %v498, %v494
        %v564 = vpack.c.bf16 %v506, %v502
        %v565 = vpack.c.bf16 %v508, %v504
        %v566 = vpack.c.bf16 %v516, %v512
        %v567 = vpack.c.bf16 %v518, %v514
        %v568 = vpack.c.bf16 %v526, %v522
        %v569 = vpack.c.bf16 %v528, %v524
        %v570 = vpack.c.bf16 %v536, %v532
        %v571 = vpack.c.bf16 %v538, %v534
        %v572 = vld [vmem:[#allocation2] sm:$0xff]
        %v573 = vld [vmem:[#allocation2 + $0x8] sm:$0xff]
        %v574 = vld [vmem:[#allocation2 + $0x10] sm:$0xff]
        %v575 = vld [vmem:[#allocation2 + $0x18] sm:$0xf]
        %v576 = vld [vmem:[#allocation2 + $0x24] sm:$0xff]
        %v577 = vld [vmem:[#allocation2 + $0x2c] sm:$0xff]
        %v578 = vld [vmem:[#allocation2 + $0x34] sm:$0xff]
        %v579 = vld [vmem:[#allocation2 + $0x3c] sm:$0xf]
        %v580 = vld [vmem:[#allocation2 + $0x48] sm:$0xff]
        %v581 = vld [vmem:[#allocation2 + $0x50] sm:$0xff]
        %v582 = vld [vmem:[#allocation2 + $0x58] sm:$0xff]
        %v583 = vld [vmem:[#allocation2 + $0x60] sm:$0xf]
        %v584 = vld [vmem:[#allocation2 + $0x6c] sm:$0xff]
        %v585 = vld [vmem:[#allocation2 + $0x74] sm:$0xff]
        %v586 = vld [vmem:[#allocation2 + $0x7c] sm:$0xff]
        %v587 = vld [vmem:[#allocation2 + $0x84] sm:$0xf]
        %v588 = vld [vmem:[#allocation2 + $0x90] sm:$0xff]
        %v589 = vld [vmem:[#allocation2 + $0x98] sm:$0xff]
        %v590 = vld [vmem:[#allocation2 + $0xa0] sm:$0xff]
        %v591 = vld [vmem:[#allocation2 + $0xa8] sm:$0xf]
        %v592 = vld [vmem:[#allocation2 + $0xb4] sm:$0xff]
        %v593 = vld [vmem:[#allocation2 + $0xbc] sm:$0xff]
        %v594 = vld [vmem:[#allocation2 + $0xc4] sm:$0xff]
        %v595 = vld [vmem:[#allocation2 + $0xcc] sm:$0xf]
        %v596 = vld [vmem:[#allocation2 + $0xd8] sm:$0xff]
        %v597 = vld [vmem:[#allocation2 + $0xe0] sm:$0xff]
        %v598 = vld [vmem:[#allocation2 + $0xe8] sm:$0xff]
        %v599 = vld [vmem:[#allocation2 + $0xf0] sm:$0xf]
        %v600 = vld [vmem:[#allocation2 + $0xfc] sm:$0xff]
        %v601 = vld [vmem:[#allocation2 + $0x104] sm:$0xff]
        %v602 = vld [vmem:[#allocation2 + $0x10c] sm:$0xff]
        %v603 = vld [vmem:[#allocation2 + $0x114] sm:$0xf]
        %v604 = vld [vmem:[#allocation2 + $0x120] sm:$0xff]
        %v605 = vld [vmem:[#allocation2 + $0x128] sm:$0xff]
        %v606 = vld [vmem:[#allocation2 + $0x130] sm:$0xff]
        %v607 = vld [vmem:[#allocation2 + $0x138] sm:$0xf]
        %v608 = vld [vmem:[#allocation2 + $0x144] sm:$0xff]
        %v609 = vld [vmem:[#allocation2 + $0x14c] sm:$0xff]
        %v610 = vld [vmem:[#allocation2 + $0x154] sm:$0xff]
        %v611 = vld [vmem:[#allocation2 + $0x15c] sm:$0xf]
        %v612 = vld [vmem:[#allocation2 + $0x168] sm:$0xff]
        %v613 = vld [vmem:[#allocation2 + $0x170] sm:$0xff]
        %v614 = vld [vmem:[#allocation2 + $0x178] sm:$0xff]
        %v615 = vld [vmem:[#allocation2 + $0x180] sm:$0xf]
        %v616 = vld [vmem:[#allocation2 + $0x18c] sm:$0xff]
        %v617 = vld [vmem:[#allocation2 + $0x194] sm:$0xff]
        %v618 = vld [vmem:[#allocation2 + $0x19c] sm:$0xff]
        %v619 = vld [vmem:[#allocation2 + $0x1a4] sm:$0xf]
        %v620 = vld [vmem:[#allocation2 + $0x1b0] sm:$0xff]
        %v621 = vld [vmem:[#allocation2 + $0x1b8] sm:$0xff]
        %v622 = vld [vmem:[#allocation2 + $0x1c0] sm:$0xff]
        %v623 = vld [vmem:[#allocation2 + $0x1c8] sm:$0xf]
        %v624 = vld [vmem:[#allocation2 + $0x1d4] sm:$0xff]
        %v625 = vld [vmem:[#allocation2 + $0x1dc] sm:$0xff]
        %v626 = vld [vmem:[#allocation2 + $0x1e4] sm:$0xff]
        %v627 = vld [vmem:[#allocation2 + $0x1ec] sm:$0xf]
        %v628 = vld [vmem:[#allocation2 + $0x1f8] sm:$0xff]
        %v629 = vld [vmem:[#allocation2 + $0x200] sm:$0xff]
        %v630 = vld [vmem:[#allocation2 + $0x208] sm:$0xff]
        %v631 = vld [vmem:[#allocation2 + $0x210] sm:$0xf]
        %v632 = vld [vmem:[#allocation2 + $0x21c] sm:$0xff]
        %v633 = vld [vmem:[#allocation2 + $0x224] sm:$0xff]
        %v634 = vld [vmem:[#allocation2 + $0x22c] sm:$0xff]
        %v635 = vld [vmem:[#allocation2 + $0x234] sm:$0xf]
        %v636 = vld [vmem:[#allocation2 + $0x240] sm:$0xff]
        %v637 = vld [vmem:[#allocation2 + $0x248] sm:$0xff]
        %v638 = vld [vmem:[#allocation2 + $0x250] sm:$0xff]
        %v639 = vld [vmem:[#allocation2 + $0x258] sm:$0xf]
        %v640 = vld [vmem:[#allocation2 + $0x264] sm:$0xff]
        %v641 = vld [vmem:[#allocation2 + $0x26c] sm:$0xff]
        %v642 = vld [vmem:[#allocation2 + $0x274] sm:$0xff]
        %v643 = vld [vmem:[#allocation2 + $0x27c] sm:$0xf]
        %v644 = vld [vmem:[#allocation2 + $0x288] sm:$0xff]
        %v645 = vld [vmem:[#allocation2 + $0x290] sm:$0xff]
        %v646 = vld [vmem:[#allocation2 + $0x298] sm:$0xff]
        %v647 = vld [vmem:[#allocation2 + $0x2a0] sm:$0xf]
        %v648 = vld [vmem:[#allocation2 + $0x2ac] sm:$0xff]
        %v649 = vld [vmem:[#allocation2 + $0x2b4] sm:$0xff]
        %v650 = vld [vmem:[#allocation2 + $0x2bc] sm:$0xff]
        %v651 = vld [vmem:[#allocation2 + $0x2c4] sm:$0xf]
        %v652 = vld [vmem:[#allocation2 + $0x2d0] sm:$0xff]
        %v653 = vld [vmem:[#allocation2 + $0x2d8] sm:$0xff]
        %v654 = vld [vmem:[#allocation2 + $0x2e0] sm:$0xff]
        %v655 = vld [vmem:[#allocation2 + $0x2e8] sm:$0xf]
        %v656 = vld [vmem:[#allocation2 + $0x2f4] sm:$0xff]
        %v657 = vld [vmem:[#allocation2 + $0x2fc] sm:$0xff]
        %v658 = vld [vmem:[#allocation2 + $0x304] sm:$0xff]
        %v659 = vld [vmem:[#allocation2 + $0x30c] sm:$0xf]
        %v660 = vld [vmem:[#allocation2 + $0x318] sm:$0xff]
        %v661 = vld [vmem:[#allocation2 + $0x320] sm:$0xff]
        %v662 = vld [vmem:[#allocation2 + $0x328] sm:$0xff]
        %v663 = vld [vmem:[#allocation2 + $0x330] sm:$0xf]
        %v664 = vld [vmem:[#allocation2 + $0x33c] sm:$0xff]
        %v665 = vld [vmem:[#allocation2 + $0x344] sm:$0xff]
        %v666 = vld [vmem:[#allocation2 + $0x34c] sm:$0xff]
        %v667 = vld [vmem:[#allocation2 + $0x354] sm:$0xf]
        %v668 = vld [vmem:[#allocation2 + $0x360] sm:$0xff]
        %v669 = vld [vmem:[#allocation2 + $0x368] sm:$0xff]
        %v670 = vld [vmem:[#allocation2 + $0x370] sm:$0xff]
        %v671 = vld [vmem:[#allocation2 + $0x378] sm:$0xf]
        %v672 = vld [vmem:[#allocation2 + $0x384] sm:$0xff]
        %v673 = vld [vmem:[#allocation2 + $0x38c] sm:$0xff]
        %v674 = vld [vmem:[#allocation2 + $0x394] sm:$0xff]
        %v675 = vld [vmem:[#allocation2 + $0x39c] sm:$0xf]
        %v676 = vld [vmem:[#allocation2 + $0x3a8] sm:$0xff]
        %v677 = vld [vmem:[#allocation2 + $0x3b0] sm:$0xff]
        %v678 = vld [vmem:[#allocation2 + $0x3b8] sm:$0xff]
        %v679 = vld [vmem:[#allocation2 + $0x3c0] sm:$0xf]
        %v680 = vld [vmem:[#allocation2 + $0x3cc] sm:$0xff]
        %v681 = vld [vmem:[#allocation2 + $0x3d4] sm:$0xff]
        %v682 = vld [vmem:[#allocation2 + $0x3dc] sm:$0xff]
        %v683 = vld [vmem:[#allocation2 + $0x3e4] sm:$0xf]
        %v684 = vld [vmem:[#allocation2 + $0x3f0] sm:$0xff]
        %v685 = vld [vmem:[#allocation2 + $0x3f8] sm:$0xff]
        %v686 = vld [vmem:[#allocation2 + $0x400] sm:$0xff]
        %v687 = vld [vmem:[#allocation2 + $0x408] sm:$0xf]
        %v688 = vld [vmem:[#allocation2 + $0x414] sm:$0xff]
        %v689 = vld [vmem:[#allocation2 + $0x41c] sm:$0xff]
        %v690 = vld [vmem:[#allocation2 + $0x424] sm:$0xff]
        %v691 = vld [vmem:[#allocation2 + $0x42c] sm:$0xf]
        %v692 = vld [vmem:[#allocation2 + $0x438] sm:$0xff]
        %v693 = vld [vmem:[#allocation2 + $0x440] sm:$0xff]
        %v694 = vld [vmem:[#allocation2 + $0x448] sm:$0xff]
        %v695 = vld [vmem:[#allocation2 + $0x450] sm:$0xf]
        %v696 = vld [vmem:[#allocation2 + $0x45c] sm:$0xff]
        %v697 = vld [vmem:[#allocation2 + $0x464] sm:$0xff]
        %v698 = vld [vmem:[#allocation2 + $0x46c] sm:$0xff]
        %v699 = vld [vmem:[#allocation2 + $0x474] sm:$0xf]
        %v700 = vld [vmem:[%s3 + $0x2] sm:$0x7f]
        %v702 = vlaneseq
        %v703 = vshrl.u32 %v702, 7
        %v704 = vsub.s32 0, %v703
        %v705 = vrot.slane %v700, %v704
        %v706 = vlaneseq
        %v707 = vshrl.u32 %v706, 7
        %v708 = vsub.s32 1, %v707
        %v709 = vrot.slane %v700, %v708
        %v710 = vlaneseq
        %v711 = vshrl.u32 %v710, 7
        %v712 = vsub.s32 2, %v711
        %v713 = vrot.slane %v700, %v712
        %v714 = vlaneseq
        %v715 = vshrl.u32 %v714, 7
        %v716 = vsub.s32 3, %v715
        %v717 = vrot.slane %v700, %v716
        %v718 = vlaneseq
        %v719 = vshrl.u32 %v718, 7
        %v720 = vsub.s32 4, %v719
        %v721 = vrot.slane %v700, %v720
        %v722 = vlaneseq
        %v723 = vshrl.u32 %v722, 7
        %v724 = vsub.s32 5, %v723
        %v725 = vrot.slane %v700, %v724
        %v726 = vlaneseq
        %v727 = vshrl.u32 %v726, 7
        %v728 = vsub.s32 6, %v727
        %v729 = vrot.slane %v700, %v728
        %v865 = vunpack.c.l.b16 %v572
        %v866 = vunpack.c.h.b16 %v572
        %v867 = vunpack.c.l.b16 %v573
        %v868 = vunpack.c.h.b16 %v573
        %v869 = vunpack.c.l.b16 %v574
        %v870 = vunpack.c.h.b16 %v574
        %v871 = vunpack.c.l.b16 %v575
        %v872 = vunpack.c.l.b16 %v576
        %v873 = vunpack.c.h.b16 %v576
        %v874 = vunpack.c.l.b16 %v577
        %v875 = vunpack.c.h.b16 %v577
        %v876 = vunpack.c.l.b16 %v578
        %v877 = vunpack.c.h.b16 %v578
        %v878 = vunpack.c.l.b16 %v579
        %v879 = vunpack.c.l.b16 %v580
        %v880 = vunpack.c.h.b16 %v580
        %v881 = vunpack.c.l.b16 %v581
        %v882 = vunpack.c.h.b16 %v581
        %v883 = vunpack.c.l.b16 %v582
        %v884 = vunpack.c.h.b16 %v582
        %v885 = vunpack.c.l.b16 %v583
        %v886 = vunpack.c.l.b16 %v584
        %v887 = vunpack.c.h.b16 %v584
        %v888 = vunpack.c.l.b16 %v585
        %v889 = vunpack.c.h.b16 %v585
        %v890 = vunpack.c.l.b16 %v586
        %v891 = vunpack.c.h.b16 %v586
        %v892 = vunpack.c.l.b16 %v587
        %v893 = vunpack.c.l.b16 %v588
        %v894 = vunpack.c.h.b16 %v588
        %v895 = vunpack.c.l.b16 %v589
        %v896 = vunpack.c.h.b16 %v589
        %v897 = vunpack.c.l.b16 %v590
        %v898 = vunpack.c.h.b16 %v590
        %v899 = vunpack.c.l.b16 %v591
        %v900 = vunpack.c.l.b16 %v592
        %v901 = vunpack.c.h.b16 %v592
        %v902 = vunpack.c.l.b16 %v593
        %v903 = vunpack.c.h.b16 %v593
        %v904 = vunpack.c.l.b16 %v594
        %v905 = vunpack.c.h.b16 %v594
        %v906 = vunpack.c.l.b16 %v595
        %v907 = vunpack.c.l.b16 %v596
        %v908 = vunpack.c.h.b16 %v596
        %v909 = vunpack.c.l.b16 %v597
        %v910 = vunpack.c.h.b16 %v597
        %v911 = vunpack.c.l.b16 %v598
        %v912 = vunpack.c.h.b16 %v598
        %v913 = vunpack.c.l.b16 %v599
        %v914 = vunpack.c.l.b16 %v600
        %v915 = vunpack.c.h.b16 %v600
        %v916 = vunpack.c.l.b16 %v601
        %v917 = vunpack.c.h.b16 %v601
        %v918 = vunpack.c.l.b16 %v602
        %v919 = vunpack.c.h.b16 %v602
        %v920 = vunpack.c.l.b16 %v603
        %v921 = vunpack.c.l.b16 %v604
        %v922 = vunpack.c.h.b16 %v604
        %v923 = vunpack.c.l.b16 %v605
        %v924 = vunpack.c.h.b16 %v605
        %v925 = vunpack.c.l.b16 %v606
        %v926 = vunpack.c.h.b16 %v606
        %v927 = vunpack.c.l.b16 %v607
        %v928 = vunpack.c.l.b16 %v608
        %v929 = vunpack.c.h.b16 %v608
        %v930 = vunpack.c.l.b16 %v609
        %v931 = vunpack.c.h.b16 %v609
        %v932 = vunpack.c.l.b16 %v610
        %v933 = vunpack.c.h.b16 %v610
        %v934 = vunpack.c.l.b16 %v611
        %v935 = vunpack.c.l.b16 %v612
        %v936 = vunpack.c.h.b16 %v612
        %v937 = vunpack.c.l.b16 %v613
        %v938 = vunpack.c.h.b16 %v613
        %v939 = vunpack.c.l.b16 %v614
        %v940 = vunpack.c.h.b16 %v614
        %v941 = vunpack.c.l.b16 %v615
        %v942 = vunpack.c.l.b16 %v616
        %v943 = vunpack.c.h.b16 %v616
        %v944 = vunpack.c.l.b16 %v617
        %v945 = vunpack.c.h.b16 %v617
        %v946 = vunpack.c.l.b16 %v618
        %v947 = vunpack.c.h.b16 %v618
        %v948 = vunpack.c.l.b16 %v619
        %v949 = vunpack.c.l.b16 %v620
        %v950 = vunpack.c.h.b16 %v620
        %v951 = vunpack.c.l.b16 %v621
        %v952 = vunpack.c.h.b16 %v621
        %v953 = vunpack.c.l.b16 %v622
        %v954 = vunpack.c.h.b16 %v622
        %v955 = vunpack.c.l.b16 %v623
        %v956 = vunpack.c.l.b16 %v624
        %v957 = vunpack.c.h.b16 %v624
        %v958 = vunpack.c.l.b16 %v625
        %v959 = vunpack.c.h.b16 %v625
        %v960 = vunpack.c.l.b16 %v626
        %v961 = vunpack.c.h.b16 %v626
        %v962 = vunpack.c.l.b16 %v627
        %v963 = vunpack.c.l.b16 %v628
        %v964 = vunpack.c.h.b16 %v628
        %v965 = vunpack.c.l.b16 %v629
        %v966 = vunpack.c.h.b16 %v629
        %v967 = vunpack.c.l.b16 %v630
        %v968 = vunpack.c.h.b16 %v630
        %v969 = vunpack.c.l.b16 %v631
        %v970 = vunpack.c.l.b16 %v632
        %v971 = vunpack.c.h.b16 %v632
        %v972 = vunpack.c.l.b16 %v633
        %v973 = vunpack.c.h.b16 %v633
        %v974 = vunpack.c.l.b16 %v634
        %v975 = vunpack.c.h.b16 %v634
        %v976 = vunpack.c.l.b16 %v635
        %v977 = vunpack.c.l.b16 %v636
        %v978 = vunpack.c.h.b16 %v636
        %v979 = vunpack.c.l.b16 %v637
        %v980 = vunpack.c.h.b16 %v637
        %v981 = vunpack.c.l.b16 %v638
        %v982 = vunpack.c.h.b16 %v638
        %v983 = vunpack.c.l.b16 %v639
        %v984 = vunpack.c.l.b16 %v640
        %v985 = vunpack.c.h.b16 %v640
        %v986 = vunpack.c.l.b16 %v641
        %v987 = vunpack.c.h.b16 %v641
        %v988 = vunpack.c.l.b16 %v642
        %v989 = vunpack.c.h.b16 %v642
        %v990 = vunpack.c.l.b16 %v643
        %v991 = vunpack.c.l.b16 %v644
        %v992 = vunpack.c.h.b16 %v644
        %v993 = vunpack.c.l.b16 %v645
        %v994 = vunpack.c.h.b16 %v645
        %v995 = vunpack.c.l.b16 %v646
        %v996 = vunpack.c.h.b16 %v646
        %v997 = vunpack.c.l.b16 %v647
        %v998 = vunpack.c.l.b16 %v648
        %v999 = vunpack.c.h.b16 %v648
        %v1000 = vunpack.c.l.b16 %v649
        %v1001 = vunpack.c.h.b16 %v649
        %v1002 = vunpack.c.l.b16 %v650
        %v1003 = vunpack.c.h.b16 %v650
        %v1004 = vunpack.c.l.b16 %v651
        %v1005 = vunpack.c.l.b16 %v652
        %v1006 = vunpack.c.h.b16 %v652
        %v1007 = vunpack.c.l.b16 %v653
        %v1008 = vunpack.c.h.b16 %v653
        %v1009 = vunpack.c.l.b16 %v654
        %v1010 = vunpack.c.h.b16 %v654
        %v1011 = vunpack.c.l.b16 %v655
        %v1012 = vunpack.c.l.b16 %v656
        %v1013 = vunpack.c.h.b16 %v656
        %v1014 = vunpack.c.l.b16 %v657
        %v1015 = vunpack.c.h.b16 %v657
        %v1016 = vunpack.c.l.b16 %v658
        %v1017 = vunpack.c.h.b16 %v658
        %v1018 = vunpack.c.l.b16 %v659
        %v1019 = vunpack.c.l.b16 %v660
        %v1020 = vunpack.c.h.b16 %v660
        %v1021 = vunpack.c.l.b16 %v661
        %v1022 = vunpack.c.h.b16 %v661
        %v1023 = vunpack.c.l.b16 %v662
        %v1024 = vunpack.c.h.b16 %v662
        %v1025 = vunpack.c.l.b16 %v663
        %v1026 = vunpack.c.l.b16 %v664
        %v1027 = vunpack.c.h.b16 %v664
        %v1028 = vunpack.c.l.b16 %v665
        %v1029 = vunpack.c.h.b16 %v665
        %v1030 = vunpack.c.l.b16 %v666
        %v1031 = vunpack.c.h.b16 %v666
        %v1032 = vunpack.c.l.b16 %v667
        %v1033 = vunpack.c.l.b16 %v668
        %v1034 = vunpack.c.h.b16 %v668
        %v1035 = vunpack.c.l.b16 %v669
        %v1036 = vunpack.c.h.b16 %v669
        %v1037 = vunpack.c.l.b16 %v670
        %v1038 = vunpack.c.h.b16 %v670
        %v1039 = vunpack.c.l.b16 %v671
        %v1040 = vunpack.c.l.b16 %v672
        %v1041 = vunpack.c.h.b16 %v672
        %v1042 = vunpack.c.l.b16 %v673
        %v1043 = vunpack.c.h.b16 %v673
        %v1044 = vunpack.c.l.b16 %v674
        %v1045 = vunpack.c.h.b16 %v674
        %v1046 = vunpack.c.l.b16 %v675
        %v1047 = vunpack.c.l.b16 %v676
        %v1048 = vunpack.c.h.b16 %v676
        %v1049 = vunpack.c.l.b16 %v677
        %v1050 = vunpack.c.h.b16 %v677
        %v1051 = vunpack.c.l.b16 %v678
        %v1052 = vunpack.c.h.b16 %v678
        %v1053 = vunpack.c.l.b16 %v679
        %v1054 = vunpack.c.l.b16 %v680
        %v1055 = vunpack.c.h.b16 %v680
        %v1056 = vunpack.c.l.b16 %v681
        %v1057 = vunpack.c.h.b16 %v681
        %v1058 = vunpack.c.l.b16 %v682
        %v1059 = vunpack.c.h.b16 %v682
        %v1060 = vunpack.c.l.b16 %v683
        %v1061 = vunpack.c.l.b16 %v684
        %v1062 = vunpack.c.h.b16 %v684
        %v1063 = vunpack.c.l.b16 %v685
        %v1064 = vunpack.c.h.b16 %v685
        %v1065 = vunpack.c.l.b16 %v686
        %v1066 = vunpack.c.h.b16 %v686
        %v1067 = vunpack.c.l.b16 %v687
        %v1068 = vunpack.c.l.b16 %v688
        %v1069 = vunpack.c.h.b16 %v688
        %v1070 = vunpack.c.l.b16 %v689
        %v1071 = vunpack.c.h.b16 %v689
        %v1072 = vunpack.c.l.b16 %v690
        %v1073 = vunpack.c.h.b16 %v690
        %v1074 = vunpack.c.l.b16 %v691
        %v1075 = vunpack.c.l.b16 %v692
        %v1076 = vunpack.c.h.b16 %v692
        %v1077 = vunpack.c.l.b16 %v693
        %v1078 = vunpack.c.h.b16 %v693
        %v1079 = vunpack.c.l.b16 %v694
        %v1080 = vunpack.c.h.b16 %v694
        %v1081 = vunpack.c.l.b16 %v695
        %v1082 = vunpack.c.l.b16 %v696
        %v1083 = vunpack.c.h.b16 %v696
        %v1084 = vunpack.c.l.b16 %v697
        %v1085 = vunpack.c.h.b16 %v697
        %v1086 = vunpack.c.l.b16 %v698
        %v1087 = vunpack.c.h.b16 %v698
        %v1088 = vunpack.c.l.b16 %v699
        %v1089 = vpack.c.b16 %v872, %v865
        %v1090 = vpack.c.b16 %v873, %v866
        %v1091 = vpack.c.b16 %v874, %v867
        %v1092 = vpack.c.b16 %v875, %v868
        %v1093 = vpack.c.b16 %v876, %v869
        %v1094 = vpack.c.b16 %v877, %v870
        %v1095 = vpack.c.b16 %v878, %v871
        %v1096 = vpack.c.b16 %v886, %v879
        %v1097 = vpack.c.b16 %v887, %v880
        %v1098 = vpack.c.b16 %v888, %v881
        %v1099 = vpack.c.b16 %v889, %v882
        %v1100 = vpack.c.b16 %v890, %v883
        %v1101 = vpack.c.b16 %v891, %v884
        %v1102 = vpack.c.b16 %v892, %v885
        %v1103 = vpack.c.b16 %v900, %v893
        %v1104 = vpack.c.b16 %v901, %v894
        %v1105 = vpack.c.b16 %v902, %v895
        %v1106 = vpack.c.b16 %v903, %v896
        %v1107 = vpack.c.b16 %v904, %v897
        %v1108 = vpack.c.b16 %v905, %v898
        %v1109 = vpack.c.b16 %v906, %v899
        %v1110 = vpack.c.b16 %v914, %v907
        %v1111 = vpack.c.b16 %v915, %v908
        %v1112 = vpack.c.b16 %v916, %v909
        %v1113 = vpack.c.b16 %v917, %v910
        %v1114 = vpack.c.b16 %v918, %v911
        %v1115 = vpack.c.b16 %v919, %v912
        %v1116 = vpack.c.b16 %v920, %v913
        %v1117 = vpack.c.b16 %v928, %v921
        %v1118 = vpack.c.b16 %v929, %v922
        %v1119 = vpack.c.b16 %v930, %v923
        %v1120 = vpack.c.b16 %v931, %v924
        %v1121 = vpack.c.b16 %v932, %v925
        %v1122 = vpack.c.b16 %v933, %v926
        %v1123 = vpack.c.b16 %v934, %v927
        %v1124 = vpack.c.b16 %v942, %v935
        %v1125 = vpack.c.b16 %v943, %v936
        %v1126 = vpack.c.b16 %v944, %v937
        %v1127 = vpack.c.b16 %v945, %v938
        %v1128 = vpack.c.b16 %v946, %v939
        %v1129 = vpack.c.b16 %v947, %v940
        %v1130 = vpack.c.b16 %v948, %v941
        %v1131 = vpack.c.b16 %v956, %v949
        %v1132 = vpack.c.b16 %v957, %v950
        %v1133 = vpack.c.b16 %v958, %v951
        %v1134 = vpack.c.b16 %v959, %v952
        %v1135 = vpack.c.b16 %v960, %v953
        %v1136 = vpack.c.b16 %v961, %v954
        %v1137 = vpack.c.b16 %v962, %v955
        %v1138 = vpack.c.b16 %v970, %v963
        %v1139 = vpack.c.b16 %v971, %v964
        %v1140 = vpack.c.b16 %v972, %v965
        %v1141 = vpack.c.b16 %v973, %v966
        %v1142 = vpack.c.b16 %v974, %v967
        %v1143 = vpack.c.b16 %v975, %v968
        %v1144 = vpack.c.b16 %v976, %v969
        %v1145 = vpack.c.b16 %v984, %v977
        %v1146 = vpack.c.b16 %v985, %v978
        %v1147 = vpack.c.b16 %v986, %v979
        %v1148 = vpack.c.b16 %v987, %v980
        %v1149 = vpack.c.b16 %v988, %v981
        %v1150 = vpack.c.b16 %v989, %v982
        %v1151 = vpack.c.b16 %v990, %v983
        %v1152 = vpack.c.b16 %v998, %v991
        %v1153 = vpack.c.b16 %v999, %v992
        %v1154 = vpack.c.b16 %v1000, %v993
        %v1155 = vpack.c.b16 %v1001, %v994
        %v1156 = vpack.c.b16 %v1002, %v995
        %v1157 = vpack.c.b16 %v1003, %v996
        %v1158 = vpack.c.b16 %v1004, %v997
        %v1159 = vpack.c.b16 %v1012, %v1005
        %v1160 = vpack.c.b16 %v1013, %v1006
        %v1161 = vpack.c.b16 %v1014, %v1007
        %v1162 = vpack.c.b16 %v1015, %v1008
        %v1163 = vpack.c.b16 %v1016, %v1009
        %v1164 = vpack.c.b16 %v1017, %v1010
        %v1165 = vpack.c.b16 %v1018, %v1011
        %v1166 = vpack.c.b16 %v1026, %v1019
        %v1167 = vpack.c.b16 %v1027, %v1020
        %v1168 = vpack.c.b16 %v1028, %v1021
        %v1169 = vpack.c.b16 %v1029, %v1022
        %v1170 = vpack.c.b16 %v1030, %v1023
        %v1171 = vpack.c.b16 %v1031, %v1024
        %v1172 = vpack.c.b16 %v1032, %v1025
        %v1173 = vpack.c.b16 %v1040, %v1033
        %v1174 = vpack.c.b16 %v1041, %v1034
        %v1175 = vpack.c.b16 %v1042, %v1035
        %v1176 = vpack.c.b16 %v1043, %v1036
        %v1177 = vpack.c.b16 %v1044, %v1037
        %v1178 = vpack.c.b16 %v1045, %v1038
        %v1179 = vpack.c.b16 %v1046, %v1039
        %v1180 = vpack.c.b16 %v1054, %v1047
        %v1181 = vpack.c.b16 %v1055, %v1048
        %v1182 = vpack.c.b16 %v1056, %v1049
        %v1183 = vpack.c.b16 %v1057, %v1050
        %v1184 = vpack.c.b16 %v1058, %v1051
        %v1185 = vpack.c.b16 %v1059, %v1052
        %v1186 = vpack.c.b16 %v1060, %v1053
        %v1187 = vpack.c.b16 %v1068, %v1061
        %v1188 = vpack.c.b16 %v1069, %v1062
        %v1189 = vpack.c.b16 %v1070, %v1063
        %v1190 = vpack.c.b16 %v1071, %v1064
        %v1191 = vpack.c.b16 %v1072, %v1065
        %v1192 = vpack.c.b16 %v1073, %v1066
        %v1193 = vpack.c.b16 %v1074, %v1067
        %v1194 = vpack.c.b16 %v1082, %v1075
        %v1195 = vpack.c.b16 %v1083, %v1076
        %v1196 = vpack.c.b16 %v1084, %v1077
        %v1197 = vpack.c.b16 %v1085, %v1078
        %v1198 = vpack.c.b16 %v1086, %v1079
        %v1199 = vpack.c.b16 %v1087, %v1080
        %v1200 = vpack.c.b16 %v1088, %v1081
        %1313 = vmatprep.subr.bf16.mxu0 %v1090
        %1314 = vmatpush1.bf16.msra.mxu0 %v1089
        %1315 = vmatprep.subr.bf16.mxu0 %v1097
        %1316 = vmatpush1.bf16.msra.mxu0 %v1096
        %1317 = vmatprep.subr.bf16.mxu0 %v1104
        %1318 = vmatpush1.bf16.msra.mxu0 %v1103
        %1319 = vmatprep.subr.bf16.mxu0 %v1111
        %1320 = vmatpush1.bf16.msra.mxu0 %v1110
        %1321 = vmatprep.subr.bf16.mxu0 %v1118
        %1322 = vmatpush1.bf16.msra.mxu0 %v1117
        %1323 = vmatprep.subr.bf16.mxu0 %v1125
        %1324 = vmatpush1.bf16.msra.mxu0 %v1124
        %1325 = vmatprep.subr.bf16.mxu0 %v1132
        %1326 = vmatpush1.bf16.msra.mxu0 %v1131
        %1327 = vmatprep.subr.bf16.mxu0 %v1139
        %1328 = vmatpush1.bf16.msra.mxu0 %v1138
        %1329 = vmatprep.subr.bf16.mxu0 %v1146
        %1330 = vmatpush1.bf16.msra.mxu0 %v1145
        %1331 = vmatprep.subr.bf16.mxu0 %v1153
        %1332 = vmatpush1.bf16.msra.mxu0 %v1152
        %1333 = vmatprep.subr.bf16.mxu0 %v1160
        %1334 = vmatpush1.bf16.msra.mxu0 %v1159
        %1335 = vmatprep.subr.bf16.mxu0 %v1167
        %1336 = vmatpush1.bf16.msra.mxu0 %v1166
        %1337 = vmatprep.subr.bf16.mxu0 %v1174
        %1338 = vmatpush1.bf16.msra.mxu0 %v1173
        %1339 = vmatprep.subr.bf16.mxu0 %v1181
        %1340 = vmatpush1.bf16.msra.mxu0 %v1180
        %1341 = vmatprep.subr.bf16.mxu0 %v1188
        %1342 = vmatpush1.bf16.msra.mxu0 %v1187
        %1343 = vmatprep.subr.bf16.mxu0 %v1195
        %1344 = vmatpush1.bf16.msra.mxu0 %v1194
        %1345 = vmatprep.mubr.bf16.mxu0 %v541
        %1346 = vmatmul.mubr.bf16.gmra.mrb[0].mxu0 %v540
        %v1347 = vpop.f32.mrb[0].mxu0
        %v1348 = vadd.f32 %v705, %v1347
        %v1349 = vpop.f32.mrb[0].mxu0
        %v1350 = vadd.f32 %v709, %v1349
        %v1351 = vpop.f32.mrb[0].mxu0
        %v1352 = vadd.f32 %v705, %v1351
        %v1353 = vpop.f32.mrb[0].mxu0
        %v1354 = vadd.f32 %v709, %v1353
        %1355 = vmatprep.mubr.bf16.mxu0 %v543
        %1356 = vmatmul.mubr.bf16.gmra.mrb[0].mxu0 %v542
        %v1357 = vpop.f32.mrb[0].mxu0
        %v1358 = vadd.f32 %v705, %v1357
        %v1359 = vpop.f32.mrb[0].mxu0
        %v1360 = vadd.f32 %v709, %v1359
        %v1361 = vpop.f32.mrb[0].mxu0
        %v1362 = vadd.f32 %v705, %v1361
        %v1363 = vpop.f32.mrb[0].mxu0
        %v1364 = vadd.f32 %v709, %v1363
        %1365 = vmatprep.mubr.bf16.mxu0 %v545
        %1366 = vmatmul.mubr.bf16.gmra.mrb[0].mxu0 %v544
        %v1367 = vpop.f32.mrb[0].mxu0
        %v1368 = vadd.f32 %v705, %v1367
        %v1369 = vpop.f32.mrb[0].mxu0
        %v1370 = vadd.f32 %v709, %v1369
        %v1371 = vpop.f32.mrb[0].mxu0
        %v1372 = vadd.f32 %v705, %v1371
        %v1373 = vpop.f32.mrb[0].mxu0
        %v1374 = vadd.f32 %v709, %v1373
        %1375 = vmatprep.mubr.bf16.mxu0 %v547
        %1376 = vmatmul.mubr.bf16.gmra.mrb[0].mxu0 %v546
        %v1377 = vpop.f32.mrb[0].mxu0
        %v1378 = vadd.f32 %v705, %v1377
        %v1379 = vpop.f32.mrb[0].mxu0
        %v1380 = vadd.f32 %v709, %v1379
        %v1381 = vpop.f32.mrb[0].mxu0
        %v1382 = vadd.f32 %v705, %v1381
        %v1383 = vpop.f32.mrb[0].mxu0
        %v1384 = vadd.f32 %v709, %v1383
        %1385 = vmatprep.mubr.bf16.mxu0 %v549
        %1386 = vmatmul.mubr.bf16.gmra.mrb[0].mxu0 %v548
        %v1387 = vpop.f32.mrb[0].mxu0
        %v1388 = vadd.f32 %v705, %v1387
        %v1389 = vpop.f32.mrb[0].mxu0
        %v1390 = vadd.f32 %v709, %v1389
        %v1391 = vpop.f32.mrb[0].mxu0
        %v1392 = vadd.f32 %v705, %v1391
        %v1393 = vpop.f32.mrb[0].mxu0
        %v1394 = vadd.f32 %v709, %v1393
        %1395 = vmatprep.mubr.bf16.mxu0 %v551
        %1396 = vmatmul.mubr.bf16.gmra.mrb[0].mxu0 %v550
        %v1397 = vpop.f32.mrb[0].mxu0
        %v1398 = vadd.f32 %v705, %v1397
        %v1399 = vpop.f32.mrb[0].mxu0
        %v1400 = vadd.f32 %v709, %v1399
        %v1401 = vpop.f32.mrb[0].mxu0
        %v1402 = vadd.f32 %v705, %v1401
        %v1403 = vpop.f32.mrb[0].mxu0
        %v1404 = vadd.f32 %v709, %v1403
        %1405 = vmatprep.mubr.bf16.mxu0 %v553
        %1406 = vmatmul.mubr.bf16.gmra.mrb[0].mxu0 %v552
        %v1407 = vpop.f32.mrb[0].mxu0
        %v1408 = vadd.f32 %v705, %v1407
        %v1409 = vpop.f32.mrb[0].mxu0
        %v1410 = vadd.f32 %v709, %v1409
        %v1411 = vpop.f32.mrb[0].mxu0
        %v1412 = vadd.f32 %v705, %v1411
        %v1413 = vpop.f32.mrb[0].mxu0
        %v1414 = vadd.f32 %v709, %v1413
        %1415 = vmatprep.mubr.bf16.mxu0 %v555
        %1416 = vmatmul.mubr.bf16.gmra.mrb[0].mxu0 %v554
        %v1417 = vpop.f32.mrb[0].mxu0
        %v1418 = vadd.f32 %v705, %v1417
        %v1419 = vpop.f32.mrb[0].mxu0
        %v1420 = vadd.f32 %v709, %v1419
        %v1421 = vpop.f32.mrb[0].mxu0
        %v1422 = vadd.f32 %v705, %v1421
        %v1423 = vpop.f32.mrb[0].mxu0
        %v1424 = vadd.f32 %v709, %v1423
        %1425 = vmatprep.mubr.bf16.mxu0 %v557
        %1426 = vmatmul.mubr.bf16.gmra.mrb[0].mxu0 %v556
        %v1427 = vpop.f32.mrb[0].mxu0
        %v1428 = vadd.f32 %v705, %v1427
        %v1429 = vpop.f32.mrb[0].mxu0
        %v1430 = vadd.f32 %v709, %v1429
        %v1431 = vpop.f32.mrb[0].mxu0
        %v1432 = vadd.f32 %v705, %v1431
        %v1433 = vpop.f32.mrb[0].mxu0
        %v1434 = vadd.f32 %v709, %v1433
        %1435 = vmatprep.mubr.bf16.mxu0 %v559
        %1436 = vmatmul.mubr.bf16.gmra.mrb[0].mxu0 %v558
        %v1437 = vpop.f32.mrb[0].mxu0
        %v1438 = vadd.f32 %v705, %v1437
        %v1439 = vpop.f32.mrb[0].mxu0
        %v1440 = vadd.f32 %v709, %v1439
        %v1441 = vpop.f32.mrb[0].mxu0
        %v1442 = vadd.f32 %v705, %v1441
        %v1443 = vpop.f32.mrb[0].mxu0
        %v1444 = vadd.f32 %v709, %v1443
        %1445 = vmatprep.mubr.bf16.mxu0 %v561
        %1446 = vmatmul.mubr.bf16.gmra.mrb[0].mxu0 %v560
        %v1447 = vpop.f32.mrb[0].mxu0
        %v1448 = vadd.f32 %v705, %v1447
        %v1449 = vpop.f32.mrb[0].mxu0
        %v1450 = vadd.f32 %v709, %v1449
        %v1451 = vpop.f32.mrb[0].mxu0
        %v1452 = vadd.f32 %v705, %v1451
        %v1453 = vpop.f32.mrb[0].mxu0
        %v1454 = vadd.f32 %v709, %v1453
        %1455 = vmatprep.mubr.bf16.mxu0 %v563
        %1456 = vmatmul.mubr.bf16.gmra.mrb[0].mxu0 %v562
        %v1457 = vpop.f32.mrb[0].mxu0
        %v1458 = vadd.f32 %v705, %v1457
        %v1459 = vpop.f32.mrb[0].mxu0
        %v1460 = vadd.f32 %v709, %v1459
        %v1461 = vpop.f32.mrb[0].mxu0
        %v1462 = vadd.f32 %v705, %v1461
        %v1463 = vpop.f32.mrb[0].mxu0
        %v1464 = vadd.f32 %v709, %v1463
        %1465 = vmatprep.mubr.bf16.mxu0 %v565
        %1466 = vmatmul.mubr.bf16.gmra.mrb[0].mxu0 %v564
        %v1467 = vpop.f32.mrb[0].mxu0
        %v1468 = vadd.f32 %v705, %v1467
        %v1469 = vpop.f32.mrb[0].mxu0
        %v1470 = vadd.f32 %v709, %v1469
        %v1471 = vpop.f32.mrb[0].mxu0
        %v1472 = vadd.f32 %v705, %v1471
        %v1473 = vpop.f32.mrb[0].mxu0
        %v1474 = vadd.f32 %v709, %v1473
        %1475 = vmatprep.mubr.bf16.mxu0 %v567
        %1476 = vmatmul.mubr.bf16.gmra.mrb[0].mxu0 %v566
        %v1477 = vpop.f32.mrb[0].mxu0
        %v1478 = vadd.f32 %v705, %v1477
        %v1479 = vpop.f32.mrb[0].mxu0
        %v1480 = vadd.f32 %v709, %v1479
        %v1481 = vpop.f32.mrb[0].mxu0
        %v1482 = vadd.f32 %v705, %v1481
        %v1483 = vpop.f32.mrb[0].mxu0
        %v1484 = vadd.f32 %v709, %v1483
        %1485 = vmatprep.mubr.bf16.mxu0 %v569
        %1486 = vmatmul.mubr.bf16.gmra.mrb[0].mxu0 %v568
        %v1487 = vpop.f32.mrb[0].mxu0
        %v1488 = vadd.f32 %v705, %v1487
        %v1489 = vpop.f32.mrb[0].mxu0
        %v1490 = vadd.f32 %v709, %v1489
        %v1491 = vpop.f32.mrb[0].mxu0
        %v1492 = vadd.f32 %v705, %v1491
        %v1493 = vpop.f32.mrb[0].mxu0
        %v1494 = vadd.f32 %v709, %v1493
        %1495 = vmatprep.mubr.bf16.mxu0 %v571
        %1496 = vmatmul.mubr.bf16.gmra.mrb[0].mxu0 %v570
        %v1497 = vpop.f32.mrb[0].mxu0
        %v1498 = vadd.f32 %v705, %v1497
        %v1499 = vpop.f32.mrb[0].mxu0
        %v1500 = vadd.f32 %v709, %v1499
        %v1501 = vpop.f32.mrb[0].mxu0
        %v1502 = vadd.f32 %v705, %v1501
        %v1503 = vpop.f32.mrb[0].mxu0
        %v1504 = vadd.f32 %v709, %v1503
        %1505 = vdwg.mxu0
        %1506 = vmatprep.subr.bf16.mxu0 %v1092
        %1507 = vmatpush1.bf16.msra.mxu0 %v1091
        %1508 = vmatprep.subr.bf16.mxu0 %v1099
        %1509 = vmatpush1.bf16.msra.mxu0 %v1098
        %1510 = vmatprep.subr.bf16.mxu0 %v1106
        %1511 = vmatpush1.bf16.msra.mxu0 %v1105
        %1512 = vmatprep.subr.bf16.mxu0 %v1113
        %1513 = vmatpush1.bf16.msra.mxu0 %v1112
        %1514 = vmatprep.subr.bf16.mxu0 %v1120
        %1515 = vmatpush1.bf16.msra.mxu0 %v1119
        %1516 = vmatprep.subr.bf16.mxu0 %v1127
        %1517 = vmatpush1.bf16.msra.mxu0 %v1126
        %1518 = vmatprep.subr.bf16.mxu0 %v1134
        %1519 = vmatpush1.bf16.msra.mxu0 %v1133
        %1520 = vmatprep.subr.bf16.mxu0 %v1141
        %1521 = vmatpush1.bf16.msra.mxu0 %v1140
        %1522 = vmatprep.subr.bf16.mxu0 %v1148
        %1523 = vmatpush1.bf16.msra.mxu0 %v1147
        %1524 = vmatprep.subr.bf16.mxu0 %v1155
        %1525 = vmatpush1.bf16.msra.mxu0 %v1154
        %1526 = vmatprep.subr.bf16.mxu0 %v1162
        %1527 = vmatpush1.bf16.msra.mxu0 %v1161
        %1528 = vmatprep.subr.bf16.mxu0 %v1169
        %1529 = vmatpush1.bf16.msra.mxu0 %v1168
        %1530 = vmatprep.subr.bf16.mxu0 %v1176
        %1531 = vmatpush1.bf16.msra.mxu0 %v1175
        %1532 = vmatprep.subr.bf16.mxu0 %v1183
        %1533 = vmatpush1.bf16.msra.mxu0 %v1182
        %1534 = vmatprep.subr.bf16.mxu0 %v1190
        %1535 = vmatpush1.bf16.msra.mxu0 %v1189
        %1536 = vmatprep.subr.bf16.mxu0 %v1197
        %1537 = vmatpush1.bf16.msra.mxu0 %v1196
        %1538 = vmatprep.mubr.bf16.mxu0 %v541
        %1539 = vmatmul.mubr.bf16.gmra.mrb[0].mxu0 %v540
        %v1540 = vpop.f32.mrb[0].mxu0
        %v1541 = vadd.f32 %v713, %v1540
        %v1542 = vpop.f32.mrb[0].mxu0
        %v1543 = vadd.f32 %v717, %v1542
        %v1544 = vpop.f32.mrb[0].mxu0
        %v1545 = vadd.f32 %v713, %v1544
        %v1546 = vpop.f32.mrb[0].mxu0
        %v1547 = vadd.f32 %v717, %v1546
        %1548 = vmatprep.mubr.bf16.mxu0 %v543
        %1549 = vmatmul.mubr.bf16.gmra.mrb[0].mxu0 %v542
        %v1550 = vpop.f32.mrb[0].mxu0
        %v1551 = vadd.f32 %v713, %v1550
        %v1552 = vpop.f32.mrb[0].mxu0
        %v1553 = vadd.f32 %v717, %v1552
        %v1554 = vpop.f32.mrb[0].mxu0
        %v1555 = vadd.f32 %v713, %v1554
        %v1556 = vpop.f32.mrb[0].mxu0
        %v1557 = vadd.f32 %v717, %v1556
        %1558 = vmatprep.mubr.bf16.mxu0 %v545
        %1559 = vmatmul.mubr.bf16.gmra.mrb[0].mxu0 %v544
        %v1560 = vpop.f32.mrb[0].mxu0
        %v1561 = vadd.f32 %v713, %v1560
        %v1562 = vpop.f32.mrb[0].mxu0
        %v1563 = vadd.f32 %v717, %v1562
        %v1564 = vpop.f32.mrb[0].mxu0
        %v1565 = vadd.f32 %v713, %v1564
        %v1566 = vpop.f32.mrb[0].mxu0
        %v1567 = vadd.f32 %v717, %v1566
        %1568 = vmatprep.mubr.bf16.mxu0 %v547
        %1569 = vmatmul.mubr.bf16.gmra.mrb[0].mxu0 %v546
        %v1570 = vpop.f32.mrb[0].mxu0
        %v1571 = vadd.f32 %v713, %v1570
        %v1572 = vpop.f32.mrb[0].mxu0
        %v1573 = vadd.f32 %v717, %v1572
        %v1574 = vpop.f32.mrb[0].mxu0
        %v1575 = vadd.f32 %v713, %v1574
        %v1576 = vpop.f32.mrb[0].mxu0
        %v1577 = vadd.f32 %v717, %v1576
        %1578 = vmatprep.mubr.bf16.mxu0 %v549
        %1579 = vmatmul.mubr.bf16.gmra.mrb[0].mxu0 %v548
        %v1580 = vpop.f32.mrb[0].mxu0
        %v1581 = vadd.f32 %v713, %v1580
        %v1582 = vpop.f32.mrb[0].mxu0
        %v1583 = vadd.f32 %v717, %v1582
        %v1584 = vpop.f32.mrb[0].mxu0
        %v1585 = vadd.f32 %v713, %v1584
        %v1586 = vpop.f32.mrb[0].mxu0
        %v1587 = vadd.f32 %v717, %v1586
        %1588 = vmatprep.mubr.bf16.mxu0 %v551
        %1589 = vmatmul.mubr.bf16.gmra.mrb[0].mxu0 %v550
        %v1590 = vpop.f32.mrb[0].mxu0
        %v1591 = vadd.f32 %v713, %v1590
        %v1592 = vpop.f32.mrb[0].mxu0
        %v1593 = vadd.f32 %v717, %v1592
        %v1594 = vpop.f32.mrb[0].mxu0
        %v1595 = vadd.f32 %v713, %v1594
        %v1596 = vpop.f32.mrb[0].mxu0
        %v1597 = vadd.f32 %v717, %v1596
        %1598 = vmatprep.mubr.bf16.mxu0 %v553
        %1599 = vmatmul.mubr.bf16.gmra.mrb[0].mxu0 %v552
        %v1600 = vpop.f32.mrb[0].mxu0
        %v1601 = vadd.f32 %v713, %v1600
        %v1602 = vpop.f32.mrb[0].mxu0
        %v1603 = vadd.f32 %v717, %v1602
        %v1604 = vpop.f32.mrb[0].mxu0
        %v1605 = vadd.f32 %v713, %v1604
        %v1606 = vpop.f32.mrb[0].mxu0
        %v1607 = vadd.f32 %v717, %v1606
        %1608 = vmatprep.mubr.bf16.mxu0 %v555
        %1609 = vmatmul.mubr.bf16.gmra.mrb[0].mxu0 %v554
        %v1610 = vpop.f32.mrb[0].mxu0
        %v1611 = vadd.f32 %v713, %v1610
        %v1612 = vpop.f32.mrb[0].mxu0
        %v1613 = vadd.f32 %v717, %v1612
        %v1614 = vpop.f32.mrb[0].mxu0
        %v1615 = vadd.f32 %v713, %v1614
        %v1616 = vpop.f32.mrb[0].mxu0
        %v1617 = vadd.f32 %v717, %v1616
        %1618 = vmatprep.mubr.bf16.mxu0 %v557
        %1619 = vmatmul.mubr.bf16.gmra.mrb[0].mxu0 %v556
        %v1620 = vpop.f32.mrb[0].mxu0
        %v1621 = vadd.f32 %v713, %v1620
        %v1622 = vpop.f32.mrb[0].mxu0
        %v1623 = vadd.f32 %v717, %v1622
        %v1624 = vpop.f32.mrb[0].mxu0
        %v1625 = vadd.f32 %v713, %v1624
        %v1626 = vpop.f32.mrb[0].mxu0
        %v1627 = vadd.f32 %v717, %v1626
        %1628 = vmatprep.mubr.bf16.mxu0 %v559
        %1629 = vmatmul.mubr.bf16.gmra.mrb[0].mxu0 %v558
        %v1630 = vpop.f32.mrb[0].mxu0
        %v1631 = vadd.f32 %v713, %v1630
        %v1632 = vpop.f32.mrb[0].mxu0
        %v1633 = vadd.f32 %v717, %v1632
        %v1634 = vpop.f32.mrb[0].mxu0
        %v1635 = vadd.f32 %v713, %v1634
        %v1636 = vpop.f32.mrb[0].mxu0
        %v1637 = vadd.f32 %v717, %v1636
        %1638 = vmatprep.mubr.bf16.mxu0 %v561
        %1639 = vmatmul.mubr.bf16.gmra.mrb[0].mxu0 %v560
        %v1640 = vpop.f32.mrb[0].mxu0
        %v1641 = vadd.f32 %v713, %v1640
        %v1642 = vpop.f32.mrb[0].mxu0
        %v1643 = vadd.f32 %v717, %v1642
        %v1644 = vpop.f32.mrb[0].mxu0
        %v1645 = vadd.f32 %v713, %v1644
        %v1646 = vpop.f32.mrb[0].mxu0
        %v1647 = vadd.f32 %v717, %v1646
        %1648 = vmatprep.mubr.bf16.mxu0 %v563
        %1649 = vmatmul.mubr.bf16.gmra.mrb[0].mxu0 %v562
        %v1650 = vpop.f32.mrb[0].mxu0
        %v1651 = vadd.f32 %v713, %v1650
        %v1652 = vpop.f32.mrb[0].mxu0
        %v1653 = vadd.f32 %v717, %v1652
        %v1654 = vpop.f32.mrb[0].mxu0
        %v1655 = vadd.f32 %v713, %v1654
        %v1656 = vpop.f32.mrb[0].mxu0
        %v1657 = vadd.f32 %v717, %v1656
        %1658 = vmatprep.mubr.bf16.mxu0 %v565
        %1659 = vmatmul.mubr.bf16.gmra.mrb[0].mxu0 %v564
        %v1660 = vpop.f32.mrb[0].mxu0
        %v1661 = vadd.f32 %v713, %v1660
        %v1662 = vpop.f32.mrb[0].mxu0
        %v1663 = vadd.f32 %v717, %v1662
        %v1664 = vpop.f32.mrb[0].mxu0
        %v1665 = vadd.f32 %v713, %v1664
        %v1666 = vpop.f32.mrb[0].mxu0
        %v1667 = vadd.f32 %v717, %v1666
        %1668 = vmatprep.mubr.bf16.mxu0 %v567
        %1669 = vmatmul.mubr.bf16.gmra.mrb[0].mxu0 %v566
        %v1670 = vpop.f32.mrb[0].mxu0
        %v1671 = vadd.f32 %v713, %v1670
        %v1672 = vpop.f32.mrb[0].mxu0
        %v1673 = vadd.f32 %v717, %v1672
        %v1674 = vpop.f32.mrb[0].mxu0
        %v1675 = vadd.f32 %v713, %v1674
        %v1676 = vpop.f32.mrb[0].mxu0
        %v1677 = vadd.f32 %v717, %v1676
        %1678 = vmatprep.mubr.bf16.mxu0 %v569
        %1679 = vmatmul.mubr.bf16.gmra.mrb[0].mxu0 %v568
        %v1680 = vpop.f32.mrb[0].mxu0
        %v1681 = vadd.f32 %v713, %v1680
        %v1682 = vpop.f32.mrb[0].mxu0
        %v1683 = vadd.f32 %v717, %v1682
        %v1684 = vpop.f32.mrb[0].mxu0
        %v1685 = vadd.f32 %v713, %v1684
        %v1686 = vpop.f32.mrb[0].mxu0
        %v1687 = vadd.f32 %v717, %v1686
        %1688 = vmatprep.mubr.bf16.mxu0 %v571
        %1689 = vmatmul.mubr.bf16.gmra.mrb[0].mxu0 %v570
        %v1690 = vpop.f32.mrb[0].mxu0
        %v1691 = vadd.f32 %v713, %v1690
        %v1692 = vpop.f32.mrb[0].mxu0
        %v1693 = vadd.f32 %v717, %v1692
        %v1694 = vpop.f32.mrb[0].mxu0
        %v1695 = vadd.f32 %v713, %v1694
        %v1696 = vpop.f32.mrb[0].mxu0
        %v1697 = vadd.f32 %v717, %v1696
        %1698 = vdwg.mxu0
        %1699 = vmatprep.subr.bf16.mxu0 %v1094
        %1700 = vmatpush1.bf16.msra.mxu0 %v1093
        %1701 = vmatprep.subr.bf16.mxu0 %v1101
        %1702 = vmatpush1.bf16.msra.mxu0 %v1100
        %1703 = vmatprep.subr.bf16.mxu0 %v1108
        %1704 = vmatpush1.bf16.msra.mxu0 %v1107
        %1705 = vmatprep.subr.bf16.mxu0 %v1115
        %1706 = vmatpush1.bf16.msra.mxu0 %v1114
        %1707 = vmatprep.subr.bf16.mxu0 %v1122
        %1708 = vmatpush1.bf16.msra.mxu0 %v1121
        %1709 = vmatprep.subr.bf16.mxu0 %v1129
        %1710 = vmatpush1.bf16.msra.mxu0 %v1128
        %1711 = vmatprep.subr.bf16.mxu0 %v1136
        %1712 = vmatpush1.bf16.msra.mxu0 %v1135
        %1713 = vmatprep.subr.bf16.mxu0 %v1143
        %1714 = vmatpush1.bf16.msra.mxu0 %v1142
        %1715 = vmatprep.subr.bf16.mxu0 %v1150
        %1716 = vmatpush1.bf16.msra.mxu0 %v1149
        %1717 = vmatprep.subr.bf16.mxu0 %v1157
        %1718 = vmatpush1.bf16.msra.mxu0 %v1156
        %1719 = vmatprep.subr.bf16.mxu0 %v1164
        %1720 = vmatpush1.bf16.msra.mxu0 %v1163
        %1721 = vmatprep.subr.bf16.mxu0 %v1171
        %1722 = vmatpush1.bf16.msra.mxu0 %v1170
        %1723 = vmatprep.subr.bf16.mxu0 %v1178
        %1724 = vmatpush1.bf16.msra.mxu0 %v1177
        %1725 = vmatprep.subr.bf16.mxu0 %v1185
        %1726 = vmatpush1.bf16.msra.mxu0 %v1184
        %1727 = vmatprep.subr.bf16.mxu0 %v1192
        %1728 = vmatpush1.bf16.msra.mxu0 %v1191
        %1729 = vmatprep.subr.bf16.mxu0 %v1199
        %1730 = vmatpush1.bf16.msra.mxu0 %v1198
        %1731 = vmatprep.mubr.bf16.mxu0 %v541
        %1732 = vmatmul.mubr.bf16.gmra.mrb[0].mxu0 %v540
        %v1733 = vpop.f32.mrb[0].mxu0
        %v1734 = vadd.f32 %v721, %v1733
        %v1735 = vpop.f32.mrb[0].mxu0
        %v1736 = vadd.f32 %v725, %v1735
        %v1737 = vpop.f32.mrb[0].mxu0
        %v1738 = vadd.f32 %v721, %v1737
        %v1739 = vpop.f32.mrb[0].mxu0
        %v1740 = vadd.f32 %v725, %v1739
        %1741 = vmatprep.mubr.bf16.mxu0 %v543
        %1742 = vmatmul.mubr.bf16.gmra.mrb[0].mxu0 %v542
        %v1743 = vpop.f32.mrb[0].mxu0
        %v1744 = vadd.f32 %v721, %v1743
        %v1745 = vpop.f32.mrb[0].mxu0
        %v1746 = vadd.f32 %v725, %v1745
        %v1747 = vpop.f32.mrb[0].mxu0
        %v1748 = vadd.f32 %v721, %v1747
        %v1749 = vpop.f32.mrb[0].mxu0
        %v1750 = vadd.f32 %v725, %v1749
        %1751 = vmatprep.mubr.bf16.mxu0 %v545
        %1752 = vmatmul.mubr.bf16.gmra.mrb[0].mxu0 %v544
        %v1753 = vpop.f32.mrb[0].mxu0
        %v1754 = vadd.f32 %v721, %v1753
        %v1755 = vpop.f32.mrb[0].mxu0
        %v1756 = vadd.f32 %v725, %v1755
        %v1757 = vpop.f32.mrb[0].mxu0
        %v1758 = vadd.f32 %v721, %v1757
        %v1759 = vpop.f32.mrb[0].mxu0
        %v1760 = vadd.f32 %v725, %v1759
        %1761 = vmatprep.mubr.bf16.mxu0 %v547
        %1762 = vmatmul.mubr.bf16.gmra.mrb[0].mxu0 %v546
        %v1763 = vpop.f32.mrb[0].mxu0
        %v1764 = vadd.f32 %v721, %v1763
        %v1765 = vpop.f32.mrb[0].mxu0
        %v1766 = vadd.f32 %v725, %v1765
        %v1767 = vpop.f32.mrb[0].mxu0
        %v1768 = vadd.f32 %v721, %v1767
        %v1769 = vpop.f32.mrb[0].mxu0
        %v1770 = vadd.f32 %v725, %v1769
        %1771 = vmatprep.mubr.bf16.mxu0 %v549
        %1772 = vmatmul.mubr.bf16.gmra.mrb[0].mxu0 %v548
        %v1773 = vpop.f32.mrb[0].mxu0
        %v1774 = vadd.f32 %v721, %v1773
        %v1775 = vpop.f32.mrb[0].mxu0
        %v1776 = vadd.f32 %v725, %v1775
        %v1777 = vpop.f32.mrb[0].mxu0
        %v1778 = vadd.f32 %v721, %v1777
        %v1779 = vpop.f32.mrb[0].mxu0
        %v1780 = vadd.f32 %v725, %v1779
        %1781 = vmatprep.mubr.bf16.mxu0 %v551
        %1782 = vmatmul.mubr.bf16.gmra.mrb[0].mxu0 %v550
        %v1783 = vpop.f32.mrb[0].mxu0
        %v1784 = vadd.f32 %v721, %v1783
        %v1785 = vpop.f32.mrb[0].mxu0
        %v1786 = vadd.f32 %v725, %v1785
        %v1787 = vpop.f32.mrb[0].mxu0
        %v1788 = vadd.f32 %v721, %v1787
        %v1789 = vpop.f32.mrb[0].mxu0
        %v1790 = vadd.f32 %v725, %v1789
        %1791 = vmatprep.mubr.bf16.mxu0 %v553
        %1792 = vmatmul.mubr.bf16.gmra.mrb[0].mxu0 %v552
        %v1793 = vpop.f32.mrb[0].mxu0
        %v1794 = vadd.f32 %v721, %v1793
        %v1795 = vpop.f32.mrb[0].mxu0
        %v1796 = vadd.f32 %v725, %v1795
        %v1797 = vpop.f32.mrb[0].mxu0
        %v1798 = vadd.f32 %v721, %v1797
        %v1799 = vpop.f32.mrb[0].mxu0
        %v1800 = vadd.f32 %v725, %v1799
        %1801 = vmatprep.mubr.bf16.mxu0 %v555
        %1802 = vmatmul.mubr.bf16.gmra.mrb[0].mxu0 %v554
        %v1803 = vpop.f32.mrb[0].mxu0
        %v1804 = vadd.f32 %v721, %v1803
        %v1805 = vpop.f32.mrb[0].mxu0
        %v1806 = vadd.f32 %v725, %v1805
        %v1807 = vpop.f32.mrb[0].mxu0
        %v1808 = vadd.f32 %v721, %v1807
        %v1809 = vpop.f32.mrb[0].mxu0
        %v1810 = vadd.f32 %v725, %v1809
        %1811 = vmatprep.mubr.bf16.mxu0 %v557
        %1812 = vmatmul.mubr.bf16.gmra.mrb[0].mxu0 %v556
        %v1813 = vpop.f32.mrb[0].mxu0
        %v1814 = vadd.f32 %v721, %v1813
        %v1815 = vpop.f32.mrb[0].mxu0
        %v1816 = vadd.f32 %v725, %v1815
        %v1817 = vpop.f32.mrb[0].mxu0
        %v1818 = vadd.f32 %v721, %v1817
        %v1819 = vpop.f32.mrb[0].mxu0
        %v1820 = vadd.f32 %v725, %v1819
        %1821 = vmatprep.mubr.bf16.mxu0 %v559
        %1822 = vmatmul.mubr.bf16.gmra.mrb[0].mxu0 %v558
        %v1823 = vpop.f32.mrb[0].mxu0
        %v1824 = vadd.f32 %v721, %v1823
        %v1825 = vpop.f32.mrb[0].mxu0
        %v1826 = vadd.f32 %v725, %v1825
        %v1827 = vpop.f32.mrb[0].mxu0
        %v1828 = vadd.f32 %v721, %v1827
        %v1829 = vpop.f32.mrb[0].mxu0
        %v1830 = vadd.f32 %v725, %v1829
        %1831 = vmatprep.mubr.bf16.mxu0 %v561
        %1832 = vmatmul.mubr.bf16.gmra.mrb[0].mxu0 %v560
        %v1833 = vpop.f32.mrb[0].mxu0
        %v1834 = vadd.f32 %v721, %v1833
        %v1835 = vpop.f32.mrb[0].mxu0
        %v1836 = vadd.f32 %v725, %v1835
        %v1837 = vpop.f32.mrb[0].mxu0
        %v1838 = vadd.f32 %v721, %v1837
        %v1839 = vpop.f32.mrb[0].mxu0
        %v1840 = vadd.f32 %v725, %v1839
        %1841 = vmatprep.mubr.bf16.mxu0 %v563
        %1842 = vmatmul.mubr.bf16.gmra.mrb[0].mxu0 %v562
        %v1843 = vpop.f32.mrb[0].mxu0
        %v1844 = vadd.f32 %v721, %v1843
        %v1845 = vpop.f32.mrb[0].mxu0
        %v1846 = vadd.f32 %v725, %v1845
        %v1847 = vpop.f32.mrb[0].mxu0
        %v1848 = vadd.f32 %v721, %v1847
        %v1849 = vpop.f32.mrb[0].mxu0
        %v1850 = vadd.f32 %v725, %v1849
        %1851 = vmatprep.mubr.bf16.mxu0 %v565
        %1852 = vmatmul.mubr.bf16.gmra.mrb[0].mxu0 %v564
        %v1853 = vpop.f32.mrb[0].mxu0
        %v1854 = vadd.f32 %v721, %v1853
        %v1855 = vpop.f32.mrb[0].mxu0
        %v1856 = vadd.f32 %v725, %v1855
        %v1857 = vpop.f32.mrb[0].mxu0
        %v1858 = vadd.f32 %v721, %v1857
        %v1859 = vpop.f32.mrb[0].mxu0
        %v1860 = vadd.f32 %v725, %v1859
        %1861 = vmatprep.mubr.bf16.mxu0 %v567
        %1862 = vmatmul.mubr.bf16.gmra.mrb[0].mxu0 %v566
        %v1863 = vpop.f32.mrb[0].mxu0
        %v1864 = vadd.f32 %v721, %v1863
        %v1865 = vpop.f32.mrb[0].mxu0
        %v1866 = vadd.f32 %v725, %v1865
        %v1867 = vpop.f32.mrb[0].mxu0
        %v1868 = vadd.f32 %v721, %v1867
        %v1869 = vpop.f32.mrb[0].mxu0
        %v1870 = vadd.f32 %v725, %v1869
        %1871 = vmatprep.mubr.bf16.mxu0 %v569
        %1872 = vmatmul.mubr.bf16.gmra.mrb[0].mxu0 %v568
        %v1873 = vpop.f32.mrb[0].mxu0
        %v1874 = vadd.f32 %v721, %v1873
        %v1875 = vpop.f32.mrb[0].mxu0
        %v1876 = vadd.f32 %v725, %v1875
        %v1877 = vpop.f32.mrb[0].mxu0
        %v1878 = vadd.f32 %v721, %v1877
        %v1879 = vpop.f32.mrb[0].mxu0
        %v1880 = vadd.f32 %v725, %v1879
        %1881 = vmatprep.mubr.bf16.mxu0 %v571
        %1882 = vmatmul.mubr.bf16.gmra.mrb[0].mxu0 %v570
        %v1883 = vpop.f32.mrb[0].mxu0
        %v1884 = vadd.f32 %v721, %v1883
        %v1885 = vpop.f32.mrb[0].mxu0
        %v1886 = vadd.f32 %v725, %v1885
        %v1887 = vpop.f32.mrb[0].mxu0
        %v1888 = vadd.f32 %v721, %v1887
        %v1889 = vpop.f32.mrb[0].mxu0
        %v1890 = vadd.f32 %v725, %v1889
        %1891 = vdwg.mxu0
        %1892 = vmatprep.subr.bf16.mxu0 0
        %1893 = vmatpush1.bf16.msra.mxu0 %v1095
        %1894 = vmatprep.subr.bf16.mxu0 0
        %1895 = vmatpush1.bf16.msra.mxu0 %v1102
        %1896 = vmatprep.subr.bf16.mxu0 0
        %1897 = vmatpush1.bf16.msra.mxu0 %v1109
        %1898 = vmatprep.subr.bf16.mxu0 0
        %1899 = vmatpush1.bf16.msra.mxu0 %v1116
        %1900 = vmatprep.subr.bf16.mxu0 0
        %1901 = vmatpush1.bf16.msra.mxu0 %v1123
        %1902 = vmatprep.subr.bf16.mxu0 0
        %1903 = vmatpush1.bf16.msra.mxu0 %v1130
        %1904 = vmatprep.subr.bf16.mxu0 0
        %1905 = vmatpush1.bf16.msra.mxu0 %v1137
        %1906 = vmatprep.subr.bf16.mxu0 0
        %1907 = vmatpush1.bf16.msra.mxu0 %v1144
        %1908 = vmatprep.subr.bf16.mxu0 0
        %1909 = vmatpush1.bf16.msra.mxu0 %v1151
        %1910 = vmatprep.subr.bf16.mxu0 0
        %1911 = vmatpush1.bf16.msra.mxu0 %v1158
        %1912 = vmatprep.subr.bf16.mxu0 0
        %1913 = vmatpush1.bf16.msra.mxu0 %v1165
        %1914 = vmatprep.subr.bf16.mxu0 0
        %1915 = vmatpush1.bf16.msra.mxu0 %v1172
        %1916 = vmatprep.subr.bf16.mxu0 0
        %1917 = vmatpush1.bf16.msra.mxu0 %v1179
        %1918 = vmatprep.subr.bf16.mxu0 0
        %1919 = vmatpush1.bf16.msra.mxu0 %v1186
        %1920 = vmatprep.subr.bf16.mxu0 0
        %1921 = vmatpush1.bf16.msra.mxu0 %v1193
        %1922 = vmatprep.subr.bf16.mxu0 0
        %1923 = vmatpush1.bf16.msra.mxu0 %v1200
        %1924 = vmatprep.mubr.bf16.mxu0 %v541
        %1925 = vmatmul.mubr.bf16.gmra.mrb[0].mxu0 %v540
        %v1926 = vpop.f32.mrb[0].mxu0
        %v1927 = vadd.f32 %v729, %v1926
        %v1928 = vpop.f32.mrb[0].mxu0
        %v1929 = vpop.f32.mrb[0].mxu0
        %v1930 = vadd.f32 %v729, %v1929
        %v1931 = vpop.f32.mrb[0].mxu0
        %1932 = vmatprep.mubr.bf16.mxu0 %v543
        %1933 = vmatmul.mubr.bf16.gmra.mrb[0].mxu0 %v542
        %v1934 = vpop.f32.mrb[0].mxu0
        %v1935 = vadd.f32 %v729, %v1934
        %v1936 = vpop.f32.mrb[0].mxu0
        %v1937 = vpop.f32.mrb[0].mxu0
        %v1938 = vadd.f32 %v729, %v1937
        %v1939 = vpop.f32.mrb[0].mxu0
        %1940 = vmatprep.mubr.bf16.mxu0 %v545
        %1941 = vmatmul.mubr.bf16.gmra.mrb[0].mxu0 %v544
        %v1942 = vpop.f32.mrb[0].mxu0
        %v1943 = vadd.f32 %v729, %v1942
        %v1944 = vpop.f32.mrb[0].mxu0
        %v1945 = vpop.f32.mrb[0].mxu0
        %v1946 = vadd.f32 %v729, %v1945
        %v1947 = vpop.f32.mrb[0].mxu0
        %1948 = vmatprep.mubr.bf16.mxu0 %v547
        %1949 = vmatmul.mubr.bf16.gmra.mrb[0].mxu0 %v546
        %v1950 = vpop.f32.mrb[0].mxu0
        %v1951 = vadd.f32 %v729, %v1950
        %v1952 = vpop.f32.mrb[0].mxu0
        %v1953 = vpop.f32.mrb[0].mxu0
        %v1954 = vadd.f32 %v729, %v1953
        %v1955 = vpop.f32.mrb[0].mxu0
        %1956 = vmatprep.mubr.bf16.mxu0 %v549
        %1957 = vmatmul.mubr.bf16.gmra.mrb[0].mxu0 %v548
        %v1958 = vpop.f32.mrb[0].mxu0
        %v1959 = vadd.f32 %v729, %v1958
        %v1960 = vpop.f32.mrb[0].mxu0
        %v1961 = vpop.f32.mrb[0].mxu0
        %v1962 = vadd.f32 %v729, %v1961
        %v1963 = vpop.f32.mrb[0].mxu0
        %1964 = vmatprep.mubr.bf16.mxu0 %v551
        %1965 = vmatmul.mubr.bf16.gmra.mrb[0].mxu0 %v550
        %v1966 = vpop.f32.mrb[0].mxu0
        %v1967 = vadd.f32 %v729, %v1966
        %v1968 = vpop.f32.mrb[0].mxu0
        %v1969 = vpop.f32.mrb[0].mxu0
        %v1970 = vadd.f32 %v729, %v1969
        %v1971 = vpop.f32.mrb[0].mxu0
        %1972 = vmatprep.mubr.bf16.mxu0 %v553
        %1973 = vmatmul.mubr.bf16.gmra.mrb[0].mxu0 %v552
        %v1974 = vpop.f32.mrb[0].mxu0
        %v1975 = vadd.f32 %v729, %v1974
        %v1976 = vpop.f32.mrb[0].mxu0
        %v1977 = vpop.f32.mrb[0].mxu0
        %v1978 = vadd.f32 %v729, %v1977
        %v1979 = vpop.f32.mrb[0].mxu0
        %1980 = vmatprep.mubr.bf16.mxu0 %v555
        %1981 = vmatmul.mubr.bf16.gmra.mrb[0].mxu0 %v554
        %v1982 = vpop.f32.mrb[0].mxu0
        %v1983 = vadd.f32 %v729, %v1982
        %v1984 = vpop.f32.mrb[0].mxu0
        %v1985 = vpop.f32.mrb[0].mxu0
        %v1986 = vadd.f32 %v729, %v1985
        %v1987 = vpop.f32.mrb[0].mxu0
        %1988 = vmatprep.mubr.bf16.mxu0 %v557
        %1989 = vmatmul.mubr.bf16.gmra.mrb[0].mxu0 %v556
        %v1990 = vpop.f32.mrb[0].mxu0
        %v1991 = vadd.f32 %v729, %v1990
        %v1992 = vpop.f32.mrb[0].mxu0
        %v1993 = vpop.f32.mrb[0].mxu0
        %v1994 = vadd.f32 %v729, %v1993
        %v1995 = vpop.f32.mrb[0].mxu0
        %1996 = vmatprep.mubr.bf16.mxu0 %v559
        %1997 = vmatmul.mubr.bf16.gmra.mrb[0].mxu0 %v558
        %v1998 = vpop.f32.mrb[0].mxu0
        %v1999 = vadd.f32 %v729, %v1998
        %v2000 = vpop.f32.mrb[0].mxu0
        %v2001 = vpop.f32.mrb[0].mxu0
        %v2002 = vadd.f32 %v729, %v2001
        %v2003 = vpop.f32.mrb[0].mxu0
        %2004 = vmatprep.mubr.bf16.mxu0 %v561
        %2005 = vmatmul.mubr.bf16.gmra.mrb[0].mxu0 %v560
        %v2006 = vpop.f32.mrb[0].mxu0
        %v2007 = vadd.f32 %v729, %v2006
        %v2008 = vpop.f32.mrb[0].mxu0
        %v2009 = vpop.f32.mrb[0].mxu0
        %v2010 = vadd.f32 %v729, %v2009
        %v2011 = vpop.f32.mrb[0].mxu0
        %2012 = vmatprep.mubr.bf16.mxu0 %v563
        %2013 = vmatmul.mubr.bf16.gmra.mrb[0].mxu0 %v562
        %v2014 = vpop.f32.mrb[0].mxu0
        %v2015 = vadd.f32 %v729, %v2014
        %v2016 = vpop.f32.mrb[0].mxu0
        %v2017 = vpop.f32.mrb[0].mxu0
        %v2018 = vadd.f32 %v729, %v2017
        %v2019 = vpop.f32.mrb[0].mxu0
        %2020 = vmatprep.mubr.bf16.mxu0 %v565
        %2021 = vmatmul.mubr.bf16.gmra.mrb[0].mxu0 %v564
        %v2022 = vpop.f32.mrb[0].mxu0
        %v2023 = vadd.f32 %v729, %v2022
        %v2024 = vpop.f32.mrb[0].mxu0
        %v2025 = vpop.f32.mrb[0].mxu0
        %v2026 = vadd.f32 %v729, %v2025
        %v2027 = vpop.f32.mrb[0].mxu0
        %2028 = vmatprep.mubr.bf16.mxu0 %v567
        %2029 = vmatmul.mubr.bf16.gmra.mrb[0].mxu0 %v566
        %v2030 = vpop.f32.mrb[0].mxu0
        %v2031 = vadd.f32 %v729, %v2030
        %v2032 = vpop.f32.mrb[0].mxu0
        %v2033 = vpop.f32.mrb[0].mxu0
        %v2034 = vadd.f32 %v729, %v2033
        %v2035 = vpop.f32.mrb[0].mxu0
        %2036 = vmatprep.mubr.bf16.mxu0 %v569
        %2037 = vmatmul.mubr.bf16.gmra.mrb[0].mxu0 %v568
        %v2038 = vpop.f32.mrb[0].mxu0
        %v2039 = vadd.f32 %v729, %v2038
        %v2040 = vpop.f32.mrb[0].mxu0
        %v2041 = vpop.f32.mrb[0].mxu0
        %v2042 = vadd.f32 %v729, %v2041
        %v2043 = vpop.f32.mrb[0].mxu0
        %2044 = vmatprep.mubr.bf16.mxu0 %v571
        %2045 = vmatmul.mubr.bf16.gmra.mrb[0].mxu0 %v570
        %v2046 = vpop.f32.mrb[0].mxu0
        %v2047 = vadd.f32 %v729, %v2046
        %v2048 = vpop.f32.mrb[0].mxu0
        %v2049 = vpop.f32.mrb[0].mxu0
        %v2050 = vadd.f32 %v729, %v2049
        %v2051 = vpop.f32.mrb[0].mxu0
        %2052 = vdwg.mxu0
        %v2053 = vmul.f32 %v1734, %v1348
        %v2054 = vmul.f32 %v1736, %v1350
        %v2055 = vmul.f32 %v1738, %v1352
        %v2056 = vmul.f32 %v1740, %v1354
        %v2057 = vmul.f32 %v1744, %v1358
        %v2058 = vmul.f32 %v1746, %v1360
        %v2059 = vmul.f32 %v1748, %v1362
        %v2060 = vmul.f32 %v1750, %v1364
        %v2061 = vmul.f32 %v1754, %v1368
        %v2062 = vmul.f32 %v1756, %v1370
        %v2063 = vmul.f32 %v1758, %v1372
        %v2064 = vmul.f32 %v1760, %v1374
        %v2065 = vmul.f32 %v1764, %v1378
        %v2066 = vmul.f32 %v1766, %v1380
        %v2067 = vmul.f32 %v1768, %v1382
        %v2068 = vmul.f32 %v1770, %v1384
        %v2069 = vmul.f32 %v1774, %v1388
        %v2070 = vmul.f32 %v1776, %v1390
        %v2071 = vmul.f32 %v1778, %v1392
        %v2072 = vmul.f32 %v1780, %v1394
        %v2073 = vmul.f32 %v1784, %v1398
        %v2074 = vmul.f32 %v1786, %v1400
        %v2075 = vmul.f32 %v1788, %v1402
        %v2076 = vmul.f32 %v1790, %v1404
        %v2077 = vmul.f32 %v1794, %v1408
        %v2078 = vmul.f32 %v1796, %v1410
        %v2079 = vmul.f32 %v1798, %v1412
        %v2080 = vmul.f32 %v1800, %v1414
        %v2081 = vmul.f32 %v1804, %v1418
        %v2082 = vmul.f32 %v1806, %v1420
        %v2083 = vmul.f32 %v1808, %v1422
        %v2084 = vmul.f32 %v1810, %v1424
        %v2085 = vmul.f32 %v1814, %v1428
        %v2086 = vmul.f32 %v1816, %v1430
        %v2087 = vmul.f32 %v1818, %v1432
        %v2088 = vmul.f32 %v1820, %v1434
        %v2089 = vmul.f32 %v1824, %v1438
        %v2090 = vmul.f32 %v1826, %v1440
        %v2091 = vmul.f32 %v1828, %v1442
        %v2092 = vmul.f32 %v1830, %v1444
        %v2093 = vmul.f32 %v1834, %v1448
        %v2094 = vmul.f32 %v1836, %v1450
        %v2095 = vmul.f32 %v1838, %v1452
        %v2096 = vmul.f32 %v1840, %v1454
        %v2097 = vmul.f32 %v1844, %v1458
        %v2098 = vmul.f32 %v1846, %v1460
        %v2099 = vmul.f32 %v1848, %v1462
        %v2100 = vmul.f32 %v1850, %v1464
        %v2101 = vmul.f32 %v1854, %v1468
        %v2102 = vmul.f32 %v1856, %v1470
        %v2103 = vmul.f32 %v1858, %v1472
        %v2104 = vmul.f32 %v1860, %v1474
        %v2105 = vmul.f32 %v1864, %v1478
        %v2106 = vmul.f32 %v1866, %v1480
        %v2107 = vmul.f32 %v1868, %v1482
        %v2108 = vmul.f32 %v1870, %v1484
        %v2109 = vmul.f32 %v1874, %v1488
        %v2110 = vmul.f32 %v1876, %v1490
        %v2111 = vmul.f32 %v1878, %v1492
        %v2112 = vmul.f32 %v1880, %v1494
        %v2113 = vmul.f32 %v1884, %v1498
        %v2114 = vmul.f32 %v1886, %v1500
        %v2115 = vmul.f32 %v1888, %v1502
        %v2116 = vmul.f32 %v1890, %v1504
        %v2117 = vpack.c.bf16 %v2055, %v2053
        %v2118 = vpack.c.bf16 %v2056, %v2054
        %v2119 = vpack.c.bf16 %v2059, %v2057
        %v2120 = vpack.c.bf16 %v2060, %v2058
        %v2121 = vpack.c.bf16 %v2063, %v2061
        %v2122 = vpack.c.bf16 %v2064, %v2062
        %v2123 = vpack.c.bf16 %v2067, %v2065
        %v2124 = vpack.c.bf16 %v2068, %v2066
        %v2125 = vpack.c.bf16 %v2071, %v2069
        %v2126 = vpack.c.bf16 %v2072, %v2070
        %v2127 = vpack.c.bf16 %v2075, %v2073
        %v2128 = vpack.c.bf16 %v2076, %v2074
        %v2129 = vpack.c.bf16 %v2079, %v2077
        %v2130 = vpack.c.bf16 %v2080, %v2078
        %v2131 = vpack.c.bf16 %v2083, %v2081
        %v2132 = vpack.c.bf16 %v2084, %v2082
        %v2133 = vpack.c.bf16 %v2087, %v2085
        %v2134 = vpack.c.bf16 %v2088, %v2086
        %v2135 = vpack.c.bf16 %v2091, %v2089
        %v2136 = vpack.c.bf16 %v2092, %v2090
        %v2137 = vpack.c.bf16 %v2095, %v2093
        %v2138 = vpack.c.bf16 %v2096, %v2094
        %v2139 = vpack.c.bf16 %v2099, %v2097
        %v2140 = vpack.c.bf16 %v2100, %v2098
        %v2141 = vpack.c.bf16 %v2103, %v2101
        %v2142 = vpack.c.bf16 %v2104, %v2102
        %v2143 = vpack.c.bf16 %v2107, %v2105
        %v2144 = vpack.c.bf16 %v2108, %v2106
        %v2145 = vpack.c.bf16 %v2111, %v2109
        %v2146 = vpack.c.bf16 %v2112, %v2110
        %v2147 = vpack.c.bf16 %v2115, %v2113
        %v2148 = vpack.c.bf16 %v2116, %v2114
        %v2149 = vld [vmem:[#allocation2 + $0x1c] sm:$0xf]
        %v2150 = vld [vmem:[#allocation2 + $0x40] sm:$0xf]
        %v2151 = vld [vmem:[#allocation2 + $0x64] sm:$0xf]
        %v2152 = vld [vmem:[#allocation2 + $0x88] sm:$0xf]
        %v2153 = vld [vmem:[#allocation2 + $0xac] sm:$0xf]
        %v2154 = vld [vmem:[#allocation2 + $0xd0] sm:$0xf]
        %v2155 = vld [vmem:[#allocation2 + $0xf4] sm:$0xf]
        %v2156 = vld [vmem:[#allocation2 + $0x118] sm:$0xf]
        %v2157 = vld [vmem:[#allocation2 + $0x13c] sm:$0xf]
        %v2158 = vld [vmem:[#allocation2 + $0x160] sm:$0xf]
        %v2159 = vld [vmem:[#allocation2 + $0x184] sm:$0xf]
        %v2160 = vld [vmem:[#allocation2 + $0x1a8] sm:$0xf]
        %v2161 = vld [vmem:[#allocation2 + $0x1cc] sm:$0xf]
        %v2162 = vld [vmem:[#allocation2 + $0x1f0] sm:$0xf]
        %v2163 = vld [vmem:[#allocation2 + $0x214] sm:$0xf]
        %v2164 = vld [vmem:[#allocation2 + $0x238] sm:$0xf]
        %v2165 = vld [vmem:[#allocation2 + $0x25c] sm:$0xf]
        %v2166 = vld [vmem:[#allocation2 + $0x280] sm:$0xf]
        %v2167 = vld [vmem:[#allocation2 + $0x2a4] sm:$0xf]
        %v2168 = vld [vmem:[#allocation2 + $0x2c8] sm:$0xf]
        %v2169 = vld [vmem:[#allocation2 + $0x2ec] sm:$0xf]
        %v2170 = vld [vmem:[#allocation2 + $0x310] sm:$0xf]
        %v2171 = vld [vmem:[#allocation2 + $0x334] sm:$0xf]
        %v2172 = vld [vmem:[#allocation2 + $0x358] sm:$0xf]
        %v2173 = vld [vmem:[#allocation2 + $0x37c] sm:$0xf]
        %v2174 = vld [vmem:[#allocation2 + $0x3a0] sm:$0xf]
        %v2175 = vld [vmem:[#allocation2 + $0x3c4] sm:$0xf]
        %v2176 = vld [vmem:[#allocation2 + $0x3e8] sm:$0xf]
        %v2177 = vld [vmem:[#allocation2 + $0x40c] sm:$0xf]
        %v2178 = vld [vmem:[#allocation2 + $0x430] sm:$0xf]
        %v2179 = vld [vmem:[#allocation2 + $0x454] sm:$0xf]
        %v2180 = vld [vmem:[#allocation2 + $0x478] sm:$0xf]
        %v2213 = vunpack.c.l.b16 %v2149
        %v2214 = vunpack.c.l.b16 %v2150
        %v2215 = vunpack.c.l.b16 %v2151
        %v2216 = vunpack.c.l.b16 %v2152
        %v2217 = vunpack.c.l.b16 %v2153
        %v2218 = vunpack.c.l.b16 %v2154
        %v2219 = vunpack.c.l.b16 %v2155
        %v2220 = vunpack.c.l.b16 %v2156
        %v2221 = vunpack.c.l.b16 %v2157
        %v2222 = vunpack.c.l.b16 %v2158
        %v2223 = vunpack.c.l.b16 %v2159
        %v2224 = vunpack.c.l.b16 %v2160
        %v2225 = vunpack.c.l.b16 %v2161
        %v2226 = vunpack.c.l.b16 %v2162
        %v2227 = vunpack.c.l.b16 %v2163
        %v2228 = vunpack.c.l.b16 %v2164
        %v2229 = vunpack.c.l.b16 %v2165
        %v2230 = vunpack.c.l.b16 %v2166
        %v2231 = vunpack.c.l.b16 %v2167
        %v2232 = vunpack.c.l.b16 %v2168
        %v2233 = vunpack.c.l.b16 %v2169
        %v2234 = vunpack.c.l.b16 %v2170
        %v2235 = vunpack.c.l.b16 %v2171
        %v2236 = vunpack.c.l.b16 %v2172
        %v2237 = vunpack.c.l.b16 %v2173
        %v2238 = vunpack.c.l.b16 %v2174
        %v2239 = vunpack.c.l.b16 %v2175
        %v2240 = vunpack.c.l.b16 %v2176
        %v2241 = vunpack.c.l.b16 %v2177
        %v2242 = vunpack.c.l.b16 %v2178
        %v2243 = vunpack.c.l.b16 %v2179
        %v2244 = vunpack.c.l.b16 %v2180
        %v2245 = vpack.c.b16 %v2214, %v2213
        %v2246 = vpack.c.b16 %v2216, %v2215
        %v2247 = vpack.c.b16 %v2218, %v2217
        %v2248 = vpack.c.b16 %v2220, %v2219
        %v2249 = vpack.c.b16 %v2222, %v2221
        %v2250 = vpack.c.b16 %v2224, %v2223
        %v2251 = vpack.c.b16 %v2226, %v2225
        %v2252 = vpack.c.b16 %v2228, %v2227
        %v2253 = vpack.c.b16 %v2230, %v2229
        %v2254 = vpack.c.b16 %v2232, %v2231
        %v2255 = vpack.c.b16 %v2234, %v2233
        %v2256 = vpack.c.b16 %v2236, %v2235
        %v2257 = vpack.c.b16 %v2238, %v2237
        %v2258 = vpack.c.b16 %v2240, %v2239
        %v2259 = vpack.c.b16 %v2242, %v2241
        %v2260 = vpack.c.b16 %v2244, %v2243
        %2277 = vmatprep.subr.bf16.mxu0 0
        %2278 = vmatpush1.bf16.msra.mxu0 %v2245
        %2279 = vmatprep.subr.bf16.mxu0 0
        %2280 = vmatpush1.bf16.msra.mxu0 %v2246
        %2281 = vmatprep.subr.bf16.mxu0 0
        %2282 = vmatpush1.bf16.msra.mxu0 %v2247
        %2283 = vmatprep.subr.bf16.mxu0 0
        %2284 = vmatpush1.bf16.msra.mxu0 %v2248
        %2285 = vmatprep.subr.bf16.mxu0 0
        %2286 = vmatpush1.bf16.msra.mxu0 %v2249
        %2287 = vmatprep.subr.bf16.mxu0 0
        %2288 = vmatpush1.bf16.msra.mxu0 %v2250
        %2289 = vmatprep.subr.bf16.mxu0 0
        %2290 = vmatpush1.bf16.msra.mxu0 %v2251
        %2291 = vmatprep.subr.bf16.mxu0 0
        %2292 = vmatpush1.bf16.msra.mxu0 %v2252
        %2293 = vmatprep.subr.bf16.mxu0 0
        %2294 = vmatpush1.bf16.msra.mxu0 %v2253
        %2295 = vmatprep.subr.bf16.mxu0 0
        %2296 = vmatpush1.bf16.msra.mxu0 %v2254
        %2297 = vmatprep.subr.bf16.mxu0 0
        %2298 = vmatpush1.bf16.msra.mxu0 %v2255
        %2299 = vmatprep.subr.bf16.mxu0 0
        %2300 = vmatpush1.bf16.msra.mxu0 %v2256
        %2301 = vmatprep.subr.bf16.mxu0 0
        %2302 = vmatpush1.bf16.msra.mxu0 %v2257
        %2303 = vmatprep.subr.bf16.mxu0 0
        %2304 = vmatpush1.bf16.msra.mxu0 %v2258
        %2305 = vmatprep.subr.bf16.mxu0 0
        %2306 = vmatpush1.bf16.msra.mxu0 %v2259
        %2307 = vmatprep.subr.bf16.mxu0 0
        %2308 = vmatpush1.bf16.msra.mxu0 %v2260
        %2309 = vmatprep.mubr.bf16.mxu0 %v2118
        %2310 = vmatmul.mubr.bf16.gmra.mrb[0].mxu0 %v2117
        %v2311 = vpop.f32.mrb[0].mxu0
        %v2312 = vadd.f32 0.0, %v2311
        %v2313 = vpop.f32.mrb[0].mxu0
        %v2314 = vpop.f32.mrb[0].mxu0
        %v2315 = vadd.f32 0.0, %v2314
        %v2316 = vpop.f32.mrb[0].mxu0
        %2317 = vmatprep.mubr.bf16.mxu0 %v2120
        %2318 = vmatmul.mubr.bf16.gmra.mrb[0].mxu0 %v2119
        %v2319 = vpop.f32.mrb[0].mxu0
        %v2320 = vadd.f32 0.0, %v2319
        %v2321 = vpop.f32.mrb[0].mxu0
        %v2322 = vpop.f32.mrb[0].mxu0
        %v2323 = vadd.f32 0.0, %v2322
        %v2324 = vpop.f32.mrb[0].mxu0
        %2325 = vmatprep.mubr.bf16.mxu0 %v2122
        %2326 = vmatmul.mubr.bf16.gmra.mrb[0].mxu0 %v2121
        %v2327 = vpop.f32.mrb[0].mxu0
        %v2328 = vadd.f32 0.0, %v2327
        %v2329 = vpop.f32.mrb[0].mxu0
        %v2330 = vpop.f32.mrb[0].mxu0
        %v2331 = vadd.f32 0.0, %v2330
        %v2332 = vpop.f32.mrb[0].mxu0
        %2333 = vmatprep.mubr.bf16.mxu0 %v2124
        %2334 = vmatmul.mubr.bf16.gmra.mrb[0].mxu0 %v2123
        %v2335 = vpop.f32.mrb[0].mxu0
        %v2336 = vadd.f32 0.0, %v2335
        %v2337 = vpop.f32.mrb[0].mxu0
        %v2338 = vpop.f32.mrb[0].mxu0
        %v2339 = vadd.f32 0.0, %v2338
        %v2340 = vpop.f32.mrb[0].mxu0
        %2341 = vmatprep.mubr.bf16.mxu0 %v2126
        %2342 = vmatmul.mubr.bf16.gmra.mrb[0].mxu0 %v2125
        %v2343 = vpop.f32.mrb[0].mxu0
        %v2344 = vadd.f32 0.0, %v2343
        %v2345 = vpop.f32.mrb[0].mxu0
        %v2346 = vpop.f32.mrb[0].mxu0
        %v2347 = vadd.f32 0.0, %v2346
        %v2348 = vpop.f32.mrb[0].mxu0
        %2349 = vmatprep.mubr.bf16.mxu0 %v2128
        %2350 = vmatmul.mubr.bf16.gmra.mrb[0].mxu0 %v2127
        %v2351 = vpop.f32.mrb[0].mxu0
        %v2352 = vadd.f32 0.0, %v2351
        %v2353 = vpop.f32.mrb[0].mxu0
        %v2354 = vpop.f32.mrb[0].mxu0
        %v2355 = vadd.f32 0.0, %v2354
        %v2356 = vpop.f32.mrb[0].mxu0
        %2357 = vmatprep.mubr.bf16.mxu0 %v2130
        %2358 = vmatmul.mubr.bf16.gmra.mrb[0].mxu0 %v2129
        %v2359 = vpop.f32.mrb[0].mxu0
        %v2360 = vadd.f32 0.0, %v2359
        %v2361 = vpop.f32.mrb[0].mxu0
        %v2362 = vpop.f32.mrb[0].mxu0
        %v2363 = vadd.f32 0.0, %v2362
        %v2364 = vpop.f32.mrb[0].mxu0
        %2365 = vmatprep.mubr.bf16.mxu0 %v2132
        %2366 = vmatmul.mubr.bf16.gmra.mrb[0].mxu0 %v2131
        %v2367 = vpop.f32.mrb[0].mxu0
        %v2368 = vadd.f32 0.0, %v2367
        %v2369 = vpop.f32.mrb[0].mxu0
        %v2370 = vpop.f32.mrb[0].mxu0
        %v2371 = vadd.f32 0.0, %v2370
        %v2372 = vpop.f32.mrb[0].mxu0
        %2373 = vmatprep.mubr.bf16.mxu0 %v2134
        %2374 = vmatmul.mubr.bf16.gmra.mrb[0].mxu0 %v2133
        %v2375 = vpop.f32.mrb[0].mxu0
        %v2376 = vadd.f32 0.0, %v2375
        %v2377 = vpop.f32.mrb[0].mxu0
        %v2378 = vpop.f32.mrb[0].mxu0
        %v2379 = vadd.f32 0.0, %v2378
        %v2380 = vpop.f32.mrb[0].mxu0
        %2381 = vmatprep.mubr.bf16.mxu0 %v2136
        %2382 = vmatmul.mubr.bf16.gmra.mrb[0].mxu0 %v2135
        %v2383 = vpop.f32.mrb[0].mxu0
        %v2384 = vadd.f32 0.0, %v2383
        %v2385 = vpop.f32.mrb[0].mxu0
        %v2386 = vpop.f32.mrb[0].mxu0
        %v2387 = vadd.f32 0.0, %v2386
        %v2388 = vpop.f32.mrb[0].mxu0
        %2389 = vmatprep.mubr.bf16.mxu0 %v2138
        %2390 = vmatmul.mubr.bf16.gmra.mrb[0].mxu0 %v2137
        %v2391 = vpop.f32.mrb[0].mxu0
        %v2392 = vadd.f32 0.0, %v2391
        %v2393 = vpop.f32.mrb[0].mxu0
        %v2394 = vpop.f32.mrb[0].mxu0
        %v2395 = vadd.f32 0.0, %v2394
        %v2396 = vpop.f32.mrb[0].mxu0
        %2397 = vmatprep.mubr.bf16.mxu0 %v2140
        %2398 = vmatmul.mubr.bf16.gmra.mrb[0].mxu0 %v2139
        %v2399 = vpop.f32.mrb[0].mxu0
        %v2400 = vadd.f32 0.0, %v2399
        %v2401 = vpop.f32.mrb[0].mxu0
        %v2402 = vpop.f32.mrb[0].mxu0
        %v2403 = vadd.f32 0.0, %v2402
        %v2404 = vpop.f32.mrb[0].mxu0
        %2405 = vmatprep.mubr.bf16.mxu0 %v2142
        %2406 = vmatmul.mubr.bf16.gmra.mrb[0].mxu0 %v2141
        %v2407 = vpop.f32.mrb[0].mxu0
        %v2408 = vadd.f32 0.0, %v2407
        %v2409 = vpop.f32.mrb[0].mxu0
        %v2410 = vpop.f32.mrb[0].mxu0
        %v2411 = vadd.f32 0.0, %v2410
        %v2412 = vpop.f32.mrb[0].mxu0
        %2413 = vmatprep.mubr.bf16.mxu0 %v2144
        %2414 = vmatmul.mubr.bf16.gmra.mrb[0].mxu0 %v2143
        %v2415 = vpop.f32.mrb[0].mxu0
        %v2416 = vadd.f32 0.0, %v2415
        %v2417 = vpop.f32.mrb[0].mxu0
        %v2418 = vpop.f32.mrb[0].mxu0
        %v2419 = vadd.f32 0.0, %v2418
        %v2420 = vpop.f32.mrb[0].mxu0
        %2421 = vmatprep.mubr.bf16.mxu0 %v2146
        %2422 = vmatmul.mubr.bf16.gmra.mrb[0].mxu0 %v2145
        %v2423 = vpop.f32.mrb[0].mxu0
        %v2424 = vadd.f32 0.0, %v2423
        %v2425 = vpop.f32.mrb[0].mxu0
        %v2426 = vpop.f32.mrb[0].mxu0
        %v2427 = vadd.f32 0.0, %v2426
        %v2428 = vpop.f32.mrb[0].mxu0
        %2429 = vmatprep.mubr.bf16.mxu0 %v2148
        %2430 = vmatmul.mubr.bf16.gmra.mrb[0].mxu0 %v2147
        %v2431 = vpop.f32.mrb[0].mxu0
        %v2432 = vadd.f32 0.0, %v2431
        %v2433 = vpop.f32.mrb[0].mxu0
        %v2434 = vpop.f32.mrb[0].mxu0
        %v2435 = vadd.f32 0.0, %v2434
        %v2436 = vpop.f32.mrb[0].mxu0
        %2437 = vdwg.mxu0
        %v2438 = vsel %vm298, %v2312, -inf
        %2439 = vmax.xlane.f32.xlu0 %v2438
        %v2440 = vpop.xlane.xlu0 %2439
        %v2441 = vsel %vm298, %v2315, -inf
        %2442 = vmax.xlane.f32.xlu0 %v2441
        %v2443 = vpop.xlane.xlu0 %2442
        %v2444 = vsel %vm298, %v2320, -inf
        %2445 = vmax.xlane.f32.xlu0 %v2444
        %v2446 = vpop.xlane.xlu0 %2445
        %v2447 = vsel %vm298, %v2323, -inf
        %2448 = vmax.xlane.f32.xlu0 %v2447
        %v2449 = vpop.xlane.xlu0 %2448
        %v2450 = vsel %vm298, %v2328, -inf
        %2451 = vmax.xlane.f32.xlu0 %v2450
        %v2452 = vpop.xlane.xlu0 %2451
        %v2453 = vsel %vm298, %v2331, -inf
        %2454 = vmax.xlane.f32.xlu0 %v2453
        %v2455 = vpop.xlane.xlu0 %2454
        %v2456 = vsel %vm298, %v2336, -inf
        %2457 = vmax.xlane.f32.xlu0 %v2456
        %v2458 = vpop.xlane.xlu0 %2457
        %v2459 = vsel %vm298, %v2339, -inf
        %2460 = vmax.xlane.f32.xlu0 %v2459
        %v2461 = vpop.xlane.xlu0 %2460
        %v2462 = vsel %vm298, %v2344, -inf
        %2463 = vmax.xlane.f32.xlu0 %v2462
        %v2464 = vpop.xlane.xlu0 %2463
        %v2465 = vsel %vm298, %v2347, -inf
        %2466 = vmax.xlane.f32.xlu0 %v2465
        %v2467 = vpop.xlane.xlu0 %2466
        %v2468 = vsel %vm298, %v2352, -inf
        %2469 = vmax.xlane.f32.xlu0 %v2468
        %v2470 = vpop.xlane.xlu0 %2469
        %v2471 = vsel %vm298, %v2355, -inf
        %2472 = vmax.xlane.f32.xlu0 %v2471
        %v2473 = vpop.xlane.xlu0 %2472
        %v2474 = vsel %vm298, %v2360, -inf
        %2475 = vmax.xlane.f32.xlu0 %v2474
        %v2476 = vpop.xlane.xlu0 %2475
        %v2477 = vsel %vm298, %v2363, -inf
        %2478 = vmax.xlane.f32.xlu0 %v2477
        %v2479 = vpop.xlane.xlu0 %2478
        %v2480 = vsel %vm298, %v2368, -inf
        %2481 = vmax.xlane.f32.xlu0 %v2480
        %v2482 = vpop.xlane.xlu0 %2481
        %v2483 = vsel %vm298, %v2371, -inf
        %2484 = vmax.xlane.f32.xlu0 %v2483
        %v2485 = vpop.xlane.xlu0 %2484
        %v2486 = vsel %vm298, %v2376, -inf
        %2487 = vmax.xlane.f32.xlu0 %v2486
        %v2488 = vpop.xlane.xlu0 %2487
        %v2489 = vsel %vm298, %v2379, -inf
        %2490 = vmax.xlane.f32.xlu0 %v2489
        %v2491 = vpop.xlane.xlu0 %2490
        %v2492 = vsel %vm298, %v2384, -inf
        %2493 = vmax.xlane.f32.xlu0 %v2492
        %v2494 = vpop.xlane.xlu0 %2493
        %v2495 = vsel %vm298, %v2387, -inf
        %2496 = vmax.xlane.f32.xlu0 %v2495
        %v2497 = vpop.xlane.xlu0 %2496
        %v2498 = vsel %vm298, %v2392, -inf
        %2499 = vmax.xlane.f32.xlu0 %v2498
        %v2500 = vpop.xlane.xlu0 %2499
        %v2501 = vsel %vm298, %v2395, -inf
        %2502 = vmax.xlane.f32.xlu0 %v2501
        %v2503 = vpop.xlane.xlu0 %2502
        %v2504 = vsel %vm298, %v2400, -inf
        %2505 = vmax.xlane.f32.xlu0 %v2504
        %v2506 = vpop.xlane.xlu0 %2505
        %v2507 = vsel %vm298, %v2403, -inf
        %2508 = vmax.xlane.f32.xlu0 %v2507
        %v2509 = vpop.xlane.xlu0 %2508
        %v2510 = vsel %vm298, %v2408, -inf
        %2511 = vmax.xlane.f32.xlu0 %v2510
        %v2512 = vpop.xlane.xlu0 %2511
        %v2513 = vsel %vm298, %v2411, -inf
        %2514 = vmax.xlane.f32.xlu0 %v2513
        %v2515 = vpop.xlane.xlu0 %2514
        %v2516 = vsel %vm298, %v2416, -inf
        %2517 = vmax.xlane.f32.xlu0 %v2516
        %v2518 = vpop.xlane.xlu0 %2517
        %v2519 = vsel %vm298, %v2419, -inf
        %2520 = vmax.xlane.f32.xlu0 %v2519
        %v2521 = vpop.xlane.xlu0 %2520
        %v2522 = vsel %vm298, %v2424, -inf
        %2523 = vmax.xlane.f32.xlu0 %v2522
        %v2524 = vpop.xlane.xlu0 %2523
        %v2525 = vsel %vm298, %v2427, -inf
        %2526 = vmax.xlane.f32.xlu0 %v2525
        %v2527 = vpop.xlane.xlu0 %2526
        %v2528 = vsel %vm298, %v2432, -inf
        %2529 = vmax.xlane.f32.xlu0 %v2528
        %v2530 = vpop.xlane.xlu0 %2529
        %v2531 = vsel %vm298, %v2435, -inf
        %2532 = vmax.xlane.f32.xlu0 %v2531
        %v2533 = vpop.xlane.xlu0 %2532
        %v2534 = vsub.f32 %v2312, %v2440
        %v2535 = vsub.f32 %v2315, %v2443
        %v2536 = vsub.f32 %v2320, %v2446
        %v2537 = vsub.f32 %v2323, %v2449
        %v2538 = vsub.f32 %v2328, %v2452
        %v2539 = vsub.f32 %v2331, %v2455
        %v2540 = vsub.f32 %v2336, %v2458
        %v2541 = vsub.f32 %v2339, %v2461
        %v2542 = vsub.f32 %v2344, %v2464
        %v2543 = vsub.f32 %v2347, %v2467
        %v2544 = vsub.f32 %v2352, %v2470
        %v2545 = vsub.f32 %v2355, %v2473
        %v2546 = vsub.f32 %v2360, %v2476
        %v2547 = vsub.f32 %v2363, %v2479
        %v2548 = vsub.f32 %v2368, %v2482
        %v2549 = vsub.f32 %v2371, %v2485
        %v2550 = vsub.f32 %v2376, %v2488
        %v2551 = vsub.f32 %v2379, %v2491
        %v2552 = vsub.f32 %v2384, %v2494
        %v2553 = vsub.f32 %v2387, %v2497
        %v2554 = vsub.f32 %v2392, %v2500
        %v2555 = vsub.f32 %v2395, %v2503
        %v2556 = vsub.f32 %v2400, %v2506
        %v2557 = vsub.f32 %v2403, %v2509
        %v2558 = vsub.f32 %v2408, %v2512
        %v2559 = vsub.f32 %v2411, %v2515
        %v2560 = vsub.f32 %v2416, %v2518
        %v2561 = vsub.f32 %v2419, %v2521
        %v2562 = vsub.f32 %v2424, %v2524
        %v2563 = vsub.f32 %v2427, %v2527
        %v2564 = vsub.f32 %v2432, %v2530
        %v2565 = vsub.f32 %v2435, %v2533
        %v2566 = vmul.f32 %v2534, 1.442695
        %v2567 = vpow.pop %v2566
        %v2568 = vmul.f32 %v2535, 1.442695
        %v2569 = vpow.pop %v2568
        %v2570 = vmul.f32 %v2536, 1.442695
        %v2571 = vpow.pop %v2570
        %v2572 = vmul.f32 %v2537, 1.442695
        %v2573 = vpow.pop %v2572
        %v2574 = vmul.f32 %v2538, 1.442695
        %v2575 = vpow.pop %v2574
        %v2576 = vmul.f32 %v2539, 1.442695
        %v2577 = vpow.pop %v2576
        %v2578 = vmul.f32 %v2540, 1.442695
        %v2579 = vpow.pop %v2578
        %v2580 = vmul.f32 %v2541, 1.442695
        %v2581 = vpow.pop %v2580
        %v2582 = vmul.f32 %v2542, 1.442695
        %v2583 = vpow.pop %v2582
        %v2584 = vmul.f32 %v2543, 1.442695
        %v2585 = vpow.pop %v2584
        %v2586 = vmul.f32 %v2544, 1.442695
        %v2587 = vpow.pop %v2586
        %v2588 = vmul.f32 %v2545, 1.442695
        %v2589 = vpow.pop %v2588
        %v2590 = vmul.f32 %v2546, 1.442695
        %v2591 = vpow.pop %v2590
        %v2592 = vmul.f32 %v2547, 1.442695
        %v2593 = vpow.pop %v2592
        %v2594 = vmul.f32 %v2548, 1.442695
        %v2595 = vpow.pop %v2594
        %v2596 = vmul.f32 %v2549, 1.442695
        %v2597 = vpow.pop %v2596
        %v2598 = vmul.f32 %v2550, 1.442695
        %v2599 = vpow.pop %v2598
        %v2600 = vmul.f32 %v2551, 1.442695
        %v2601 = vpow.pop %v2600
        %v2602 = vmul.f32 %v2552, 1.442695
        %v2603 = vpow.pop %v2602
        %v2604 = vmul.f32 %v2553, 1.442695
        %v2605 = vpow.pop %v2604
        %v2606 = vmul.f32 %v2554, 1.442695
        %v2607 = vpow.pop %v2606
        %v2608 = vmul.f32 %v2555, 1.442695
        %v2609 = vpow.pop %v2608
        %v2610 = vmul.f32 %v2556, 1.442695
        %v2611 = vpow.pop %v2610
        %v2612 = vmul.f32 %v2557, 1.442695
        %v2613 = vpow.pop %v2612
        %v2614 = vmul.f32 %v2558, 1.442695
        %v2615 = vpow.pop %v2614
        %v2616 = vmul.f32 %v2559, 1.442695
        %v2617 = vpow.pop %v2616
        %v2618 = vmul.f32 %v2560, 1.442695
        %v2619 = vpow.pop %v2618
        %v2620 = vmul.f32 %v2561, 1.442695
        %v2621 = vpow.pop %v2620
        %v2622 = vmul.f32 %v2562, 1.442695
        %v2623 = vpow.pop %v2622
        %v2624 = vmul.f32 %v2563, 1.442695
        %v2625 = vpow.pop %v2624
        %v2626 = vmul.f32 %v2564, 1.442695
        %v2627 = vpow.pop %v2626
        %v2628 = vmul.f32 %v2565, 1.442695
        %v2629 = vpow.pop %v2628
        %v2630 = vpack.c.bf16 %v2569, %v2567
        %v2631 = vpack.c.bf16 %v2573, %v2571
        %v2632 = vpack.c.bf16 %v2577, %v2575
        %v2633 = vpack.c.bf16 %v2581, %v2579
        %v2634 = vpack.c.bf16 %v2585, %v2583
        %v2635 = vpack.c.bf16 %v2589, %v2587
        %v2636 = vpack.c.bf16 %v2593, %v2591
        %v2637 = vpack.c.bf16 %v2597, %v2595
        %v2638 = vpack.c.bf16 %v2601, %v2599
        %v2639 = vpack.c.bf16 %v2605, %v2603
        %v2640 = vpack.c.bf16 %v2609, %v2607
        %v2641 = vpack.c.bf16 %v2613, %v2611
        %v2642 = vpack.c.bf16 %v2617, %v2615
        %v2643 = vpack.c.bf16 %v2621, %v2619
        %v2644 = vpack.c.bf16 %v2625, %v2623
        %v2645 = vpack.c.bf16 %v2629, %v2627
        %v2646 = vld [vmem:[%s1 + $0x8] sm:$0xf]
        %v2647 = vld [vmem:[%s1 + $0x24] sm:$0xf]
        %v2648 = vld [vmem:[%s1 + $0x40] sm:$0xf]
        %v2649 = vld [vmem:[%s1 + $0x5c] sm:$0xf]
        %v2654 = vunpack.c.l.b16 %v2646
        %v2655 = vunpack.c.l.b16 %v2647
        %v2656 = vunpack.c.l.b16 %v2648
        %v2657 = vunpack.c.l.b16 %v2649
        %v2658 = vpack.c.b16 %v2655, %v2654
        %v2659 = vpack.c.b16 %v2657, %v2656
        %v2663 = vsel %vm298, %v2630, 0
        %v2666 = vsel %vm298, %v2631, 0
        %v2669 = vsel %vm298, %v2632, 0
        %v2672 = vsel %vm298, %v2633, 0
        %v2675 = vsel %vm298, %v2634, 0
        %v2678 = vsel %vm298, %v2635, 0
        %v2681 = vsel %vm298, %v2636, 0
        %v2684 = vsel %vm298, %v2637, 0
        %v2687 = vsel %vm298, %v2638, 0
        %v2690 = vsel %vm298, %v2639, 0
        %v2693 = vsel %vm298, %v2640, 0
        %v2696 = vsel %vm298, %v2641, 0
        %v2699 = vsel %vm298, %v2642, 0
        %v2702 = vsel %vm298, %v2643, 0
        %v2705 = vsel %vm298, %v2644, 0
        %v2708 = vsel %vm298, %v2645, 0
        %2710 = vmatprep.subr.bf16.mxu0 0
        %2711 = vmatpush1.bf16.msra.mxu0 %v2658
        %2712 = vmatprep.subr.bf16.mxu0 0
        %2713 = vmatpush1.bf16.msra.mxu0 %v2659
        %2714 = vmatprep.subr.bf16.mxu0 0
        %2715 = vmatpush1.bf16.msra.mxu0 0
        %2716 = vmatprep.subr.bf16.mxu0 0
        %2717 = vmatpush1.bf16.msra.mxu0 0
        %2718 = vmatprep.subr.bf16.mxu0 0
        %2719 = vmatpush1.bf16.msra.mxu0 0
        %2720 = vmatprep.subr.bf16.mxu0 0
        %2721 = vmatpush1.bf16.msra.mxu0 0
        %2722 = vmatprep.subr.bf16.mxu0 0
        %2723 = vmatpush1.bf16.msra.mxu0 0
        %2724 = vmatprep.subr.bf16.mxu0 0
        %2725 = vmatpush1.bf16.msra.mxu0 0
        %2726 = vmatprep.subr.bf16.mxu0 0
        %2727 = vmatpush1.bf16.msra.mxu0 0
        %2728 = vmatprep.subr.bf16.mxu0 0
        %2729 = vmatpush1.bf16.msra.mxu0 0
        %2730 = vmatprep.subr.bf16.mxu0 0
        %2731 = vmatpush1.bf16.msra.mxu0 0
        %2732 = vmatprep.subr.bf16.mxu0 0
        %2733 = vmatpush1.bf16.msra.mxu0 0
        %2734 = vmatprep.subr.bf16.mxu0 0
        %2735 = vmatpush1.bf16.msra.mxu0 0
        %2736 = vmatprep.subr.bf16.mxu0 0
        %2737 = vmatpush1.bf16.msra.mxu0 0
        %2738 = vmatprep.subr.bf16.mxu0 0
        %2739 = vmatpush1.bf16.msra.mxu0 0
        %2740 = vmatprep.subr.bf16.mxu0 0
        %2741 = vmatpush1.bf16.msra.mxu0 0
        %2742 = vmatprep.mubr.bf16.mxu0 0
        %2743 = vmatmul.mubr.bf16.gmra.mrb[0].mxu0 %v2663
        %v2744 = vpop.f32.mrb[0].mxu0
        %v2745 = vadd.f32 0.0, %v2744
        %v2746 = vpop.f32.mrb[0].mxu0
        %v2747 = vpop.f32.mrb[0].mxu0
        %v2748 = vadd.f32 0.0, %v2747
        %v2749 = vpop.f32.mrb[0].mxu0
        %2750 = vmatprep.mubr.bf16.mxu0 0
        %2751 = vmatmul.mubr.bf16.gmra.mrb[0].mxu0 %v2666
        %v2752 = vpop.f32.mrb[0].mxu0
        %v2753 = vadd.f32 0.0, %v2752
        %v2754 = vpop.f32.mrb[0].mxu0
        %v2755 = vpop.f32.mrb[0].mxu0
        %v2756 = vadd.f32 0.0, %v2755
        %v2757 = vpop.f32.mrb[0].mxu0
        %2758 = vmatprep.mubr.bf16.mxu0 0
        %2759 = vmatmul.mubr.bf16.gmra.mrb[0].mxu0 %v2669
        %v2760 = vpop.f32.mrb[0].mxu0
        %v2761 = vadd.f32 0.0, %v2760
        %v2762 = vpop.f32.mrb[0].mxu0
        %v2763 = vpop.f32.mrb[0].mxu0
        %v2764 = vadd.f32 0.0, %v2763
        %v2765 = vpop.f32.mrb[0].mxu0
        %2766 = vmatprep.mubr.bf16.mxu0 0
        %2767 = vmatmul.mubr.bf16.gmra.mrb[0].mxu0 %v2672
        %v2768 = vpop.f32.mrb[0].mxu0
        %v2769 = vadd.f32 0.0, %v2768
        %v2770 = vpop.f32.mrb[0].mxu0
        %v2771 = vpop.f32.mrb[0].mxu0
        %v2772 = vadd.f32 0.0, %v2771
        %v2773 = vpop.f32.mrb[0].mxu0
        %2774 = vmatprep.mubr.bf16.mxu0 0
        %2775 = vmatmul.mubr.bf16.gmra.mrb[0].mxu0 %v2675
        %v2776 = vpop.f32.mrb[0].mxu0
        %v2777 = vadd.f32 0.0, %v2776
        %v2778 = vpop.f32.mrb[0].mxu0
        %v2779 = vpop.f32.mrb[0].mxu0
        %v2780 = vadd.f32 0.0, %v2779
        %v2781 = vpop.f32.mrb[0].mxu0
        %2782 = vmatprep.mubr.bf16.mxu0 0
        %2783 = vmatmul.mubr.bf16.gmra.mrb[0].mxu0 %v2678
        %v2784 = vpop.f32.mrb[0].mxu0
        %v2785 = vadd.f32 0.0, %v2784
        %v2786 = vpop.f32.mrb[0].mxu0
        %v2787 = vpop.f32.mrb[0].mxu0
        %v2788 = vadd.f32 0.0, %v2787
        %v2789 = vpop.f32.mrb[0].mxu0
        %2790 = vmatprep.mubr.bf16.mxu0 0
        %2791 = vmatmul.mubr.bf16.gmra.mrb[0].mxu0 %v2681
        %v2792 = vpop.f32.mrb[0].mxu0
        %v2793 = vadd.f32 0.0, %v2792
        %v2794 = vpop.f32.mrb[0].mxu0
        %v2795 = vpop.f32.mrb[0].mxu0
        %v2796 = vadd.f32 0.0, %v2795
        %v2797 = vpop.f32.mrb[0].mxu0
        %2798 = vmatprep.mubr.bf16.mxu0 0
        %2799 = vmatmul.mubr.bf16.gmra.mrb[0].mxu0 %v2684
        %v2800 = vpop.f32.mrb[0].mxu0
        %v2801 = vadd.f32 0.0, %v2800
        %v2802 = vpop.f32.mrb[0].mxu0
        %v2803 = vpop.f32.mrb[0].mxu0
        %v2804 = vadd.f32 0.0, %v2803
        %v2805 = vpop.f32.mrb[0].mxu0
        %2806 = vmatprep.mubr.bf16.mxu0 0
        %2807 = vmatmul.mubr.bf16.gmra.mrb[0].mxu0 %v2687
        %v2808 = vpop.f32.mrb[0].mxu0
        %v2809 = vadd.f32 0.0, %v2808
        %v2810 = vpop.f32.mrb[0].mxu0
        %v2811 = vpop.f32.mrb[0].mxu0
        %v2812 = vadd.f32 0.0, %v2811
        %v2813 = vpop.f32.mrb[0].mxu0
        %2814 = vmatprep.mubr.bf16.mxu0 0
        %2815 = vmatmul.mubr.bf16.gmra.mrb[0].mxu0 %v2690
        %v2816 = vpop.f32.mrb[0].mxu0
        %v2817 = vadd.f32 0.0, %v2816
        %v2818 = vpop.f32.mrb[0].mxu0
        %v2819 = vpop.f32.mrb[0].mxu0
        %v2820 = vadd.f32 0.0, %v2819
        %v2821 = vpop.f32.mrb[0].mxu0
        %2822 = vmatprep.mubr.bf16.mxu0 0
        %2823 = vmatmul.mubr.bf16.gmra.mrb[0].mxu0 %v2693
        %v2824 = vpop.f32.mrb[0].mxu0
        %v2825 = vadd.f32 0.0, %v2824
        %v2826 = vpop.f32.mrb[0].mxu0
        %v2827 = vpop.f32.mrb[0].mxu0
        %v2828 = vadd.f32 0.0, %v2827
        %v2829 = vpop.f32.mrb[0].mxu0
        %2830 = vmatprep.mubr.bf16.mxu0 0
        %2831 = vmatmul.mubr.bf16.gmra.mrb[0].mxu0 %v2696
        %v2832 = vpop.f32.mrb[0].mxu0
        %v2833 = vadd.f32 0.0, %v2832
        %v2834 = vpop.f32.mrb[0].mxu0
        %v2835 = vpop.f32.mrb[0].mxu0
        %v2836 = vadd.f32 0.0, %v2835
        %v2837 = vpop.f32.mrb[0].mxu0
        %2838 = vmatprep.mubr.bf16.mxu0 0
        %2839 = vmatmul.mubr.bf16.gmra.mrb[0].mxu0 %v2699
        %v2840 = vpop.f32.mrb[0].mxu0
        %v2841 = vadd.f32 0.0, %v2840
        %v2842 = vpop.f32.mrb[0].mxu0
        %v2843 = vpop.f32.mrb[0].mxu0
        %v2844 = vadd.f32 0.0, %v2843
        %v2845 = vpop.f32.mrb[0].mxu0
        %2846 = vmatprep.mubr.bf16.mxu0 0
        %2847 = vmatmul.mubr.bf16.gmra.mrb[0].mxu0 %v2702
        %v2848 = vpop.f32.mrb[0].mxu0
        %v2849 = vadd.f32 0.0, %v2848
        %v2850 = vpop.f32.mrb[0].mxu0
        %v2851 = vpop.f32.mrb[0].mxu0
        %v2852 = vadd.f32 0.0, %v2851
        %v2853 = vpop.f32.mrb[0].mxu0
        %2854 = vmatprep.mubr.bf16.mxu0 0
        %2855 = vmatmul.mubr.bf16.gmra.mrb[0].mxu0 %v2705
        %v2856 = vpop.f32.mrb[0].mxu0
        %v2857 = vadd.f32 0.0, %v2856
        %v2858 = vpop.f32.mrb[0].mxu0
        %v2859 = vpop.f32.mrb[0].mxu0
        %v2860 = vadd.f32 0.0, %v2859
        %v2861 = vpop.f32.mrb[0].mxu0
        %2862 = vmatprep.mubr.bf16.mxu0 0
        %2863 = vmatmul.mubr.bf16.gmra.mrb[0].mxu0 %v2708
        %v2864 = vpop.f32.mrb[0].mxu0
        %v2865 = vadd.f32 0.0, %v2864
        %v2866 = vpop.f32.mrb[0].mxu0
        %v2867 = vpop.f32.mrb[0].mxu0
        %v2868 = vadd.f32 0.0, %v2867
        %v2869 = vpop.f32.mrb[0].mxu0
        %2870 = vdwg.mxu0
        %v2871 = vrcp.pop %v2745
        %v2872 = vrcp.pop %v2748
        %v2873 = vrcp.pop %v2753
        %v2874 = vrcp.pop %v2756
        %v2875 = vrcp.pop %v2761
        %v2876 = vrcp.pop %v2764
        %v2877 = vrcp.pop %v2769
        %v2878 = vrcp.pop %v2772
        %v2879 = vrcp.pop %v2777
        %v2880 = vrcp.pop %v2780
        %v2881 = vrcp.pop %v2785
        %v2882 = vrcp.pop %v2788
        %v2883 = vrcp.pop %v2793
        %v2884 = vrcp.pop %v2796
        %v2885 = vrcp.pop %v2801
        %v2886 = vrcp.pop %v2804
        %v2887 = vrcp.pop %v2809
        %v2888 = vrcp.pop %v2812
        %v2889 = vrcp.pop %v2817
        %v2890 = vrcp.pop %v2820
        %v2891 = vrcp.pop %v2825
        %v2892 = vrcp.pop %v2828
        %v2893 = vrcp.pop %v2833
        %v2894 = vrcp.pop %v2836
        %v2895 = vrcp.pop %v2841
        %v2896 = vrcp.pop %v2844
        %v2897 = vrcp.pop %v2849
        %v2898 = vrcp.pop %v2852
        %v2899 = vrcp.pop %v2857
        %v2900 = vrcp.pop %v2860
        %v2901 = vrcp.pop %v2865
        %v2902 = vrcp.pop %v2868
        %v2903 = vmul.f32 %v2567, %v2871
        %v2904 = vmul.f32 %v2569, %v2872
        %v2905 = vmul.f32 %v2571, %v2873
        %v2906 = vmul.f32 %v2573, %v2874
        %v2907 = vmul.f32 %v2575, %v2875
        %v2908 = vmul.f32 %v2577, %v2876
        %v2909 = vmul.f32 %v2579, %v2877
        %v2910 = vmul.f32 %v2581, %v2878
        %v2911 = vmul.f32 %v2583, %v2879
        %v2912 = vmul.f32 %v2585, %v2880
        %v2913 = vmul.f32 %v2587, %v2881
        %v2914 = vmul.f32 %v2589, %v2882
        %v2915 = vmul.f32 %v2591, %v2883
        %v2916 = vmul.f32 %v2593, %v2884
        %v2917 = vmul.f32 %v2595, %v2885
        %v2918 = vmul.f32 %v2597, %v2886
        %v2919 = vmul.f32 %v2599, %v2887
        %v2920 = vmul.f32 %v2601, %v2888
        %v2921 = vmul.f32 %v2603, %v2889
        %v2922 = vmul.f32 %v2605, %v2890
        %v2923 = vmul.f32 %v2607, %v2891
        %v2924 = vmul.f32 %v2609, %v2892
        %v2925 = vmul.f32 %v2611, %v2893
        %v2926 = vmul.f32 %v2613, %v2894
        %v2927 = vmul.f32 %v2615, %v2895
        %v2928 = vmul.f32 %v2617, %v2896
        %v2929 = vmul.f32 %v2619, %v2897
        %v2930 = vmul.f32 %v2621, %v2898
        %v2931 = vmul.f32 %v2623, %v2899
        %v2932 = vmul.f32 %v2625, %v2900
        %v2933 = vmul.f32 %v2627, %v2901
        %v2934 = vmul.f32 %v2629, %v2902
        %v2935 = vpack.c.bf16 %v2904, %v2903
        %v2936 = vpack.c.bf16 %v2906, %v2905
        %v2937 = vpack.c.bf16 %v2908, %v2907
        %v2938 = vpack.c.bf16 %v2910, %v2909
        %v2939 = vpack.c.bf16 %v2912, %v2911
        %v2940 = vpack.c.bf16 %v2914, %v2913
        %v2941 = vpack.c.bf16 %v2916, %v2915
        %v2942 = vpack.c.bf16 %v2918, %v2917
        %v2943 = vpack.c.bf16 %v2920, %v2919
        %v2944 = vpack.c.bf16 %v2922, %v2921
        %v2945 = vpack.c.bf16 %v2924, %v2923
        %v2946 = vpack.c.bf16 %v2926, %v2925
        %v2947 = vpack.c.bf16 %v2928, %v2927
        %v2948 = vpack.c.bf16 %v2930, %v2929
        %v2949 = vpack.c.bf16 %v2932, %v2931
        %v2950 = vpack.c.bf16 %v2934, %v2933
        %v2951 = vld [vmem:[%s1 + $0xc] sm:$0xff]
        %v2952 = vld [vmem:[%s1 + $0x28] sm:$0xff]
        %v2953 = vld [vmem:[%s1 + $0x44] sm:$0xff]
        %v2954 = vld [vmem:[%s1 + $0x60] sm:$0xff]
        %v2959 = vunpack.c.l.b16 %v2951
        %v2960 = vunpack.c.h.b16 %v2951
        %v2961 = vunpack.c.l.b16 %v2952
        %v2962 = vunpack.c.h.b16 %v2952
        %v2963 = vunpack.c.l.b16 %v2953
        %v2964 = vunpack.c.h.b16 %v2953
        %v2965 = vunpack.c.l.b16 %v2954
        %v2966 = vunpack.c.h.b16 %v2954
        %v2967 = vpack.c.b16 %v2961, %v2959
        %v2968 = vpack.c.b16 %v2962, %v2960
        %v2969 = vpack.c.b16 %v2965, %v2963
        %v2970 = vpack.c.b16 %v2966, %v2964
        %v2976 = vsel %vm298, %v2935, 0
        %v2979 = vsel %vm298, %v2936, 0
        %v2982 = vsel %vm298, %v2937, 0
        %v2985 = vsel %vm298, %v2938, 0
        %v2988 = vsel %vm298, %v2939, 0
        %v2991 = vsel %vm298, %v2940, 0
        %v2994 = vsel %vm298, %v2941, 0
        %v2997 = vsel %vm298, %v2942, 0
        %v3000 = vsel %vm298, %v2943, 0
        %v3003 = vsel %vm298, %v2944, 0
        %v3006 = vsel %vm298, %v2945, 0
        %v3009 = vsel %vm298, %v2946, 0
        %v3012 = vsel %vm298, %v2947, 0
        %v3015 = vsel %vm298, %v2948, 0
        %v3018 = vsel %vm298, %v2949, 0
        %v3021 = vsel %vm298, %v2950, 0
        %3023 = vmatprep.subr.bf16.mxu0 %v2968
        %3024 = vmatpush1.bf16.msra.mxu0 %v2967
        %3025 = vmatprep.subr.bf16.mxu0 %v2970
        %3026 = vmatpush1.bf16.msra.mxu0 %v2969
        %3027 = vmatprep.subr.bf16.mxu0 0
        %3028 = vmatpush1.bf16.msra.mxu0 0
        %3029 = vmatprep.subr.bf16.mxu0 0
        %3030 = vmatpush1.bf16.msra.mxu0 0
        %3031 = vmatprep.subr.bf16.mxu0 0
        %3032 = vmatpush1.bf16.msra.mxu0 0
        %3033 = vmatprep.subr.bf16.mxu0 0
        %3034 = vmatpush1.bf16.msra.mxu0 0
        %3035 = vmatprep.subr.bf16.mxu0 0
        %3036 = vmatpush1.bf16.msra.mxu0 0
        %3037 = vmatprep.subr.bf16.mxu0 0
        %3038 = vmatpush1.bf16.msra.mxu0 0
        %3039 = vmatprep.subr.bf16.mxu0 0
        %3040 = vmatpush1.bf16.msra.mxu0 0
        %3041 = vmatprep.subr.bf16.mxu0 0
        %3042 = vmatpush1.bf16.msra.mxu0 0
        %3043 = vmatprep.subr.bf16.mxu0 0
        %3044 = vmatpush1.bf16.msra.mxu0 0
        %3045 = vmatprep.subr.bf16.mxu0 0
        %3046 = vmatpush1.bf16.msra.mxu0 0
        %3047 = vmatprep.subr.bf16.mxu0 0
        %3048 = vmatpush1.bf16.msra.mxu0 0
        %3049 = vmatprep.subr.bf16.mxu0 0
        %3050 = vmatpush1.bf16.msra.mxu0 0
        %3051 = vmatprep.subr.bf16.mxu0 0
        %3052 = vmatpush1.bf16.msra.mxu0 0
        %3053 = vmatprep.subr.bf16.mxu0 0
        %3054 = vmatpush1.bf16.msra.mxu0 0
        %3055 = vmatprep.mubr.bf16.mxu0 0
        %3056 = vmatmul.mubr.bf16.gmra.mrb[0].mxu0 %v2976
        %v3057 = vpop.f32.mrb[0].mxu0
        %v3058 = vadd.f32 0.0, %v3057
        %v3059 = vpop.f32.mrb[0].mxu0
        %v3060 = vadd.f32 0.0, %v3059
        %v3061 = vpop.f32.mrb[0].mxu0
        %v3062 = vadd.f32 0.0, %v3061
        %v3063 = vpop.f32.mrb[0].mxu0
        %v3064 = vadd.f32 0.0, %v3063
        %3065 = vmatprep.mubr.bf16.mxu0 0
        %3066 = vmatmul.mubr.bf16.gmra.mrb[0].mxu0 %v2979
        %v3067 = vpop.f32.mrb[0].mxu0
        %v3068 = vadd.f32 0.0, %v3067
        %v3069 = vpop.f32.mrb[0].mxu0
        %v3070 = vadd.f32 0.0, %v3069
        %v3071 = vpop.f32.mrb[0].mxu0
        %v3072 = vadd.f32 0.0, %v3071
        %v3073 = vpop.f32.mrb[0].mxu0
        %v3074 = vadd.f32 0.0, %v3073
        %3075 = vmatprep.mubr.bf16.mxu0 0
        %3076 = vmatmul.mubr.bf16.gmra.mrb[0].mxu0 %v2982
        %v3077 = vpop.f32.mrb[0].mxu0
        %v3078 = vadd.f32 0.0, %v3077
        %v3079 = vpop.f32.mrb[0].mxu0
        %v3080 = vadd.f32 0.0, %v3079
        %v3081 = vpop.f32.mrb[0].mxu0
        %v3082 = vadd.f32 0.0, %v3081
        %v3083 = vpop.f32.mrb[0].mxu0
        %v3084 = vadd.f32 0.0, %v3083
        %3085 = vmatprep.mubr.bf16.mxu0 0
        %3086 = vmatmul.mubr.bf16.gmra.mrb[0].mxu0 %v2985
        %v3087 = vpop.f32.mrb[0].mxu0
        %v3088 = vadd.f32 0.0, %v3087
        %v3089 = vpop.f32.mrb[0].mxu0
        %v3090 = vadd.f32 0.0, %v3089
        %v3091 = vpop.f32.mrb[0].mxu0
        %v3092 = vadd.f32 0.0, %v3091
        %v3093 = vpop.f32.mrb[0].mxu0
        %v3094 = vadd.f32 0.0, %v3093
        %3095 = vmatprep.mubr.bf16.mxu0 0
        %3096 = vmatmul.mubr.bf16.gmra.mrb[0].mxu0 %v2988
        %v3097 = vpop.f32.mrb[0].mxu0
        %v3098 = vadd.f32 0.0, %v3097
        %v3099 = vpop.f32.mrb[0].mxu0
        %v3100 = vadd.f32 0.0, %v3099
        %v3101 = vpop.f32.mrb[0].mxu0
        %v3102 = vadd.f32 0.0, %v3101
        %v3103 = vpop.f32.mrb[0].mxu0
        %v3104 = vadd.f32 0.0, %v3103
        %3105 = vmatprep.mubr.bf16.mxu0 0
        %3106 = vmatmul.mubr.bf16.gmra.mrb[0].mxu0 %v2991
        %v3107 = vpop.f32.mrb[0].mxu0
        %v3108 = vadd.f32 0.0, %v3107
        %v3109 = vpop.f32.mrb[0].mxu0
        %v3110 = vadd.f32 0.0, %v3109
        %v3111 = vpop.f32.mrb[0].mxu0
        %v3112 = vadd.f32 0.0, %v3111
        %v3113 = vpop.f32.mrb[0].mxu0
        %v3114 = vadd.f32 0.0, %v3113
        %3115 = vmatprep.mubr.bf16.mxu0 0
        %3116 = vmatmul.mubr.bf16.gmra.mrb[0].mxu0 %v2994
        %v3117 = vpop.f32.mrb[0].mxu0
        %v3118 = vadd.f32 0.0, %v3117
        %v3119 = vpop.f32.mrb[0].mxu0
        %v3120 = vadd.f32 0.0, %v3119
        %v3121 = vpop.f32.mrb[0].mxu0
        %v3122 = vadd.f32 0.0, %v3121
        %v3123 = vpop.f32.mrb[0].mxu0
        %v3124 = vadd.f32 0.0, %v3123
        %3125 = vmatprep.mubr.bf16.mxu0 0
        %3126 = vmatmul.mubr.bf16.gmra.mrb[0].mxu0 %v2997
        %v3127 = vpop.f32.mrb[0].mxu0
        %v3128 = vadd.f32 0.0, %v3127
        %v3129 = vpop.f32.mrb[0].mxu0
        %v3130 = vadd.f32 0.0, %v3129
        %v3131 = vpop.f32.mrb[0].mxu0
        %v3132 = vadd.f32 0.0, %v3131
        %v3133 = vpop.f32.mrb[0].mxu0
        %v3134 = vadd.f32 0.0, %v3133
        %3135 = vmatprep.mubr.bf16.mxu0 0
        %3136 = vmatmul.mubr.bf16.gmra.mrb[0].mxu0 %v3000
        %v3137 = vpop.f32.mrb[0].mxu0
        %v3138 = vadd.f32 0.0, %v3137
        %v3139 = vpop.f32.mrb[0].mxu0
        %v3140 = vadd.f32 0.0, %v3139
        %v3141 = vpop.f32.mrb[0].mxu0
        %v3142 = vadd.f32 0.0, %v3141
        %v3143 = vpop.f32.mrb[0].mxu0
        %v3144 = vadd.f32 0.0, %v3143
        %3145 = vmatprep.mubr.bf16.mxu0 0
        %3146 = vmatmul.mubr.bf16.gmra.mrb[0].mxu0 %v3003
        %v3147 = vpop.f32.mrb[0].mxu0
        %v3148 = vadd.f32 0.0, %v3147
        %v3149 = vpop.f32.mrb[0].mxu0
        %v3150 = vadd.f32 0.0, %v3149
        %v3151 = vpop.f32.mrb[0].mxu0
        %v3152 = vadd.f32 0.0, %v3151
        %v3153 = vpop.f32.mrb[0].mxu0
        %v3154 = vadd.f32 0.0, %v3153
        %3155 = vmatprep.mubr.bf16.mxu0 0
        %3156 = vmatmul.mubr.bf16.gmra.mrb[0].mxu0 %v3006
        %v3157 = vpop.f32.mrb[0].mxu0
        %v3158 = vadd.f32 0.0, %v3157
        %v3159 = vpop.f32.mrb[0].mxu0
        %v3160 = vadd.f32 0.0, %v3159
        %v3161 = vpop.f32.mrb[0].mxu0
        %v3162 = vadd.f32 0.0, %v3161
        %v3163 = vpop.f32.mrb[0].mxu0
        %v3164 = vadd.f32 0.0, %v3163
        %3165 = vmatprep.mubr.bf16.mxu0 0
        %3166 = vmatmul.mubr.bf16.gmra.mrb[0].mxu0 %v3009
        %v3167 = vpop.f32.mrb[0].mxu0
        %v3168 = vadd.f32 0.0, %v3167
        %v3169 = vpop.f32.mrb[0].mxu0
        %v3170 = vadd.f32 0.0, %v3169
        %v3171 = vpop.f32.mrb[0].mxu0
        %v3172 = vadd.f32 0.0, %v3171
        %v3173 = vpop.f32.mrb[0].mxu0
        %v3174 = vadd.f32 0.0, %v3173
        %3175 = vmatprep.mubr.bf16.mxu0 0
        %3176 = vmatmul.mubr.bf16.gmra.mrb[0].mxu0 %v3012
        %v3177 = vpop.f32.mrb[0].mxu0
        %v3178 = vadd.f32 0.0, %v3177
        %v3179 = vpop.f32.mrb[0].mxu0
        %v3180 = vadd.f32 0.0, %v3179
        %v3181 = vpop.f32.mrb[0].mxu0
        %v3182 = vadd.f32 0.0, %v3181
        %v3183 = vpop.f32.mrb[0].mxu0
        %v3184 = vadd.f32 0.0, %v3183
        %3185 = vmatprep.mubr.bf16.mxu0 0
        %3186 = vmatmul.mubr.bf16.gmra.mrb[0].mxu0 %v3015
        %v3187 = vpop.f32.mrb[0].mxu0
        %v3188 = vadd.f32 0.0, %v3187
        %v3189 = vpop.f32.mrb[0].mxu0
        %v3190 = vadd.f32 0.0, %v3189
        %v3191 = vpop.f32.mrb[0].mxu0
        %v3192 = vadd.f32 0.0, %v3191
        %v3193 = vpop.f32.mrb[0].mxu0
        %v3194 = vadd.f32 0.0, %v3193
        %3195 = vmatprep.mubr.bf16.mxu0 0
        %3196 = vmatmul.mubr.bf16.gmra.mrb[0].mxu0 %v3018
        %v3197 = vpop.f32.mrb[0].mxu0
        %v3198 = vadd.f32 0.0, %v3197
        %v3199 = vpop.f32.mrb[0].mxu0
        %v3200 = vadd.f32 0.0, %v3199
        %v3201 = vpop.f32.mrb[0].mxu0
        %v3202 = vadd.f32 0.0, %v3201
        %v3203 = vpop.f32.mrb[0].mxu0
        %v3204 = vadd.f32 0.0, %v3203
        %3205 = vmatprep.mubr.bf16.mxu0 0
        %3206 = vmatmul.mubr.bf16.gmra.mrb[0].mxu0 %v3021
        %v3207 = vpop.f32.mrb[0].mxu0
        %v3208 = vadd.f32 0.0, %v3207
        %v3209 = vpop.f32.mrb[0].mxu0
        %v3210 = vadd.f32 0.0, %v3209
        %v3211 = vpop.f32.mrb[0].mxu0
        %v3212 = vadd.f32 0.0, %v3211
        %v3213 = vpop.f32.mrb[0].mxu0
        %v3214 = vadd.f32 0.0, %v3213
        %3215 = vdwg.mxu0
        %v3216 = vmul.f32 %v3058, %v1541
        %v3217 = vmul.f32 %v3060, %v1543
        %v3218 = vmul.f32 %v3062, %v1545
        %v3219 = vmul.f32 %v3064, %v1547
        %v3220 = vmul.f32 %v3068, %v1551
        %v3221 = vmul.f32 %v3070, %v1553
        %v3222 = vmul.f32 %v3072, %v1555
        %v3223 = vmul.f32 %v3074, %v1557
        %v3224 = vmul.f32 %v3078, %v1561
        %v3225 = vmul.f32 %v3080, %v1563
        %v3226 = vmul.f32 %v3082, %v1565
        %v3227 = vmul.f32 %v3084, %v1567
        %v3228 = vmul.f32 %v3088, %v1571
        %v3229 = vmul.f32 %v3090, %v1573
        %v3230 = vmul.f32 %v3092, %v1575
        %v3231 = vmul.f32 %v3094, %v1577
        %v3232 = vmul.f32 %v3098, %v1581
        %v3233 = vmul.f32 %v3100, %v1583
        %v3234 = vmul.f32 %v3102, %v1585
        %v3235 = vmul.f32 %v3104, %v1587
        %v3236 = vmul.f32 %v3108, %v1591
        %v3237 = vmul.f32 %v3110, %v1593
        %v3238 = vmul.f32 %v3112, %v1595
        %v3239 = vmul.f32 %v3114, %v1597
        %v3240 = vmul.f32 %v3118, %v1601
        %v3241 = vmul.f32 %v3120, %v1603
        %v3242 = vmul.f32 %v3122, %v1605
        %v3243 = vmul.f32 %v3124, %v1607
        %v3244 = vmul.f32 %v3128, %v1611
        %v3245 = vmul.f32 %v3130, %v1613
        %v3246 = vmul.f32 %v3132, %v1615
        %v3247 = vmul.f32 %v3134, %v1617
        %v3248 = vmul.f32 %v3138, %v1621
        %v3249 = vmul.f32 %v3140, %v1623
        %v3250 = vmul.f32 %v3142, %v1625
        %v3251 = vmul.f32 %v3144, %v1627
        %v3252 = vmul.f32 %v3148, %v1631
        %v3253 = vmul.f32 %v3150, %v1633
        %v3254 = vmul.f32 %v3152, %v1635
        %v3255 = vmul.f32 %v3154, %v1637
        %v3256 = vmul.f32 %v3158, %v1641
        %v3257 = vmul.f32 %v3160, %v1643
        %v3258 = vmul.f32 %v3162, %v1645
        %v3259 = vmul.f32 %v3164, %v1647
        %v3260 = vmul.f32 %v3168, %v1651
        %v3261 = vmul.f32 %v3170, %v1653
        %v3262 = vmul.f32 %v3172, %v1655
        %v3263 = vmul.f32 %v3174, %v1657
        %v3264 = vmul.f32 %v3178, %v1661
        %v3265 = vmul.f32 %v3180, %v1663
        %v3266 = vmul.f32 %v3182, %v1665
        %v3267 = vmul.f32 %v3184, %v1667
        %v3268 = vmul.f32 %v3188, %v1671
        %v3269 = vmul.f32 %v3190, %v1673
        %v3270 = vmul.f32 %v3192, %v1675
        %v3271 = vmul.f32 %v3194, %v1677
        %v3272 = vmul.f32 %v3198, %v1681
        %v3273 = vmul.f32 %v3200, %v1683
        %v3274 = vmul.f32 %v3202, %v1685
        %v3275 = vmul.f32 %v3204, %v1687
        %v3276 = vmul.f32 %v3208, %v1691
        %v3277 = vmul.f32 %v3210, %v1693
        %v3278 = vmul.f32 %v3212, %v1695
        %v3279 = vmul.f32 %v3214, %v1697
        %v3280 = vpack.c.bf16 %v3218, %v3216
        %v3281 = vpack.c.bf16 %v3219, %v3217
        %v3282 = vpack.c.bf16 %v3222, %v3220
        %v3283 = vpack.c.bf16 %v3223, %v3221
        %v3284 = vpack.c.bf16 %v3226, %v3224
        %v3285 = vpack.c.bf16 %v3227, %v3225
        %v3286 = vpack.c.bf16 %v3230, %v3228
        %v3287 = vpack.c.bf16 %v3231, %v3229
        %v3288 = vpack.c.bf16 %v3234, %v3232
        %v3289 = vpack.c.bf16 %v3235, %v3233
        %v3290 = vpack.c.bf16 %v3238, %v3236
        %v3291 = vpack.c.bf16 %v3239, %v3237
        %v3292 = vpack.c.bf16 %v3242, %v3240
        %v3293 = vpack.c.bf16 %v3243, %v3241
        %v3294 = vpack.c.bf16 %v3246, %v3244
        %v3295 = vpack.c.bf16 %v3247, %v3245
        %v3296 = vpack.c.bf16 %v3250, %v3248
        %v3297 = vpack.c.bf16 %v3251, %v3249
        %v3298 = vpack.c.bf16 %v3254, %v3252
        %v3299 = vpack.c.bf16 %v3255, %v3253
        %v3300 = vpack.c.bf16 %v3258, %v3256
        %v3301 = vpack.c.bf16 %v3259, %v3257
        %v3302 = vpack.c.bf16 %v3262, %v3260
        %v3303 = vpack.c.bf16 %v3263, %v3261
        %v3304 = vpack.c.bf16 %v3266, %v3264
        %v3305 = vpack.c.bf16 %v3267, %v3265
        %v3306 = vpack.c.bf16 %v3270, %v3268
        %v3307 = vpack.c.bf16 %v3271, %v3269
        %v3308 = vpack.c.bf16 %v3274, %v3272
        %v3309 = vpack.c.bf16 %v3275, %v3273
        %v3310 = vpack.c.bf16 %v3278, %v3276
        %v3311 = vpack.c.bf16 %v3279, %v3277
        %v3312 = vld [vmem:[#allocation2 + $0x20] sm:$0xf]
        %v3313 = vld [vmem:[#allocation2 + $0x44] sm:$0xf]
        %v3314 = vld [vmem:[#allocation2 + $0x68] sm:$0xf]
        %v3315 = vld [vmem:[#allocation2 + $0x8c] sm:$0xf]
        %v3316 = vld [vmem:[#allocation2 + $0xb0] sm:$0xf]
        %v3317 = vld [vmem:[#allocation2 + $0xd4] sm:$0xf]
        %v3318 = vld [vmem:[#allocation2 + $0xf8] sm:$0xf]
        %v3319 = vld [vmem:[#allocation2 + $0x11c] sm:$0xf]
        %v3320 = vld [vmem:[#allocation2 + $0x140] sm:$0xf]
        %v3321 = vld [vmem:[#allocation2 + $0x164] sm:$0xf]
        %v3322 = vld [vmem:[#allocation2 + $0x188] sm:$0xf]
        %v3323 = vld [vmem:[#allocation2 + $0x1ac] sm:$0xf]
        %v3324 = vld [vmem:[#allocation2 + $0x1d0] sm:$0xf]
        %v3325 = vld [vmem:[#allocation2 + $0x1f4] sm:$0xf]
        %v3326 = vld [vmem:[#allocation2 + $0x218] sm:$0xf]
        %v3327 = vld [vmem:[#allocation2 + $0x23c] sm:$0xf]
        %v3328 = vld [vmem:[#allocation2 + $0x260] sm:$0xf]
        %v3329 = vld [vmem:[#allocation2 + $0x284] sm:$0xf]
        %v3330 = vld [vmem:[#allocation2 + $0x2a8] sm:$0xf]
        %v3331 = vld [vmem:[#allocation2 + $0x2cc] sm:$0xf]
        %v3332 = vld [vmem:[#allocation2 + $0x2f0] sm:$0xf]
        %v3333 = vld [vmem:[#allocation2 + $0x314] sm:$0xf]
        %v3334 = vld [vmem:[#allocation2 + $0x338] sm:$0xf]
        %v3335 = vld [vmem:[#allocation2 + $0x35c] sm:$0xf]
        %v3336 = vld [vmem:[#allocation2 + $0x380] sm:$0xf]
        %v3337 = vld [vmem:[#allocation2 + $0x3a4] sm:$0xf]
        %v3338 = vld [vmem:[#allocation2 + $0x3c8] sm:$0xf]
        %v3339 = vld [vmem:[#allocation2 + $0x3ec] sm:$0xf]
        %v3340 = vld [vmem:[#allocation2 + $0x410] sm:$0xf]
        %v3341 = vld [vmem:[#allocation2 + $0x434] sm:$0xf]
        %v3342 = vld [vmem:[#allocation2 + $0x458] sm:$0xf]
        %v3343 = vld [vmem:[#allocation2 + $0x47c] sm:$0xf]
        %v3344 = vld [vmem:[%s3 + $0x9] sm:$0x1]
        %v3346 = vlaneseq
        %v3347 = vshrl.u32 %v3346, 7
        %v3348 = vsub.s32 0, %v3347
        %v3349 = vrot.slane %v3344, %v3348
        %v3383 = vunpack.c.l.b16 %v3312
        %v3384 = vunpack.c.l.b16 %v3313
        %v3385 = vunpack.c.l.b16 %v3314
        %v3386 = vunpack.c.l.b16 %v3315
        %v3387 = vunpack.c.l.b16 %v3316
        %v3388 = vunpack.c.l.b16 %v3317
        %v3389 = vunpack.c.l.b16 %v3318
        %v3390 = vunpack.c.l.b16 %v3319
        %v3391 = vunpack.c.l.b16 %v3320
        %v3392 = vunpack.c.l.b16 %v3321
        %v3393 = vunpack.c.l.b16 %v3322
        %v3394 = vunpack.c.l.b16 %v3323
        %v3395 = vunpack.c.l.b16 %v3324
        %v3396 = vunpack.c.l.b16 %v3325
        %v3397 = vunpack.c.l.b16 %v3326
        %v3398 = vunpack.c.l.b16 %v3327
        %v3399 = vunpack.c.l.b16 %v3328
        %v3400 = vunpack.c.l.b16 %v3329
        %v3401 = vunpack.c.l.b16 %v3330
        %v3402 = vunpack.c.l.b16 %v3331
        %v3403 = vunpack.c.l.b16 %v3332
        %v3404 = vunpack.c.l.b16 %v3333
        %v3405 = vunpack.c.l.b16 %v3334
        %v3406 = vunpack.c.l.b16 %v3335
        %v3407 = vunpack.c.l.b16 %v3336
        %v3408 = vunpack.c.l.b16 %v3337
        %v3409 = vunpack.c.l.b16 %v3338
        %v3410 = vunpack.c.l.b16 %v3339
        %v3411 = vunpack.c.l.b16 %v3340
        %v3412 = vunpack.c.l.b16 %v3341
        %v3413 = vunpack.c.l.b16 %v3342
        %v3414 = vunpack.c.l.b16 %v3343
        %v3415 = vpack.c.b16 %v3384, %v3383
        %v3416 = vpack.c.b16 %v3386, %v3385
        %v3417 = vpack.c.b16 %v3388, %v3387
        %v3418 = vpack.c.b16 %v3390, %v3389
        %v3419 = vpack.c.b16 %v3392, %v3391
        %v3420 = vpack.c.b16 %v3394, %v3393
        %v3421 = vpack.c.b16 %v3396, %v3395
        %v3422 = vpack.c.b16 %v3398, %v3397
        %v3423 = vpack.c.b16 %v3400, %v3399
        %v3424 = vpack.c.b16 %v3402, %v3401
        %v3425 = vpack.c.b16 %v3404, %v3403
        %v3426 = vpack.c.b16 %v3406, %v3405
        %v3427 = vpack.c.b16 %v3408, %v3407
        %v3428 = vpack.c.b16 %v3410, %v3409
        %v3429 = vpack.c.b16 %v3412, %v3411
        %v3430 = vpack.c.b16 %v3414, %v3413
        %3447 = vmatprep.subr.bf16.mxu0 0
        %3448 = vmatpush1.bf16.msra.mxu0 %v3415
        %3449 = vmatprep.subr.bf16.mxu0 0
        %3450 = vmatpush1.bf16.msra.mxu0 %v3416
        %3451 = vmatprep.subr.bf16.mxu0 0
        %3452 = vmatpush1.bf16.msra.mxu0 %v3417
        %3453 = vmatprep.subr.bf16.mxu0 0
        %3454 = vmatpush1.bf16.msra.mxu0 %v3418
        %3455 = vmatprep.subr.bf16.mxu0 0
        %3456 = vmatpush1.bf16.msra.mxu0 %v3419
        %3457 = vmatprep.subr.bf16.mxu0 0
        %3458 = vmatpush1.bf16.msra.mxu0 %v3420
        %3459 = vmatprep.subr.bf16.mxu0 0
        %3460 = vmatpush1.bf16.msra.mxu0 %v3421
        %3461 = vmatprep.subr.bf16.mxu0 0
        %3462 = vmatpush1.bf16.msra.mxu0 %v3422
        %3463 = vmatprep.subr.bf16.mxu0 0
        %3464 = vmatpush1.bf16.msra.mxu0 %v3423
        %3465 = vmatprep.subr.bf16.mxu0 0
        %3466 = vmatpush1.bf16.msra.mxu0 %v3424
        %3467 = vmatprep.subr.bf16.mxu0 0
        %3468 = vmatpush1.bf16.msra.mxu0 %v3425
        %3469 = vmatprep.subr.bf16.mxu0 0
        %3470 = vmatpush1.bf16.msra.mxu0 %v3426
        %3471 = vmatprep.subr.bf16.mxu0 0
        %3472 = vmatpush1.bf16.msra.mxu0 %v3427
        %3473 = vmatprep.subr.bf16.mxu0 0
        %3474 = vmatpush1.bf16.msra.mxu0 %v3428
        %3475 = vmatprep.subr.bf16.mxu0 0
        %3476 = vmatpush1.bf16.msra.mxu0 %v3429
        %3477 = vmatprep.subr.bf16.mxu0 0
        %3478 = vmatpush1.bf16.msra.mxu0 %v3430
        %3479 = vmatprep.mubr.bf16.mxu0 %v3281
        %3480 = vmatmul.mubr.bf16.gmra.mrb[0].mxu0 %v3280
        %v3481 = vpop.f32.mrb[0].mxu0
        %v3482 = vadd.f32 %v3349, %v3481
        %v3483 = vpop.f32.mrb[0].mxu0
        %v3484 = vpop.f32.mrb[0].mxu0
        %v3485 = vadd.f32 %v3349, %v3484
        %v3486 = vpop.f32.mrb[0].mxu0
        %3487 = vmatprep.mubr.bf16.mxu0 %v3283
        %3488 = vmatmul.mubr.bf16.gmra.mrb[0].mxu0 %v3282
        %v3489 = vpop.f32.mrb[0].mxu0
        %v3490 = vadd.f32 %v3349, %v3489
        %v3491 = vpop.f32.mrb[0].mxu0
        %v3492 = vpop.f32.mrb[0].mxu0
        %v3493 = vadd.f32 %v3349, %v3492
        %v3494 = vpop.f32.mrb[0].mxu0
        %3495 = vmatprep.mubr.bf16.mxu0 %v3285
        %3496 = vmatmul.mubr.bf16.gmra.mrb[0].mxu0 %v3284
        %v3497 = vpop.f32.mrb[0].mxu0
        %v3498 = vadd.f32 %v3349, %v3497
        %v3499 = vpop.f32.mrb[0].mxu0
        %v3500 = vpop.f32.mrb[0].mxu0
        %v3501 = vadd.f32 %v3349, %v3500
        %v3502 = vpop.f32.mrb[0].mxu0
        %3503 = vmatprep.mubr.bf16.mxu0 %v3287
        %3504 = vmatmul.mubr.bf16.gmra.mrb[0].mxu0 %v3286
        %v3505 = vpop.f32.mrb[0].mxu0
        %v3506 = vadd.f32 %v3349, %v3505
        %v3507 = vpop.f32.mrb[0].mxu0
        %v3508 = vpop.f32.mrb[0].mxu0
        %v3509 = vadd.f32 %v3349, %v3508
        %v3510 = vpop.f32.mrb[0].mxu0
        %3511 = vmatprep.mubr.bf16.mxu0 %v3289
        %3512 = vmatmul.mubr.bf16.gmra.mrb[0].mxu0 %v3288
        %v3513 = vpop.f32.mrb[0].mxu0
        %v3514 = vadd.f32 %v3349, %v3513
        %v3515 = vpop.f32.mrb[0].mxu0
        %v3516 = vpop.f32.mrb[0].mxu0
        %v3517 = vadd.f32 %v3349, %v3516
        %v3518 = vpop.f32.mrb[0].mxu0
        %3519 = vmatprep.mubr.bf16.mxu0 %v3291
        %3520 = vmatmul.mubr.bf16.gmra.mrb[0].mxu0 %v3290
        %v3521 = vpop.f32.mrb[0].mxu0
        %v3522 = vadd.f32 %v3349, %v3521
        %v3523 = vpop.f32.mrb[0].mxu0
        %v3524 = vpop.f32.mrb[0].mxu0
        %v3525 = vadd.f32 %v3349, %v3524
        %v3526 = vpop.f32.mrb[0].mxu0
        %3527 = vmatprep.mubr.bf16.mxu0 %v3293
        %3528 = vmatmul.mubr.bf16.gmra.mrb[0].mxu0 %v3292
        %v3529 = vpop.f32.mrb[0].mxu0
        %v3530 = vadd.f32 %v3349, %v3529
        %v3531 = vpop.f32.mrb[0].mxu0
        %v3532 = vpop.f32.mrb[0].mxu0
        %v3533 = vadd.f32 %v3349, %v3532
        %v3534 = vpop.f32.mrb[0].mxu0
        %3535 = vmatprep.mubr.bf16.mxu0 %v3295
        %3536 = vmatmul.mubr.bf16.gmra.mrb[0].mxu0 %v3294
        %v3537 = vpop.f32.mrb[0].mxu0
        %v3538 = vadd.f32 %v3349, %v3537
        %v3539 = vpop.f32.mrb[0].mxu0
        %v3540 = vpop.f32.mrb[0].mxu0
        %v3541 = vadd.f32 %v3349, %v3540
        %v3542 = vpop.f32.mrb[0].mxu0
        %3543 = vmatprep.mubr.bf16.mxu0 %v3297
        %3544 = vmatmul.mubr.bf16.gmra.mrb[0].mxu0 %v3296
        %v3545 = vpop.f32.mrb[0].mxu0
        %v3546 = vadd.f32 %v3349, %v3545
        %v3547 = vpop.f32.mrb[0].mxu0
        %v3548 = vpop.f32.mrb[0].mxu0
        %v3549 = vadd.f32 %v3349, %v3548
        %v3550 = vpop.f32.mrb[0].mxu0
        %3551 = vmatprep.mubr.bf16.mxu0 %v3299
        %3552 = vmatmul.mubr.bf16.gmra.mrb[0].mxu0 %v3298
        %v3553 = vpop.f32.mrb[0].mxu0
        %v3554 = vadd.f32 %v3349, %v3553
        %v3555 = vpop.f32.mrb[0].mxu0
        %v3556 = vpop.f32.mrb[0].mxu0
        %v3557 = vadd.f32 %v3349, %v3556
        %v3558 = vpop.f32.mrb[0].mxu0
        %3559 = vmatprep.mubr.bf16.mxu0 %v3301
        %3560 = vmatmul.mubr.bf16.gmra.mrb[0].mxu0 %v3300
        %v3561 = vpop.f32.mrb[0].mxu0
        %v3562 = vadd.f32 %v3349, %v3561
        %v3563 = vpop.f32.mrb[0].mxu0
        %v3564 = vpop.f32.mrb[0].mxu0
        %v3565 = vadd.f32 %v3349, %v3564
        %v3566 = vpop.f32.mrb[0].mxu0
        %3567 = vmatprep.mubr.bf16.mxu0 %v3303
        %3568 = vmatmul.mubr.bf16.gmra.mrb[0].mxu0 %v3302
        %v3569 = vpop.f32.mrb[0].mxu0
        %v3570 = vadd.f32 %v3349, %v3569
        %v3571 = vpop.f32.mrb[0].mxu0
        %v3572 = vpop.f32.mrb[0].mxu0
        %v3573 = vadd.f32 %v3349, %v3572
        %v3574 = vpop.f32.mrb[0].mxu0
        %3575 = vmatprep.mubr.bf16.mxu0 %v3305
        %3576 = vmatmul.mubr.bf16.gmra.mrb[0].mxu0 %v3304
        %v3577 = vpop.f32.mrb[0].mxu0
        %v3578 = vadd.f32 %v3349, %v3577
        %v3579 = vpop.f32.mrb[0].mxu0
        %v3580 = vpop.f32.mrb[0].mxu0
        %v3581 = vadd.f32 %v3349, %v3580
        %v3582 = vpop.f32.mrb[0].mxu0
        %3583 = vmatprep.mubr.bf16.mxu0 %v3307
        %3584 = vmatmul.mubr.bf16.gmra.mrb[0].mxu0 %v3306
        %v3585 = vpop.f32.mrb[0].mxu0
        %v3586 = vadd.f32 %v3349, %v3585
        %v3587 = vpop.f32.mrb[0].mxu0
        %v3588 = vpop.f32.mrb[0].mxu0
        %v3589 = vadd.f32 %v3349, %v3588
        %v3590 = vpop.f32.mrb[0].mxu0
        %3591 = vmatprep.mubr.bf16.mxu0 %v3309
        %3592 = vmatmul.mubr.bf16.gmra.mrb[0].mxu0 %v3308
        %v3593 = vpop.f32.mrb[0].mxu0
        %v3594 = vadd.f32 %v3349, %v3593
        %v3595 = vpop.f32.mrb[0].mxu0
        %v3596 = vpop.f32.mrb[0].mxu0
        %v3597 = vadd.f32 %v3349, %v3596
        %v3598 = vpop.f32.mrb[0].mxu0
        %3599 = vmatprep.mubr.bf16.mxu0 %v3311
        %3600 = vmatmul.mubr.bf16.gmra.mrb[0].mxu0 %v3310
        %v3601 = vpop.f32.mrb[0].mxu0
        %v3602 = vadd.f32 %v3349, %v3601
        %v3603 = vpop.f32.mrb[0].mxu0
        %v3604 = vpop.f32.mrb[0].mxu0
        %v3605 = vadd.f32 %v3349, %v3604
        %v3606 = vpop.f32.mrb[0].mxu0
        %3607 = vdwg.mxu0
        %v3608 = vadd.f32 %v1927, %v3482
        %v3609 = vadd.f32 %v1930, %v3485
        %v3610 = vadd.f32 %v1935, %v3490
        %v3611 = vadd.f32 %v1938, %v3493
        %v3612 = vadd.f32 %v1943, %v3498
        %v3613 = vadd.f32 %v1946, %v3501
        %v3614 = vadd.f32 %v1951, %v3506
        %v3615 = vadd.f32 %v1954, %v3509
        %v3616 = vadd.f32 %v1959, %v3514
        %v3617 = vadd.f32 %v1962, %v3517
        %v3618 = vadd.f32 %v1967, %v3522
        %v3619 = vadd.f32 %v1970, %v3525
        %v3620 = vadd.f32 %v1975, %v3530
        %v3621 = vadd.f32 %v1978, %v3533
        %v3622 = vadd.f32 %v1983, %v3538
        %v3623 = vadd.f32 %v1986, %v3541
        %v3624 = vadd.f32 %v1991, %v3546
        %v3625 = vadd.f32 %v1994, %v3549
        %v3626 = vadd.f32 %v1999, %v3554
        %v3627 = vadd.f32 %v2002, %v3557
        %v3628 = vadd.f32 %v2007, %v3562
        %v3629 = vadd.f32 %v2010, %v3565
        %v3630 = vadd.f32 %v2015, %v3570
        %v3631 = vadd.f32 %v2018, %v3573
        %v3632 = vadd.f32 %v2023, %v3578
        %v3633 = vadd.f32 %v2026, %v3581
        %v3634 = vadd.f32 %v2031, %v3586
        %v3635 = vadd.f32 %v2034, %v3589
        %v3636 = vadd.f32 %v2039, %v3594
        %v3637 = vadd.f32 %v2042, %v3597
        %v3638 = vadd.f32 %v2047, %v3602
        %v3639 = vadd.f32 %v2050, %v3605
        %v3640 = vsel %vm298, %v3608, 0.0
        %3641 = vadd.xlane.f32.xlu0 %v3640
        %v3642 = vpop.xlane.xlu0 %3641
        %v3643 = vsel %vm298, %v3609, 0.0
        %3644 = vadd.xlane.f32.xlu0 %v3643
        %v3645 = vpop.xlane.xlu0 %3644
        %v3646 = vsel %vm298, %v3610, 0.0
        %3647 = vadd.xlane.f32.xlu0 %v3646
        %v3648 = vpop.xlane.xlu0 %3647
        %v3649 = vsel %vm298, %v3611, 0.0
        %3650 = vadd.xlane.f32.xlu0 %v3649
        %v3651 = vpop.xlane.xlu0 %3650
        %v3652 = vsel %vm298, %v3612, 0.0
        %3653 = vadd.xlane.f32.xlu0 %v3652
        %v3654 = vpop.xlane.xlu0 %3653
        %v3655 = vsel %vm298, %v3613, 0.0
        %3656 = vadd.xlane.f32.xlu0 %v3655
        %v3657 = vpop.xlane.xlu0 %3656
        %v3658 = vsel %vm298, %v3614, 0.0
        %3659 = vadd.xlane.f32.xlu0 %v3658
        %v3660 = vpop.xlane.xlu0 %3659
        %v3661 = vsel %vm298, %v3615, 0.0
        %3662 = vadd.xlane.f32.xlu0 %v3661
        %v3663 = vpop.xlane.xlu0 %3662
        %v3664 = vsel %vm298, %v3616, 0.0
        %3665 = vadd.xlane.f32.xlu0 %v3664
        %v3666 = vpop.xlane.xlu0 %3665
        %v3667 = vsel %vm298, %v3617, 0.0
        %3668 = vadd.xlane.f32.xlu0 %v3667
        %v3669 = vpop.xlane.xlu0 %3668
        %v3670 = vsel %vm298, %v3618, 0.0
        %3671 = vadd.xlane.f32.xlu0 %v3670
        %v3672 = vpop.xlane.xlu0 %3671
        %v3673 = vsel %vm298, %v3619, 0.0
        %3674 = vadd.xlane.f32.xlu0 %v3673
        %v3675 = vpop.xlane.xlu0 %3674
        %v3676 = vsel %vm298, %v3620, 0.0
        %3677 = vadd.xlane.f32.xlu0 %v3676
        %v3678 = vpop.xlane.xlu0 %3677
        %v3679 = vsel %vm298, %v3621, 0.0
        %3680 = vadd.xlane.f32.xlu0 %v3679
        %v3681 = vpop.xlane.xlu0 %3680
        %v3682 = vsel %vm298, %v3622, 0.0
        %3683 = vadd.xlane.f32.xlu0 %v3682
        %v3684 = vpop.xlane.xlu0 %3683
        %v3685 = vsel %vm298, %v3623, 0.0
        %3686 = vadd.xlane.f32.xlu0 %v3685
        %v3687 = vpop.xlane.xlu0 %3686
        %v3688 = vsel %vm298, %v3624, 0.0
        %3689 = vadd.xlane.f32.xlu0 %v3688
        %v3690 = vpop.xlane.xlu0 %3689
        %v3691 = vsel %vm298, %v3625, 0.0
        %3692 = vadd.xlane.f32.xlu0 %v3691
        %v3693 = vpop.xlane.xlu0 %3692
        %v3694 = vsel %vm298, %v3626, 0.0
        %3695 = vadd.xlane.f32.xlu0 %v3694
        %v3696 = vpop.xlane.xlu0 %3695
        %v3697 = vsel %vm298, %v3627, 0.0
        %3698 = vadd.xlane.f32.xlu0 %v3697
        %v3699 = vpop.xlane.xlu0 %3698
        %v3700 = vsel %vm298, %v3628, 0.0
        %3701 = vadd.xlane.f32.xlu0 %v3700
        %v3702 = vpop.xlane.xlu0 %3701
        %v3703 = vsel %vm298, %v3629, 0.0
        %3704 = vadd.xlane.f32.xlu0 %v3703
        %v3705 = vpop.xlane.xlu0 %3704
        %v3706 = vsel %vm298, %v3630, 0.0
        %3707 = vadd.xlane.f32.xlu0 %v3706
        %v3708 = vpop.xlane.xlu0 %3707
        %v3709 = vsel %vm298, %v3631, 0.0
        %3710 = vadd.xlane.f32.xlu0 %v3709
        %v3711 = vpop.xlane.xlu0 %3710
        %v3712 = vsel %vm298, %v3632, 0.0
        %3713 = vadd.xlane.f32.xlu0 %v3712
        %v3714 = vpop.xlane.xlu0 %3713
        %v3715 = vsel %vm298, %v3633, 0.0
        %3716 = vadd.xlane.f32.xlu0 %v3715
        %v3717 = vpop.xlane.xlu0 %3716
        %v3718 = vsel %vm298, %v3634, 0.0
        %3719 = vadd.xlane.f32.xlu0 %v3718
        %v3720 = vpop.xlane.xlu0 %3719
        %v3721 = vsel %vm298, %v3635, 0.0
        %3722 = vadd.xlane.f32.xlu0 %v3721
        %v3723 = vpop.xlane.xlu0 %3722
        %v3724 = vsel %vm298, %v3636, 0.0
        %3725 = vadd.xlane.f32.xlu0 %v3724
        %v3726 = vpop.xlane.xlu0 %3725
        %v3727 = vsel %vm298, %v3637, 0.0
        %3728 = vadd.xlane.f32.xlu0 %v3727
        %v3729 = vpop.xlane.xlu0 %3728
        %v3730 = vsel %vm298, %v3638, 0.0
        %3731 = vadd.xlane.f32.xlu0 %v3730
        %v3732 = vpop.xlane.xlu0 %3731
        %v3733 = vsel %vm298, %v3639, 0.0
        %3734 = vadd.xlane.f32.xlu0 %v3733
        %v3735 = vpop.xlane.xlu0 %3734
        %v3736 = vrcp.pop 32.0
        %v3737 = vmul.f32 %v3642, %v3736
        %v3738 = vmul.f32 %v3645, %v3736
        %v3739 = vmul.f32 %v3648, %v3736
        %v3740 = vmul.f32 %v3651, %v3736
        %v3741 = vmul.f32 %v3654, %v3736
        %v3742 = vmul.f32 %v3657, %v3736
        %v3743 = vmul.f32 %v3660, %v3736
        %v3744 = vmul.f32 %v3663, %v3736
        %v3745 = vmul.f32 %v3666, %v3736
        %v3746 = vmul.f32 %v3669, %v3736
        %v3747 = vmul.f32 %v3672, %v3736
        %v3748 = vmul.f32 %v3675, %v3736
        %v3749 = vmul.f32 %v3678, %v3736
        %v3750 = vmul.f32 %v3681, %v3736
        %v3751 = vmul.f32 %v3684, %v3736
        %v3752 = vmul.f32 %v3687, %v3736
        %v3753 = vmul.f32 %v3690, %v3736
        %v3754 = vmul.f32 %v3693, %v3736
        %v3755 = vmul.f32 %v3696, %v3736
        %v3756 = vmul.f32 %v3699, %v3736
        %v3757 = vmul.f32 %v3702, %v3736
        %v3758 = vmul.f32 %v3705, %v3736
        %v3759 = vmul.f32 %v3708, %v3736
        %v3760 = vmul.f32 %v3711, %v3736
        %v3761 = vmul.f32 %v3714, %v3736
        %v3762 = vmul.f32 %v3717, %v3736
        %v3763 = vmul.f32 %v3720, %v3736
        %v3764 = vmul.f32 %v3723, %v3736
        %v3765 = vmul.f32 %v3726, %v3736
        %v3766 = vmul.f32 %v3729, %v3736
        %v3767 = vmul.f32 %v3732, %v3736
        %v3768 = vmul.f32 %v3735, %v3736
        %v3769 = vsub.f32 %v3608, %v3737
        %v3770 = vsub.f32 %v3609, %v3738
        %v3771 = vsub.f32 %v3610, %v3739
        %v3772 = vsub.f32 %v3611, %v3740
        %v3773 = vsub.f32 %v3612, %v3741
        %v3774 = vsub.f32 %v3613, %v3742
        %v3775 = vsub.f32 %v3614, %v3743
        %v3776 = vsub.f32 %v3615, %v3744
        %v3777 = vsub.f32 %v3616, %v3745
        %v3778 = vsub.f32 %v3617, %v3746
        %v3779 = vsub.f32 %v3618, %v3747
        %v3780 = vsub.f32 %v3619, %v3748
        %v3781 = vsub.f32 %v3620, %v3749
        %v3782 = vsub.f32 %v3621, %v3750
        %v3783 = vsub.f32 %v3622, %v3751
        %v3784 = vsub.f32 %v3623, %v3752
        %v3785 = vsub.f32 %v3624, %v3753
        %v3786 = vsub.f32 %v3625, %v3754
        %v3787 = vsub.f32 %v3626, %v3755
        %v3788 = vsub.f32 %v3627, %v3756
        %v3789 = vsub.f32 %v3628, %v3757
        %v3790 = vsub.f32 %v3629, %v3758
        %v3791 = vsub.f32 %v3630, %v3759
        %v3792 = vsub.f32 %v3631, %v3760
        %v3793 = vsub.f32 %v3632, %v3761
        %v3794 = vsub.f32 %v3633, %v3762
        %v3795 = vsub.f32 %v3634, %v3763
        %v3796 = vsub.f32 %v3635, %v3764
        %v3797 = vsub.f32 %v3636, %v3765
        %v3798 = vsub.f32 %v3637, %v3766
        %v3799 = vsub.f32 %v3638, %v3767
        %v3800 = vsub.f32 %v3639, %v3768
        %v3801 = vmul.f32 %v3769, %v3769
        %v3802 = vmul.f32 %v3770, %v3770
        %v3803 = vmul.f32 %v3771, %v3771
        %v3804 = vmul.f32 %v3772, %v3772
        %v3805 = vmul.f32 %v3773, %v3773
        %v3806 = vmul.f32 %v3774, %v3774
        %v3807 = vmul.f32 %v3775, %v3775
        %v3808 = vmul.f32 %v3776, %v3776
        %v3809 = vmul.f32 %v3777, %v3777
        %v3810 = vmul.f32 %v3778, %v3778
        %v3811 = vmul.f32 %v3779, %v3779
        %v3812 = vmul.f32 %v3780, %v3780
        %v3813 = vmul.f32 %v3781, %v3781
        %v3814 = vmul.f32 %v3782, %v3782
        %v3815 = vmul.f32 %v3783, %v3783
        %v3816 = vmul.f32 %v3784, %v3784
        %v3817 = vmul.f32 %v3785, %v3785
        %v3818 = vmul.f32 %v3786, %v3786
        %v3819 = vmul.f32 %v3787, %v3787
        %v3820 = vmul.f32 %v3788, %v3788
        %v3821 = vmul.f32 %v3789, %v3789
        %v3822 = vmul.f32 %v3790, %v3790
        %v3823 = vmul.f32 %v3791, %v3791
        %v3824 = vmul.f32 %v3792, %v3792
        %v3825 = vmul.f32 %v3793, %v3793
        %v3826 = vmul.f32 %v3794, %v3794
        %v3827 = vmul.f32 %v3795, %v3795
        %v3828 = vmul.f32 %v3796, %v3796
        %v3829 = vmul.f32 %v3797, %v3797
        %v3830 = vmul.f32 %v3798, %v3798
        %v3831 = vmul.f32 %v3799, %v3799
        %v3832 = vmul.f32 %v3800, %v3800
        %v3833 = vsel %vm298, %v3801, 0.0
        %3834 = vadd.xlane.f32.xlu0 %v3833
        %v3835 = vpop.xlane.xlu0 %3834
        %v3836 = vsel %vm298, %v3802, 0.0
        %3837 = vadd.xlane.f32.xlu0 %v3836
        %v3838 = vpop.xlane.xlu0 %3837
        %v3839 = vsel %vm298, %v3803, 0.0
        %3840 = vadd.xlane.f32.xlu0 %v3839
        %v3841 = vpop.xlane.xlu0 %3840
        %v3842 = vsel %vm298, %v3804, 0.0
        %3843 = vadd.xlane.f32.xlu0 %v3842
        %v3844 = vpop.xlane.xlu0 %3843
        %v3845 = vsel %vm298, %v3805, 0.0
        %3846 = vadd.xlane.f32.xlu0 %v3845
        %v3847 = vpop.xlane.xlu0 %3846
        %v3848 = vsel %vm298, %v3806, 0.0
        %3849 = vadd.xlane.f32.xlu0 %v3848
        %v3850 = vpop.xlane.xlu0 %3849
        %v3851 = vsel %vm298, %v3807, 0.0
        %3852 = vadd.xlane.f32.xlu0 %v3851
        %v3853 = vpop.xlane.xlu0 %3852
        %v3854 = vsel %vm298, %v3808, 0.0
        %3855 = vadd.xlane.f32.xlu0 %v3854
        %v3856 = vpop.xlane.xlu0 %3855
        %v3857 = vsel %vm298, %v3809, 0.0
        %3858 = vadd.xlane.f32.xlu0 %v3857
        %v3859 = vpop.xlane.xlu0 %3858
        %v3860 = vsel %vm298, %v3810, 0.0
        %3861 = vadd.xlane.f32.xlu0 %v3860
        %v3862 = vpop.xlane.xlu0 %3861
        %v3863 = vsel %vm298, %v3811, 0.0
        %3864 = vadd.xlane.f32.xlu0 %v3863
        %v3865 = vpop.xlane.xlu0 %3864
        %v3866 = vsel %vm298, %v3812, 0.0
        %3867 = vadd.xlane.f32.xlu0 %v3866
        %v3868 = vpop.xlane.xlu0 %3867
        %v3869 = vsel %vm298, %v3813, 0.0
        %3870 = vadd.xlane.f32.xlu0 %v3869
        %v3871 = vpop.xlane.xlu0 %3870
        %v3872 = vsel %vm298, %v3814, 0.0
        %3873 = vadd.xlane.f32.xlu0 %v3872
        %v3874 = vpop.xlane.xlu0 %3873
        %v3875 = vsel %vm298, %v3815, 0.0
        %3876 = vadd.xlane.f32.xlu0 %v3875
        %v3877 = vpop.xlane.xlu0 %3876
        %v3878 = vsel %vm298, %v3816, 0.0
        %3879 = vadd.xlane.f32.xlu0 %v3878
        %v3880 = vpop.xlane.xlu0 %3879
        %v3881 = vsel %vm298, %v3817, 0.0
        %3882 = vadd.xlane.f32.xlu0 %v3881
        %v3883 = vpop.xlane.xlu0 %3882
        %v3884 = vsel %vm298, %v3818, 0.0
        %3885 = vadd.xlane.f32.xlu0 %v3884
        %v3886 = vpop.xlane.xlu0 %3885
        %v3887 = vsel %vm298, %v3819, 0.0
        %3888 = vadd.xlane.f32.xlu0 %v3887
        %v3889 = vpop.xlane.xlu0 %3888
        %v3890 = vsel %vm298, %v3820, 0.0
        %3891 = vadd.xlane.f32.xlu0 %v3890
        %v3892 = vpop.xlane.xlu0 %3891
        %v3893 = vsel %vm298, %v3821, 0.0
        %3894 = vadd.xlane.f32.xlu0 %v3893
        %v3895 = vpop.xlane.xlu0 %3894
        %v3896 = vsel %vm298, %v3822, 0.0
        %3897 = vadd.xlane.f32.xlu0 %v3896
        %v3898 = vpop.xlane.xlu0 %3897
        %v3899 = vsel %vm298, %v3823, 0.0
        %3900 = vadd.xlane.f32.xlu0 %v3899
        %v3901 = vpop.xlane.xlu0 %3900
        %v3902 = vsel %vm298, %v3824, 0.0
        %3903 = vadd.xlane.f32.xlu0 %v3902
        %v3904 = vpop.xlane.xlu0 %3903
        %v3905 = vsel %vm298, %v3825, 0.0
        %3906 = vadd.xlane.f32.xlu0 %v3905
        %v3907 = vpop.xlane.xlu0 %3906
        %v3908 = vsel %vm298, %v3826, 0.0
        %3909 = vadd.xlane.f32.xlu0 %v3908
        %v3910 = vpop.xlane.xlu0 %3909
        %v3911 = vsel %vm298, %v3827, 0.0
        %3912 = vadd.xlane.f32.xlu0 %v3911
        %v3913 = vpop.xlane.xlu0 %3912
        %v3914 = vsel %vm298, %v3828, 0.0
        %3915 = vadd.xlane.f32.xlu0 %v3914
        %v3916 = vpop.xlane.xlu0 %3915
        %v3917 = vsel %vm298, %v3829, 0.0
        %3918 = vadd.xlane.f32.xlu0 %v3917
        %v3919 = vpop.xlane.xlu0 %3918
        %v3920 = vsel %vm298, %v3830, 0.0
        %3921 = vadd.xlane.f32.xlu0 %v3920
        %v3922 = vpop.xlane.xlu0 %3921
        %v3923 = vsel %vm298, %v3831, 0.0
        %3924 = vadd.xlane.f32.xlu0 %v3923
        %v3925 = vpop.xlane.xlu0 %3924
        %v3926 = vsel %vm298, %v3832, 0.0
        %3927 = vadd.xlane.f32.xlu0 %v3926
        %v3928 = vpop.xlane.xlu0 %3927
        %v3929 = vmul.f32 %v3835, %v3736
        %v3930 = vmul.f32 %v3838, %v3736
        %v3931 = vmul.f32 %v3841, %v3736
        %v3932 = vmul.f32 %v3844, %v3736
        %v3933 = vmul.f32 %v3847, %v3736
        %v3934 = vmul.f32 %v3850, %v3736
        %v3935 = vmul.f32 %v3853, %v3736
        %v3936 = vmul.f32 %v3856, %v3736
        %v3937 = vmul.f32 %v3859, %v3736
        %v3938 = vmul.f32 %v3862, %v3736
        %v3939 = vmul.f32 %v3865, %v3736
        %v3940 = vmul.f32 %v3868, %v3736
        %v3941 = vmul.f32 %v3871, %v3736
        %v3942 = vmul.f32 %v3874, %v3736
        %v3943 = vmul.f32 %v3877, %v3736
        %v3944 = vmul.f32 %v3880, %v3736
        %v3945 = vmul.f32 %v3883, %v3736
        %v3946 = vmul.f32 %v3886, %v3736
        %v3947 = vmul.f32 %v3889, %v3736
        %v3948 = vmul.f32 %v3892, %v3736
        %v3949 = vmul.f32 %v3895, %v3736
        %v3950 = vmul.f32 %v3898, %v3736
        %v3951 = vmul.f32 %v3901, %v3736
        %v3952 = vmul.f32 %v3904, %v3736
        %v3953 = vmul.f32 %v3907, %v3736
        %v3954 = vmul.f32 %v3910, %v3736
        %v3955 = vmul.f32 %v3913, %v3736
        %v3956 = vmul.f32 %v3916, %v3736
        %v3957 = vmul.f32 %v3919, %v3736
        %v3958 = vmul.f32 %v3922, %v3736
        %v3959 = vmul.f32 %v3925, %v3736
        %v3960 = vmul.f32 %v3928, %v3736
        %v3961 = vadd.f32 %v3929, 1e-05
        %v3962 = vadd.f32 %v3930, 1e-05
        %v3963 = vadd.f32 %v3931, 1e-05
        %v3964 = vadd.f32 %v3932, 1e-05
        %v3965 = vadd.f32 %v3933, 1e-05
        %v3966 = vadd.f32 %v3934, 1e-05
        %v3967 = vadd.f32 %v3935, 1e-05
        %v3968 = vadd.f32 %v3936, 1e-05
        %v3969 = vadd.f32 %v3937, 1e-05
        %v3970 = vadd.f32 %v3938, 1e-05
        %v3971 = vadd.f32 %v3939, 1e-05
        %v3972 = vadd.f32 %v3940, 1e-05
        %v3973 = vadd.f32 %v3941, 1e-05
        %v3974 = vadd.f32 %v3942, 1e-05
        %v3975 = vadd.f32 %v3943, 1e-05
        %v3976 = vadd.f32 %v3944, 1e-05
        %v3977 = vadd.f32 %v3945, 1e-05
        %v3978 = vadd.f32 %v3946, 1e-05
        %v3979 = vadd.f32 %v3947, 1e-05
        %v3980 = vadd.f32 %v3948, 1e-05
        %v3981 = vadd.f32 %v3949, 1e-05
        %v3982 = vadd.f32 %v3950, 1e-05
        %v3983 = vadd.f32 %v3951, 1e-05
        %v3984 = vadd.f32 %v3952, 1e-05
        %v3985 = vadd.f32 %v3953, 1e-05
        %v3986 = vadd.f32 %v3954, 1e-05
        %v3987 = vadd.f32 %v3955, 1e-05
        %v3988 = vadd.f32 %v3956, 1e-05
        %v3989 = vadd.f32 %v3957, 1e-05
        %v3990 = vadd.f32 %v3958, 1e-05
        %v3991 = vadd.f32 %v3959, 1e-05
        %v3992 = vadd.f32 %v3960, 1e-05
        %v3993 = vrsqrt.pop %v3961
        %v3994 = vrsqrt.pop %v3962
        %v3995 = vrsqrt.pop %v3963
        %v3996 = vrsqrt.pop %v3964
        %v3997 = vrsqrt.pop %v3965
        %v3998 = vrsqrt.pop %v3966
        %v3999 = vrsqrt.pop %v3967
        %v4000 = vrsqrt.pop %v3968
        %v4001 = vrsqrt.pop %v3969
        %v4002 = vrsqrt.pop %v3970
        %v4003 = vrsqrt.pop %v3971
        %v4004 = vrsqrt.pop %v3972
        %v4005 = vrsqrt.pop %v3973
        %v4006 = vrsqrt.pop %v3974
        %v4007 = vrsqrt.pop %v3975
        %v4008 = vrsqrt.pop %v3976
        %v4009 = vrsqrt.pop %v3977
        %v4010 = vrsqrt.pop %v3978
        %v4011 = vrsqrt.pop %v3979
        %v4012 = vrsqrt.pop %v3980
        %v4013 = vrsqrt.pop %v3981
        %v4014 = vrsqrt.pop %v3982
        %v4015 = vrsqrt.pop %v3983
        %v4016 = vrsqrt.pop %v3984
        %v4017 = vrsqrt.pop %v3985
        %v4018 = vrsqrt.pop %v3986
        %v4019 = vrsqrt.pop %v3987
        %v4020 = vrsqrt.pop %v3988
        %v4021 = vrsqrt.pop %v3989
        %v4022 = vrsqrt.pop %v3990
        %v4023 = vrsqrt.pop %v3991
        %v4024 = vrsqrt.pop %v3992
        %v4025 = vmul.f32 %v3769, %v3993
        %v4026 = vmul.f32 %v3770, %v3994
        %v4027 = vmul.f32 %v3771, %v3995
        %v4028 = vmul.f32 %v3772, %v3996
        %v4029 = vmul.f32 %v3773, %v3997
        %v4030 = vmul.f32 %v3774, %v3998
        %v4031 = vmul.f32 %v3775, %v3999
        %v4032 = vmul.f32 %v3776, %v4000
        %v4033 = vmul.f32 %v3777, %v4001
        %v4034 = vmul.f32 %v3778, %v4002
        %v4035 = vmul.f32 %v3779, %v4003
        %v4036 = vmul.f32 %v3780, %v4004
        %v4037 = vmul.f32 %v3781, %v4005
        %v4038 = vmul.f32 %v3782, %v4006
        %v4039 = vmul.f32 %v3783, %v4007
        %v4040 = vmul.f32 %v3784, %v4008
        %v4041 = vmul.f32 %v3785, %v4009
        %v4042 = vmul.f32 %v3786, %v4010
        %v4043 = vmul.f32 %v3787, %v4011
        %v4044 = vmul.f32 %v3788, %v4012
        %v4045 = vmul.f32 %v3789, %v4013
        %v4046 = vmul.f32 %v3790, %v4014
        %v4047 = vmul.f32 %v3791, %v4015
        %v4048 = vmul.f32 %v3792, %v4016
        %v4049 = vmul.f32 %v3793, %v4017
        %v4050 = vmul.f32 %v3794, %v4018
        %v4051 = vmul.f32 %v3795, %v4019
        %v4052 = vmul.f32 %v3796, %v4020
        %v4053 = vmul.f32 %v3797, %v4021
        %v4054 = vmul.f32 %v3798, %v4022
        %v4055 = vmul.f32 %v3799, %v4023
        %v4056 = vmul.f32 %v3800, %v4024
        %v4057 = vld [vmem:[%s3 + $0xa] sm:$0x1]
        %v4059 = vlaneseq
        %v4060 = vshrl.u32 %v4059, 7
        %v4061 = vsub.s32 0, %v4060
        %v4062 = vrot.slane %v4057, %v4061
        %v4064 = vmul.f32 %v4025, %v4062
        %v4065 = vmul.f32 %v4026, %v4062
        %v4066 = vmul.f32 %v4027, %v4062
        %v4067 = vmul.f32 %v4028, %v4062
        %v4068 = vmul.f32 %v4029, %v4062
        %v4069 = vmul.f32 %v4030, %v4062
        %v4070 = vmul.f32 %v4031, %v4062
        %v4071 = vmul.f32 %v4032, %v4062
        %v4072 = vmul.f32 %v4033, %v4062
        %v4073 = vmul.f32 %v4034, %v4062
        %v4074 = vmul.f32 %v4035, %v4062
        %v4075 = vmul.f32 %v4036, %v4062
        %v4076 = vmul.f32 %v4037, %v4062
        %v4077 = vmul.f32 %v4038, %v4062
        %v4078 = vmul.f32 %v4039, %v4062
        %v4079 = vmul.f32 %v4040, %v4062
        %v4080 = vmul.f32 %v4041, %v4062
        %v4081 = vmul.f32 %v4042, %v4062
        %v4082 = vmul.f32 %v4043, %v4062
        %v4083 = vmul.f32 %v4044, %v4062
        %v4084 = vmul.f32 %v4045, %v4062
        %v4085 = vmul.f32 %v4046, %v4062
        %v4086 = vmul.f32 %v4047, %v4062
        %v4087 = vmul.f32 %v4048, %v4062
        %v4088 = vmul.f32 %v4049, %v4062
        %v4089 = vmul.f32 %v4050, %v4062
        %v4090 = vmul.f32 %v4051, %v4062
        %v4091 = vmul.f32 %v4052, %v4062
        %v4092 = vmul.f32 %v4053, %v4062
        %v4093 = vmul.f32 %v4054, %v4062
        %v4094 = vmul.f32 %v4055, %v4062
        %v4095 = vmul.f32 %v4056, %v4062
        %v4096 = vld [vmem:[%s3 + $0xb] sm:$0x1]
        %v4098 = vlaneseq
        %v4099 = vshrl.u32 %v4098, 7
        %v4100 = vsub.s32 0, %v4099
        %v4101 = vrot.slane %v4096, %v4100
        %v4103 = vadd.f32 %v4064, %v4101
        %v4104 = vadd.f32 %v4065, %v4101
        %v4105 = vadd.f32 %v4066, %v4101
        %v4106 = vadd.f32 %v4067, %v4101
        %v4107 = vadd.f32 %v4068, %v4101
        %v4108 = vadd.f32 %v4069, %v4101
        %v4109 = vadd.f32 %v4070, %v4101
        %v4110 = vadd.f32 %v4071, %v4101
        %v4111 = vadd.f32 %v4072, %v4101
        %v4112 = vadd.f32 %v4073, %v4101
        %v4113 = vadd.f32 %v4074, %v4101
        %v4114 = vadd.f32 %v4075, %v4101
        %v4115 = vadd.f32 %v4076, %v4101
        %v4116 = vadd.f32 %v4077, %v4101
        %v4117 = vadd.f32 %v4078, %v4101
        %v4118 = vadd.f32 %v4079, %v4101
        %v4119 = vadd.f32 %v4080, %v4101
        %v4120 = vadd.f32 %v4081, %v4101
        %v4121 = vadd.f32 %v4082, %v4101
        %v4122 = vadd.f32 %v4083, %v4101
        %v4123 = vadd.f32 %v4084, %v4101
        %v4124 = vadd.f32 %v4085, %v4101
        %v4125 = vadd.f32 %v4086, %v4101
        %v4126 = vadd.f32 %v4087, %v4101
        %v4127 = vadd.f32 %v4088, %v4101
        %v4128 = vadd.f32 %v4089, %v4101
        %v4129 = vadd.f32 %v4090, %v4101
        %v4130 = vadd.f32 %v4091, %v4101
        %v4131 = vadd.f32 %v4092, %v4101
        %v4132 = vadd.f32 %v4093, %v4101
        %v4133 = vadd.f32 %v4094, %v4101
        %v4134 = vadd.f32 %v4095, %v4101
        %v4135 = vpack.c.bf16 %v4104, %v4103
        %v4136 = vpack.c.bf16 %v4106, %v4105
        %v4137 = vpack.c.bf16 %v4108, %v4107
        %v4138 = vpack.c.bf16 %v4110, %v4109
        %v4139 = vpack.c.bf16 %v4112, %v4111
        %v4140 = vpack.c.bf16 %v4114, %v4113
        %v4141 = vpack.c.bf16 %v4116, %v4115
        %v4142 = vpack.c.bf16 %v4118, %v4117
        %v4143 = vpack.c.bf16 %v4120, %v4119
        %v4144 = vpack.c.bf16 %v4122, %v4121
        %v4145 = vpack.c.bf16 %v4124, %v4123
        %v4146 = vpack.c.bf16 %v4126, %v4125
        %v4147 = vpack.c.bf16 %v4128, %v4127
        %v4148 = vpack.c.bf16 %v4130, %v4129
        %v4149 = vpack.c.bf16 %v4132, %v4131
        %v4150 = vpack.c.bf16 %v4134, %v4133
        %v4151 = vld [vmem:[%s1 + $0x14] sm:$0xf]
        %v4152 = vld [vmem:[%s1 + $0x30] sm:$0xf]
        %v4153 = vld [vmem:[%s1 + $0x4c] sm:$0xf]
        %v4154 = vld [vmem:[%s1 + $0x68] sm:$0xf]
        %v4155 = vld [vmem:[%s3 + $0xc] sm:$0x1]
        %v4157 = vlaneseq
        %v4158 = vshrl.u32 %v4157, 7
        %v4159 = vsub.s32 0, %v4158
        %v4160 = vrot.slane %v4155, %v4159
        %v4166 = vunpack.c.l.b16 %v4151
        %v4167 = vunpack.c.l.b16 %v4152
        %v4168 = vunpack.c.l.b16 %v4153
        %v4169 = vunpack.c.l.b16 %v4154
        %v4170 = vpack.c.b16 %v4167, %v4166
        %v4171 = vpack.c.b16 %v4169, %v4168
        %v4175 = vsel %vm298, %v4135, 0
        %v4178 = vsel %vm298, %v4136, 0
        %v4181 = vsel %vm298, %v4137, 0
        %v4184 = vsel %vm298, %v4138, 0
        %v4187 = vsel %vm298, %v4139, 0
        %v4190 = vsel %vm298, %v4140, 0
        %v4193 = vsel %vm298, %v4141, 0
        %v4196 = vsel %vm298, %v4142, 0
        %v4199 = vsel %vm298, %v4143, 0
        %v4202 = vsel %vm298, %v4144, 0
        %v4205 = vsel %vm298, %v4145, 0
        %v4208 = vsel %vm298, %v4146, 0
        %v4211 = vsel %vm298, %v4147, 0
        %v4214 = vsel %vm298, %v4148, 0
        %v4217 = vsel %vm298, %v4149, 0
        %v4220 = vsel %vm298, %v4150, 0
        %4222 = vmatprep.subr.bf16.mxu0 0
        %4223 = vmatpush1.bf16.msra.mxu0 %v4170
        %4224 = vmatprep.subr.bf16.mxu0 0
        %4225 = vmatpush1.bf16.msra.mxu0 %v4171
        %4226 = vmatprep.subr.bf16.mxu0 0
        %4227 = vmatpush1.bf16.msra.mxu0 0
        %4228 = vmatprep.subr.bf16.mxu0 0
        %4229 = vmatpush1.bf16.msra.mxu0 0
        %4230 = vmatprep.subr.bf16.mxu0 0
        %4231 = vmatpush1.bf16.msra.mxu0 0
        %4232 = vmatprep.subr.bf16.mxu0 0
        %4233 = vmatpush1.bf16.msra.mxu0 0
        %4234 = vmatprep.subr.bf16.mxu0 0
        %4235 = vmatpush1.bf16.msra.mxu0 0
        %4236 = vmatprep.subr.bf16.mxu0 0
        %4237 = vmatpush1.bf16.msra.mxu0 0
        %4238 = vmatprep.subr.bf16.mxu0 0
        %4239 = vmatpush1.bf16.msra.mxu0 0
        %4240 = vmatprep.subr.bf16.mxu0 0
        %4241 = vmatpush1.bf16.msra.mxu0 0
        %4242 = vmatprep.subr.bf16.mxu0 0
        %4243 = vmatpush1.bf16.msra.mxu0 0
        %4244 = vmatprep.subr.bf16.mxu0 0
        %4245 = vmatpush1.bf16.msra.mxu0 0
        %4246 = vmatprep.subr.bf16.mxu0 0
        %4247 = vmatpush1.bf16.msra.mxu0 0
        %4248 = vmatprep.subr.bf16.mxu0 0
        %4249 = vmatpush1.bf16.msra.mxu0 0
        %4250 = vmatprep.subr.bf16.mxu0 0
        %4251 = vmatpush1.bf16.msra.mxu0 0
        %4252 = vmatprep.subr.bf16.mxu0 0
        %4253 = vmatpush1.bf16.msra.mxu0 0
        %4254 = vmatprep.mubr.bf16.mxu0 0
        %4255 = vmatmul.mubr.bf16.gmra.mrb[0].mxu0 %v4175
        %v4256 = vpop.f32.mrb[0].mxu0
        %v4257 = vadd.f32 %v4160, %v4256
        %v4258 = vpop.f32.mrb[0].mxu0
        %v4259 = vpop.f32.mrb[0].mxu0
        %v4260 = vadd.f32 %v4160, %v4259
        %v4261 = vpop.f32.mrb[0].mxu0
        %4262 = vmatprep.mubr.bf16.mxu0 0
        %4263 = vmatmul.mubr.bf16.gmra.mrb[0].mxu0 %v4178
        %v4264 = vpop.f32.mrb[0].mxu0
        %v4265 = vadd.f32 %v4160, %v4264
        %v4266 = vpop.f32.mrb[0].mxu0
        %v4267 = vpop.f32.mrb[0].mxu0
        %v4268 = vadd.f32 %v4160, %v4267
        %v4269 = vpop.f32.mrb[0].mxu0
        %4270 = vmatprep.mubr.bf16.mxu0 0
        %4271 = vmatmul.mubr.bf16.gmra.mrb[0].mxu0 %v4181
        %v4272 = vpop.f32.mrb[0].mxu0
        %v4273 = vadd.f32 %v4160, %v4272
        %v4274 = vpop.f32.mrb[0].mxu0
        %v4275 = vpop.f32.mrb[0].mxu0
        %v4276 = vadd.f32 %v4160, %v4275
        %v4277 = vpop.f32.mrb[0].mxu0
        %4278 = vmatprep.mubr.bf16.mxu0 0
        %4279 = vmatmul.mubr.bf16.gmra.mrb[0].mxu0 %v4184
        %v4280 = vpop.f32.mrb[0].mxu0
        %v4281 = vadd.f32 %v4160, %v4280
        %v4282 = vpop.f32.mrb[0].mxu0
        %v4283 = vpop.f32.mrb[0].mxu0
        %v4284 = vadd.f32 %v4160, %v4283
        %v4285 = vpop.f32.mrb[0].mxu0
        %4286 = vmatprep.mubr.bf16.mxu0 0
        %4287 = vmatmul.mubr.bf16.gmra.mrb[0].mxu0 %v4187
        %v4288 = vpop.f32.mrb[0].mxu0
        %v4289 = vadd.f32 %v4160, %v4288
        %v4290 = vpop.f32.mrb[0].mxu0
        %v4291 = vpop.f32.mrb[0].mxu0
        %v4292 = vadd.f32 %v4160, %v4291
        %v4293 = vpop.f32.mrb[0].mxu0
        %4294 = vmatprep.mubr.bf16.mxu0 0
        %4295 = vmatmul.mubr.bf16.gmra.mrb[0].mxu0 %v4190
        %v4296 = vpop.f32.mrb[0].mxu0
        %v4297 = vadd.f32 %v4160, %v4296
        %v4298 = vpop.f32.mrb[0].mxu0
        %v4299 = vpop.f32.mrb[0].mxu0
        %v4300 = vadd.f32 %v4160, %v4299
        %v4301 = vpop.f32.mrb[0].mxu0
        %4302 = vmatprep.mubr.bf16.mxu0 0
        %4303 = vmatmul.mubr.bf16.gmra.mrb[0].mxu0 %v4193
        %v4304 = vpop.f32.mrb[0].mxu0
        %v4305 = vadd.f32 %v4160, %v4304
        %v4306 = vpop.f32.mrb[0].mxu0
        %v4307 = vpop.f32.mrb[0].mxu0
        %v4308 = vadd.f32 %v4160, %v4307
        %v4309 = vpop.f32.mrb[0].mxu0
        %4310 = vmatprep.mubr.bf16.mxu0 0
        %4311 = vmatmul.mubr.bf16.gmra.mrb[0].mxu0 %v4196
        %v4312 = vpop.f32.mrb[0].mxu0
        %v4313 = vadd.f32 %v4160, %v4312
        %v4314 = vpop.f32.mrb[0].mxu0
        %v4315 = vpop.f32.mrb[0].mxu0
        %v4316 = vadd.f32 %v4160, %v4315
        %v4317 = vpop.f32.mrb[0].mxu0
        %4318 = vmatprep.mubr.bf16.mxu0 0
        %4319 = vmatmul.mubr.bf16.gmra.mrb[0].mxu0 %v4199
        %v4320 = vpop.f32.mrb[0].mxu0
        %v4321 = vadd.f32 %v4160, %v4320
        %v4322 = vpop.f32.mrb[0].mxu0
        %v4323 = vpop.f32.mrb[0].mxu0
        %v4324 = vadd.f32 %v4160, %v4323
        %v4325 = vpop.f32.mrb[0].mxu0
        %4326 = vmatprep.mubr.bf16.mxu0 0
        %4327 = vmatmul.mubr.bf16.gmra.mrb[0].mxu0 %v4202
        %v4328 = vpop.f32.mrb[0].mxu0
        %v4329 = vadd.f32 %v4160, %v4328
        %v4330 = vpop.f32.mrb[0].mxu0
        %v4331 = vpop.f32.mrb[0].mxu0
        %v4332 = vadd.f32 %v4160, %v4331
        %v4333 = vpop.f32.mrb[0].mxu0
        %4334 = vmatprep.mubr.bf16.mxu0 0
        %4335 = vmatmul.mubr.bf16.gmra.mrb[0].mxu0 %v4205
        %v4336 = vpop.f32.mrb[0].mxu0
        %v4337 = vadd.f32 %v4160, %v4336
        %v4338 = vpop.f32.mrb[0].mxu0
        %v4339 = vpop.f32.mrb[0].mxu0
        %v4340 = vadd.f32 %v4160, %v4339
        %v4341 = vpop.f32.mrb[0].mxu0
        %4342 = vmatprep.mubr.bf16.mxu0 0
        %4343 = vmatmul.mubr.bf16.gmra.mrb[0].mxu0 %v4208
        %v4344 = vpop.f32.mrb[0].mxu0
        %v4345 = vadd.f32 %v4160, %v4344
        %v4346 = vpop.f32.mrb[0].mxu0
        %v4347 = vpop.f32.mrb[0].mxu0
        %v4348 = vadd.f32 %v4160, %v4347
        %v4349 = vpop.f32.mrb[0].mxu0
        %4350 = vmatprep.mubr.bf16.mxu0 0
        %4351 = vmatmul.mubr.bf16.gmra.mrb[0].mxu0 %v4211
        %v4352 = vpop.f32.mrb[0].mxu0
        %v4353 = vadd.f32 %v4160, %v4352
        %v4354 = vpop.f32.mrb[0].mxu0
        %v4355 = vpop.f32.mrb[0].mxu0
        %v4356 = vadd.f32 %v4160, %v4355
        %v4357 = vpop.f32.mrb[0].mxu0
        %4358 = vmatprep.mubr.bf16.mxu0 0
        %4359 = vmatmul.mubr.bf16.gmra.mrb[0].mxu0 %v4214
        %v4360 = vpop.f32.mrb[0].mxu0
        %v4361 = vadd.f32 %v4160, %v4360
        %v4362 = vpop.f32.mrb[0].mxu0
        %v4363 = vpop.f32.mrb[0].mxu0
        %v4364 = vadd.f32 %v4160, %v4363
        %v4365 = vpop.f32.mrb[0].mxu0
        %4366 = vmatprep.mubr.bf16.mxu0 0
        %4367 = vmatmul.mubr.bf16.gmra.mrb[0].mxu0 %v4217
        %v4368 = vpop.f32.mrb[0].mxu0
        %v4369 = vadd.f32 %v4160, %v4368
        %v4370 = vpop.f32.mrb[0].mxu0
        %v4371 = vpop.f32.mrb[0].mxu0
        %v4372 = vadd.f32 %v4160, %v4371
        %v4373 = vpop.f32.mrb[0].mxu0
        %4374 = vmatprep.mubr.bf16.mxu0 0
        %4375 = vmatmul.mubr.bf16.gmra.mrb[0].mxu0 %v4220
        %v4376 = vpop.f32.mrb[0].mxu0
        %v4377 = vadd.f32 %v4160, %v4376
        %v4378 = vpop.f32.mrb[0].mxu0
        %v4379 = vpop.f32.mrb[0].mxu0
        %v4380 = vadd.f32 %v4160, %v4379
        %v4381 = vpop.f32.mrb[0].mxu0
        %4382 = vdwg.mxu0
        %v4383 = vmax.f32 %v4257, 0.0
        %v4384 = vmax.f32 %v4260, 0.0
        %v4385 = vmax.f32 %v4265, 0.0
        %v4386 = vmax.f32 %v4268, 0.0
        %v4387 = vmax.f32 %v4273, 0.0
        %v4388 = vmax.f32 %v4276, 0.0
        %v4389 = vmax.f32 %v4281, 0.0
        %v4390 = vmax.f32 %v4284, 0.0
        %v4391 = vmax.f32 %v4289, 0.0
        %v4392 = vmax.f32 %v4292, 0.0
        %v4393 = vmax.f32 %v4297, 0.0
        %v4394 = vmax.f32 %v4300, 0.0
        %v4395 = vmax.f32 %v4305, 0.0
        %v4396 = vmax.f32 %v4308, 0.0
        %v4397 = vmax.f32 %v4313, 0.0
        %v4398 = vmax.f32 %v4316, 0.0
        %v4399 = vmax.f32 %v4321, 0.0
        %v4400 = vmax.f32 %v4324, 0.0
        %v4401 = vmax.f32 %v4329, 0.0
        %v4402 = vmax.f32 %v4332, 0.0
        %v4403 = vmax.f32 %v4337, 0.0
        %v4404 = vmax.f32 %v4340, 0.0
        %v4405 = vmax.f32 %v4345, 0.0
        %v4406 = vmax.f32 %v4348, 0.0
        %v4407 = vmax.f32 %v4353, 0.0
        %v4408 = vmax.f32 %v4356, 0.0
        %v4409 = vmax.f32 %v4361, 0.0
        %v4410 = vmax.f32 %v4364, 0.0
        %v4411 = vmax.f32 %v4369, 0.0
        %v4412 = vmax.f32 %v4372, 0.0
        %v4413 = vmax.f32 %v4377, 0.0
        %v4414 = vmax.f32 %v4380, 0.0
        %v4415 = vpack.c.bf16 %v4384, %v4383
        %v4416 = vpack.c.bf16 %v4386, %v4385
        %v4417 = vpack.c.bf16 %v4388, %v4387
        %v4418 = vpack.c.bf16 %v4390, %v4389
        %v4419 = vpack.c.bf16 %v4392, %v4391
        %v4420 = vpack.c.bf16 %v4394, %v4393
        %v4421 = vpack.c.bf16 %v4396, %v4395
        %v4422 = vpack.c.bf16 %v4398, %v4397
        %v4423 = vpack.c.bf16 %v4400, %v4399
        %v4424 = vpack.c.bf16 %v4402, %v4401
        %v4425 = vpack.c.bf16 %v4404, %v4403
        %v4426 = vpack.c.bf16 %v4406, %v4405
        %v4427 = vpack.c.bf16 %v4408, %v4407
        %v4428 = vpack.c.bf16 %v4410, %v4409
        %v4429 = vpack.c.bf16 %v4412, %v4411
        %v4430 = vpack.c.bf16 %v4414, %v4413
        %v4431 = vld [vmem:[%s1 + $0x18] sm:$0xf]
        %v4432 = vld [vmem:[%s1 + $0x34] sm:$0xf]
        %v4433 = vld [vmem:[%s1 + $0x50] sm:$0xf]
        %v4434 = vld [vmem:[%s1 + $0x6c] sm:$0xf]
        %v4435 = vld [vmem:[%s3 + $0xd] sm:$0x1]
        %v4437 = vlaneseq
        %v4438 = vshrl.u32 %v4437, 7
        %v4439 = vsub.s32 0, %v4438
        %v4440 = vrot.slane %v4435, %v4439
        %v4446 = vunpack.c.l.b16 %v4431
        %v4447 = vunpack.c.l.b16 %v4432
        %v4448 = vunpack.c.l.b16 %v4433
        %v4449 = vunpack.c.l.b16 %v4434
        %v4450 = vpack.c.b16 %v4447, %v4446
        %v4451 = vpack.c.b16 %v4449, %v4448
        %v4455 = vsel %vm298, %v4415, 0
        %v4458 = vsel %vm298, %v4416, 0
        %v4461 = vsel %vm298, %v4417, 0
        %v4464 = vsel %vm298, %v4418, 0
        %v4467 = vsel %vm298, %v4419, 0
        %v4470 = vsel %vm298, %v4420, 0
        %v4473 = vsel %vm298, %v4421, 0
        %v4476 = vsel %vm298, %v4422, 0
        %v4479 = vsel %vm298, %v4423, 0
        %v4482 = vsel %vm298, %v4424, 0
        %v4485 = vsel %vm298, %v4425, 0
        %v4488 = vsel %vm298, %v4426, 0
        %v4491 = vsel %vm298, %v4427, 0
        %v4494 = vsel %vm298, %v4428, 0
        %v4497 = vsel %vm298, %v4429, 0
        %v4500 = vsel %vm298, %v4430, 0
        %4502 = vmatprep.subr.bf16.mxu0 0
        %4503 = vmatpush1.bf16.msra.mxu0 %v4450
        %4504 = vmatprep.subr.bf16.mxu0 0
        %4505 = vmatpush1.bf16.msra.mxu0 %v4451
        %4506 = vmatprep.subr.bf16.mxu0 0
        %4507 = vmatpush1.bf16.msra.mxu0 0
        %4508 = vmatprep.subr.bf16.mxu0 0
        %4509 = vmatpush1.bf16.msra.mxu0 0
        %4510 = vmatprep.subr.bf16.mxu0 0
        %4511 = vmatpush1.bf16.msra.mxu0 0
        %4512 = vmatprep.subr.bf16.mxu0 0
        %4513 = vmatpush1.bf16.msra.mxu0 0
        %4514 = vmatprep.subr.bf16.mxu0 0
        %4515 = vmatpush1.bf16.msra.mxu0 0
        %4516 = vmatprep.subr.bf16.mxu0 0
        %4517 = vmatpush1.bf16.msra.mxu0 0
        %4518 = vmatprep.subr.bf16.mxu0 0
        %4519 = vmatpush1.bf16.msra.mxu0 0
        %4520 = vmatprep.subr.bf16.mxu0 0
        %4521 = vmatpush1.bf16.msra.mxu0 0
        %4522 = vmatprep.subr.bf16.mxu0 0
        %4523 = vmatpush1.bf16.msra.mxu0 0
        %4524 = vmatprep.subr.bf16.mxu0 0
        %4525 = vmatpush1.bf16.msra.mxu0 0
        %4526 = vmatprep.subr.bf16.mxu0 0
        %4527 = vmatpush1.bf16.msra.mxu0 0
        %4528 = vmatprep.subr.bf16.mxu0 0
        %4529 = vmatpush1.bf16.msra.mxu0 0
        %4530 = vmatprep.subr.bf16.mxu0 0
        %4531 = vmatpush1.bf16.msra.mxu0 0
        %4532 = vmatprep.subr.bf16.mxu0 0
        %4533 = vmatpush1.bf16.msra.mxu0 0
        %4534 = vmatprep.mubr.bf16.mxu0 0
        %4535 = vmatmul.mubr.bf16.gmra.mrb[0].mxu0 %v4455
        %v4536 = vpop.f32.mrb[0].mxu0
        %v4537 = vadd.f32 %v4440, %v4536
        %v4538 = vpop.f32.mrb[0].mxu0
        %v4539 = vpop.f32.mrb[0].mxu0
        %v4540 = vadd.f32 %v4440, %v4539
        %v4541 = vpop.f32.mrb[0].mxu0
        %4542 = vmatprep.mubr.bf16.mxu0 0
        %4543 = vmatmul.mubr.bf16.gmra.mrb[0].mxu0 %v4458
        %v4544 = vpop.f32.mrb[0].mxu0
        %v4545 = vadd.f32 %v4440, %v4544
        %v4546 = vpop.f32.mrb[0].mxu0
        %v4547 = vpop.f32.mrb[0].mxu0
        %v4548 = vadd.f32 %v4440, %v4547
        %v4549 = vpop.f32.mrb[0].mxu0
        %4550 = vmatprep.mubr.bf16.mxu0 0
        %4551 = vmatmul.mubr.bf16.gmra.mrb[0].mxu0 %v4461
        %v4552 = vpop.f32.mrb[0].mxu0
        %v4553 = vadd.f32 %v4440, %v4552
        %v4554 = vpop.f32.mrb[0].mxu0
        %v4555 = vpop.f32.mrb[0].mxu0
        %v4556 = vadd.f32 %v4440, %v4555
        %v4557 = vpop.f32.mrb[0].mxu0
        %4558 = vmatprep.mubr.bf16.mxu0 0
        %4559 = vmatmul.mubr.bf16.gmra.mrb[0].mxu0 %v4464
        %v4560 = vpop.f32.mrb[0].mxu0
        %v4561 = vadd.f32 %v4440, %v4560
        %v4562 = vpop.f32.mrb[0].mxu0
        %v4563 = vpop.f32.mrb[0].mxu0
        %v4564 = vadd.f32 %v4440, %v4563
        %v4565 = vpop.f32.mrb[0].mxu0
        %4566 = vmatprep.mubr.bf16.mxu0 0
        %4567 = vmatmul.mubr.bf16.gmra.mrb[0].mxu0 %v4467
        %v4568 = vpop.f32.mrb[0].mxu0
        %v4569 = vadd.f32 %v4440, %v4568
        %v4570 = vpop.f32.mrb[0].mxu0
        %v4571 = vpop.f32.mrb[0].mxu0
        %v4572 = vadd.f32 %v4440, %v4571
        %v4573 = vpop.f32.mrb[0].mxu0
        %4574 = vmatprep.mubr.bf16.mxu0 0
        %4575 = vmatmul.mubr.bf16.gmra.mrb[0].mxu0 %v4470
        %v4576 = vpop.f32.mrb[0].mxu0
        %v4577 = vadd.f32 %v4440, %v4576
        %v4578 = vpop.f32.mrb[0].mxu0
        %v4579 = vpop.f32.mrb[0].mxu0
        %v4580 = vadd.f32 %v4440, %v4579
        %v4581 = vpop.f32.mrb[0].mxu0
        %4582 = vmatprep.mubr.bf16.mxu0 0
        %4583 = vmatmul.mubr.bf16.gmra.mrb[0].mxu0 %v4473
        %v4584 = vpop.f32.mrb[0].mxu0
        %v4585 = vadd.f32 %v4440, %v4584
        %v4586 = vpop.f32.mrb[0].mxu0
        %v4587 = vpop.f32.mrb[0].mxu0
        %v4588 = vadd.f32 %v4440, %v4587
        %v4589 = vpop.f32.mrb[0].mxu0
        %4590 = vmatprep.mubr.bf16.mxu0 0
        %4591 = vmatmul.mubr.bf16.gmra.mrb[0].mxu0 %v4476
        %v4592 = vpop.f32.mrb[0].mxu0
        %v4593 = vadd.f32 %v4440, %v4592
        %v4594 = vpop.f32.mrb[0].mxu0
        %v4595 = vpop.f32.mrb[0].mxu0
        %v4596 = vadd.f32 %v4440, %v4595
        %v4597 = vpop.f32.mrb[0].mxu0
        %4598 = vmatprep.mubr.bf16.mxu0 0
        %4599 = vmatmul.mubr.bf16.gmra.mrb[0].mxu0 %v4479
        %v4600 = vpop.f32.mrb[0].mxu0
        %v4601 = vadd.f32 %v4440, %v4600
        %v4602 = vpop.f32.mrb[0].mxu0
        %v4603 = vpop.f32.mrb[0].mxu0
        %v4604 = vadd.f32 %v4440, %v4603
        %v4605 = vpop.f32.mrb[0].mxu0
        %4606 = vmatprep.mubr.bf16.mxu0 0
        %4607 = vmatmul.mubr.bf16.gmra.mrb[0].mxu0 %v4482
        %v4608 = vpop.f32.mrb[0].mxu0
        %v4609 = vadd.f32 %v4440, %v4608
        %v4610 = vpop.f32.mrb[0].mxu0
        %v4611 = vpop.f32.mrb[0].mxu0
        %v4612 = vadd.f32 %v4440, %v4611
        %v4613 = vpop.f32.mrb[0].mxu0
        %4614 = vmatprep.mubr.bf16.mxu0 0
        %4615 = vmatmul.mubr.bf16.gmra.mrb[0].mxu0 %v4485
        %v4616 = vpop.f32.mrb[0].mxu0
        %v4617 = vadd.f32 %v4440, %v4616
        %v4618 = vpop.f32.mrb[0].mxu0
        %v4619 = vpop.f32.mrb[0].mxu0
        %v4620 = vadd.f32 %v4440, %v4619
        %v4621 = vpop.f32.mrb[0].mxu0
        %4622 = vmatprep.mubr.bf16.mxu0 0
        %4623 = vmatmul.mubr.bf16.gmra.mrb[0].mxu0 %v4488
        %v4624 = vpop.f32.mrb[0].mxu0
        %v4625 = vadd.f32 %v4440, %v4624
        %v4626 = vpop.f32.mrb[0].mxu0
        %v4627 = vpop.f32.mrb[0].mxu0
        %v4628 = vadd.f32 %v4440, %v4627
        %v4629 = vpop.f32.mrb[0].mxu0
        %4630 = vmatprep.mubr.bf16.mxu0 0
        %4631 = vmatmul.mubr.bf16.gmra.mrb[0].mxu0 %v4491
        %v4632 = vpop.f32.mrb[0].mxu0
        %v4633 = vadd.f32 %v4440, %v4632
        %v4634 = vpop.f32.mrb[0].mxu0
        %v4635 = vpop.f32.mrb[0].mxu0
        %v4636 = vadd.f32 %v4440, %v4635
        %v4637 = vpop.f32.mrb[0].mxu0
        %4638 = vmatprep.mubr.bf16.mxu0 0
        %4639 = vmatmul.mubr.bf16.gmra.mrb[0].mxu0 %v4494
        %v4640 = vpop.f32.mrb[0].mxu0
        %v4641 = vadd.f32 %v4440, %v4640
        %v4642 = vpop.f32.mrb[0].mxu0
        %v4643 = vpop.f32.mrb[0].mxu0
        %v4644 = vadd.f32 %v4440, %v4643
        %v4645 = vpop.f32.mrb[0].mxu0
        %4646 = vmatprep.mubr.bf16.mxu0 0
        %4647 = vmatmul.mubr.bf16.gmra.mrb[0].mxu0 %v4497
        %v4648 = vpop.f32.mrb[0].mxu0
        %v4649 = vadd.f32 %v4440, %v4648
        %v4650 = vpop.f32.mrb[0].mxu0
        %v4651 = vpop.f32.mrb[0].mxu0
        %v4652 = vadd.f32 %v4440, %v4651
        %v4653 = vpop.f32.mrb[0].mxu0
        %4654 = vmatprep.mubr.bf16.mxu0 0
        %4655 = vmatmul.mubr.bf16.gmra.mrb[0].mxu0 %v4500
        %v4656 = vpop.f32.mrb[0].mxu0
        %v4657 = vadd.f32 %v4440, %v4656
        %v4658 = vpop.f32.mrb[0].mxu0
        %v4659 = vpop.f32.mrb[0].mxu0
        %v4660 = vadd.f32 %v4440, %v4659
        %v4661 = vpop.f32.mrb[0].mxu0
        %4662 = vdwg.mxu0
        %v4663 = vadd.f32 %v4103, %v4537
        %v4664 = vadd.f32 %v4104, %v4540
        %v4665 = vadd.f32 %v4105, %v4545
        %v4666 = vadd.f32 %v4106, %v4548
        %v4667 = vadd.f32 %v4107, %v4553
        %v4668 = vadd.f32 %v4108, %v4556
        %v4669 = vadd.f32 %v4109, %v4561
        %v4670 = vadd.f32 %v4110, %v4564
        %v4671 = vadd.f32 %v4111, %v4569
        %v4672 = vadd.f32 %v4112, %v4572
        %v4673 = vadd.f32 %v4113, %v4577
        %v4674 = vadd.f32 %v4114, %v4580
        %v4675 = vadd.f32 %v4115, %v4585
        %v4676 = vadd.f32 %v4116, %v4588
        %v4677 = vadd.f32 %v4117, %v4593
        %v4678 = vadd.f32 %v4118, %v4596
        %v4679 = vadd.f32 %v4119, %v4601
        %v4680 = vadd.f32 %v4120, %v4604
        %v4681 = vadd.f32 %v4121, %v4609
        %v4682 = vadd.f32 %v4122, %v4612
        %v4683 = vadd.f32 %v4123, %v4617
        %v4684 = vadd.f32 %v4124, %v4620
        %v4685 = vadd.f32 %v4125, %v4625
        %v4686 = vadd.f32 %v4126, %v4628
        %v4687 = vadd.f32 %v4127, %v4633
        %v4688 = vadd.f32 %v4128, %v4636
        %v4689 = vadd.f32 %v4129, %v4641
        %v4690 = vadd.f32 %v4130, %v4644
        %v4691 = vadd.f32 %v4131, %v4649
        %v4692 = vadd.f32 %v4132, %v4652
        %v4693 = vadd.f32 %v4133, %v4657
        %v4694 = vadd.f32 %v4134, %v4660
        %v4695 = vsel %vm298, %v4663, 0.0
        %4696 = vadd.xlane.f32.xlu0 %v4695
        %v4697 = vpop.xlane.xlu0 %4696
        %v4698 = vsel %vm298, %v4664, 0.0
        %4699 = vadd.xlane.f32.xlu0 %v4698
        %v4700 = vpop.xlane.xlu0 %4699
        %v4701 = vsel %vm298, %v4665, 0.0
        %4702 = vadd.xlane.f32.xlu0 %v4701
        %v4703 = vpop.xlane.xlu0 %4702
        %v4704 = vsel %vm298, %v4666, 0.0
        %4705 = vadd.xlane.f32.xlu0 %v4704
        %v4706 = vpop.xlane.xlu0 %4705
        %v4707 = vsel %vm298, %v4667, 0.0
        %4708 = vadd.xlane.f32.xlu0 %v4707
        %v4709 = vpop.xlane.xlu0 %4708
        %v4710 = vsel %vm298, %v4668, 0.0
        %4711 = vadd.xlane.f32.xlu0 %v4710
        %v4712 = vpop.xlane.xlu0 %4711
        %v4713 = vsel %vm298, %v4669, 0.0
        %4714 = vadd.xlane.f32.xlu0 %v4713
        %v4715 = vpop.xlane.xlu0 %4714
        %v4716 = vsel %vm298, %v4670, 0.0
        %4717 = vadd.xlane.f32.xlu0 %v4716
        %v4718 = vpop.xlane.xlu0 %4717
        %v4719 = vsel %vm298, %v4671, 0.0
        %4720 = vadd.xlane.f32.xlu0 %v4719
        %v4721 = vpop.xlane.xlu0 %4720
        %v4722 = vsel %vm298, %v4672, 0.0
        %4723 = vadd.xlane.f32.xlu0 %v4722
        %v4724 = vpop.xlane.xlu0 %4723
        %v4725 = vsel %vm298, %v4673, 0.0
        %4726 = vadd.xlane.f32.xlu0 %v4725
        %v4727 = vpop.xlane.xlu0 %4726
        %v4728 = vsel %vm298, %v4674, 0.0
        %4729 = vadd.xlane.f32.xlu0 %v4728
        %v4730 = vpop.xlane.xlu0 %4729
        %v4731 = vsel %vm298, %v4675, 0.0
        %4732 = vadd.xlane.f32.xlu0 %v4731
        %v4733 = vpop.xlane.xlu0 %4732
        %v4734 = vsel %vm298, %v4676, 0.0
        %4735 = vadd.xlane.f32.xlu0 %v4734
        %v4736 = vpop.xlane.xlu0 %4735
        %v4737 = vsel %vm298, %v4677, 0.0
        %4738 = vadd.xlane.f32.xlu0 %v4737
        %v4739 = vpop.xlane.xlu0 %4738
        %v4740 = vsel %vm298, %v4678, 0.0
        %4741 = vadd.xlane.f32.xlu0 %v4740
        %v4742 = vpop.xlane.xlu0 %4741
        %v4743 = vsel %vm298, %v4679, 0.0
        %4744 = vadd.xlane.f32.xlu0 %v4743
        %v4745 = vpop.xlane.xlu0 %4744
        %v4746 = vsel %vm298, %v4680, 0.0
        %4747 = vadd.xlane.f32.xlu0 %v4746
        %v4748 = vpop.xlane.xlu0 %4747
        %v4749 = vsel %vm298, %v4681, 0.0
        %4750 = vadd.xlane.f32.xlu0 %v4749
        %v4751 = vpop.xlane.xlu0 %4750
        %v4752 = vsel %vm298, %v4682, 0.0
        %4753 = vadd.xlane.f32.xlu0 %v4752
        %v4754 = vpop.xlane.xlu0 %4753
        %v4755 = vsel %vm298, %v4683, 0.0
        %4756 = vadd.xlane.f32.xlu0 %v4755
        %v4757 = vpop.xlane.xlu0 %4756
        %v4758 = vsel %vm298, %v4684, 0.0
        %4759 = vadd.xlane.f32.xlu0 %v4758
        %v4760 = vpop.xlane.xlu0 %4759
        %v4761 = vsel %vm298, %v4685, 0.0
        %4762 = vadd.xlane.f32.xlu0 %v4761
        %v4763 = vpop.xlane.xlu0 %4762
        %v4764 = vsel %vm298, %v4686, 0.0
        %4765 = vadd.xlane.f32.xlu0 %v4764
        %v4766 = vpop.xlane.xlu0 %4765
        %v4767 = vsel %vm298, %v4687, 0.0
        %4768 = vadd.xlane.f32.xlu0 %v4767
        %v4769 = vpop.xlane.xlu0 %4768
        %v4770 = vsel %vm298, %v4688, 0.0
        %4771 = vadd.xlane.f32.xlu0 %v4770
        %v4772 = vpop.xlane.xlu0 %4771
        %v4773 = vsel %vm298, %v4689, 0.0
        %4774 = vadd.xlane.f32.xlu0 %v4773
        %v4775 = vpop.xlane.xlu0 %4774
        %v4776 = vsel %vm298, %v4690, 0.0
        %4777 = vadd.xlane.f32.xlu0 %v4776
        %v4778 = vpop.xlane.xlu0 %4777
        %v4779 = vsel %vm298, %v4691, 0.0
        %4780 = vadd.xlane.f32.xlu0 %v4779
        %v4781 = vpop.xlane.xlu0 %4780
        %v4782 = vsel %vm298, %v4692, 0.0
        %4783 = vadd.xlane.f32.xlu0 %v4782
        %v4784 = vpop.xlane.xlu0 %4783
        %v4785 = vsel %vm298, %v4693, 0.0
        %4786 = vadd.xlane.f32.xlu0 %v4785
        %v4787 = vpop.xlane.xlu0 %4786
        %v4788 = vsel %vm298, %v4694, 0.0
        %4789 = vadd.xlane.f32.xlu0 %v4788
        %v4790 = vpop.xlane.xlu0 %4789
        %v4791 = vmul.f32 %v4697, %v3736
        %v4792 = vmul.f32 %v4700, %v3736
        %v4793 = vmul.f32 %v4703, %v3736
        %v4794 = vmul.f32 %v4706, %v3736
        %v4795 = vmul.f32 %v4709, %v3736
        %v4796 = vmul.f32 %v4712, %v3736
        %v4797 = vmul.f32 %v4715, %v3736
        %v4798 = vmul.f32 %v4718, %v3736
        %v4799 = vmul.f32 %v4721, %v3736
        %v4800 = vmul.f32 %v4724, %v3736
        %v4801 = vmul.f32 %v4727, %v3736
        %v4802 = vmul.f32 %v4730, %v3736
        %v4803 = vmul.f32 %v4733, %v3736
        %v4804 = vmul.f32 %v4736, %v3736
        %v4805 = vmul.f32 %v4739, %v3736
        %v4806 = vmul.f32 %v4742, %v3736
        %v4807 = vmul.f32 %v4745, %v3736
        %v4808 = vmul.f32 %v4748, %v3736
        %v4809 = vmul.f32 %v4751, %v3736
        %v4810 = vmul.f32 %v4754, %v3736
        %v4811 = vmul.f32 %v4757, %v3736
        %v4812 = vmul.f32 %v4760, %v3736
        %v4813 = vmul.f32 %v4763, %v3736
        %v4814 = vmul.f32 %v4766, %v3736
        %v4815 = vmul.f32 %v4769, %v3736
        %v4816 = vmul.f32 %v4772, %v3736
        %v4817 = vmul.f32 %v4775, %v3736
        %v4818 = vmul.f32 %v4778, %v3736
        %v4819 = vmul.f32 %v4781, %v3736
        %v4820 = vmul.f32 %v4784, %v3736
        %v4821 = vmul.f32 %v4787, %v3736
        %v4822 = vmul.f32 %v4790, %v3736
        %v4823 = vsub.f32 %v4663, %v4791
        %v4824 = vsub.f32 %v4664, %v4792
        %v4825 = vsub.f32 %v4665, %v4793
        %v4826 = vsub.f32 %v4666, %v4794
        %v4827 = vsub.f32 %v4667, %v4795
        %v4828 = vsub.f32 %v4668, %v4796
        %v4829 = vsub.f32 %v4669, %v4797
        %v4830 = vsub.f32 %v4670, %v4798
        %v4831 = vsub.f32 %v4671, %v4799
        %v4832 = vsub.f32 %v4672, %v4800
        %v4833 = vsub.f32 %v4673, %v4801
        %v4834 = vsub.f32 %v4674, %v4802
        %v4835 = vsub.f32 %v4675, %v4803
        %v4836 = vsub.f32 %v4676, %v4804
        %v4837 = vsub.f32 %v4677, %v4805
        %v4838 = vsub.f32 %v4678, %v4806
        %v4839 = vsub.f32 %v4679, %v4807
        %v4840 = vsub.f32 %v4680, %v4808
        %v4841 = vsub.f32 %v4681, %v4809
        %v4842 = vsub.f32 %v4682, %v4810
        %v4843 = vsub.f32 %v4683, %v4811
        %v4844 = vsub.f32 %v4684, %v4812
        %v4845 = vsub.f32 %v4685, %v4813
        %v4846 = vsub.f32 %v4686, %v4814
        %v4847 = vsub.f32 %v4687, %v4815
        %v4848 = vsub.f32 %v4688, %v4816
        %v4849 = vsub.f32 %v4689, %v4817
        %v4850 = vsub.f32 %v4690, %v4818
        %v4851 = vsub.f32 %v4691, %v4819
        %v4852 = vsub.f32 %v4692, %v4820
        %v4853 = vsub.f32 %v4693, %v4821
        %v4854 = vsub.f32 %v4694, %v4822
        %v4855 = vmul.f32 %v4823, %v4823
        %v4856 = vmul.f32 %v4824, %v4824
        %v4857 = vmul.f32 %v4825, %v4825
        %v4858 = vmul.f32 %v4826, %v4826
        %v4859 = vmul.f32 %v4827, %v4827
        %v4860 = vmul.f32 %v4828, %v4828
        %v4861 = vmul.f32 %v4829, %v4829
        %v4862 = vmul.f32 %v4830, %v4830
        %v4863 = vmul.f32 %v4831, %v4831
        %v4864 = vmul.f32 %v4832, %v4832
        %v4865 = vmul.f32 %v4833, %v4833
        %v4866 = vmul.f32 %v4834, %v4834
        %v4867 = vmul.f32 %v4835, %v4835
        %v4868 = vmul.f32 %v4836, %v4836
        %v4869 = vmul.f32 %v4837, %v4837
        %v4870 = vmul.f32 %v4838, %v4838
        %v4871 = vmul.f32 %v4839, %v4839
        %v4872 = vmul.f32 %v4840, %v4840
        %v4873 = vmul.f32 %v4841, %v4841
        %v4874 = vmul.f32 %v4842, %v4842
        %v4875 = vmul.f32 %v4843, %v4843
        %v4876 = vmul.f32 %v4844, %v4844
        %v4877 = vmul.f32 %v4845, %v4845
        %v4878 = vmul.f32 %v4846, %v4846
        %v4879 = vmul.f32 %v4847, %v4847
        %v4880 = vmul.f32 %v4848, %v4848
        %v4881 = vmul.f32 %v4849, %v4849
        %v4882 = vmul.f32 %v4850, %v4850
        %v4883 = vmul.f32 %v4851, %v4851
        %v4884 = vmul.f32 %v4852, %v4852
        %v4885 = vmul.f32 %v4853, %v4853
        %v4886 = vmul.f32 %v4854, %v4854
        %v4887 = vsel %vm298, %v4855, 0.0
        %4888 = vadd.xlane.f32.xlu0 %v4887
        %v4889 = vpop.xlane.xlu0 %4888
        %v4890 = vsel %vm298, %v4856, 0.0
        %4891 = vadd.xlane.f32.xlu0 %v4890
        %v4892 = vpop.xlane.xlu0 %4891
        %v4893 = vsel %vm298, %v4857, 0.0
        %4894 = vadd.xlane.f32.xlu0 %v4893
        %v4895 = vpop.xlane.xlu0 %4894
        %v4896 = vsel %vm298, %v4858, 0.0
        %4897 = vadd.xlane.f32.xlu0 %v4896
        %v4898 = vpop.xlane.xlu0 %4897
        %v4899 = vsel %vm298, %v4859, 0.0
        %4900 = vadd.xlane.f32.xlu0 %v4899
        %v4901 = vpop.xlane.xlu0 %4900
        %v4902 = vsel %vm298, %v4860, 0.0
        %4903 = vadd.xlane.f32.xlu0 %v4902
        %v4904 = vpop.xlane.xlu0 %4903
        %v4905 = vsel %vm298, %v4861, 0.0
        %4906 = vadd.xlane.f32.xlu0 %v4905
        %v4907 = vpop.xlane.xlu0 %4906
        %v4908 = vsel %vm298, %v4862, 0.0
        %4909 = vadd.xlane.f32.xlu0 %v4908
        %v4910 = vpop.xlane.xlu0 %4909
        %v4911 = vsel %vm298, %v4863, 0.0
        %4912 = vadd.xlane.f32.xlu0 %v4911
        %v4913 = vpop.xlane.xlu0 %4912
        %v4914 = vsel %vm298, %v4864, 0.0
        %4915 = vadd.xlane.f32.xlu0 %v4914
        %v4916 = vpop.xlane.xlu0 %4915
        %v4917 = vsel %vm298, %v4865, 0.0
        %4918 = vadd.xlane.f32.xlu0 %v4917
        %v4919 = vpop.xlane.xlu0 %4918
        %v4920 = vsel %vm298, %v4866, 0.0
        %4921 = vadd.xlane.f32.xlu0 %v4920
        %v4922 = vpop.xlane.xlu0 %4921
        %v4923 = vsel %vm298, %v4867, 0.0
        %4924 = vadd.xlane.f32.xlu0 %v4923
        %v4925 = vpop.xlane.xlu0 %4924
        %v4926 = vsel %vm298, %v4868, 0.0
        %4927 = vadd.xlane.f32.xlu0 %v4926
        %v4928 = vpop.xlane.xlu0 %4927
        %v4929 = vsel %vm298, %v4869, 0.0
        %4930 = vadd.xlane.f32.xlu0 %v4929
        %v4931 = vpop.xlane.xlu0 %4930
        %v4932 = vsel %vm298, %v4870, 0.0
        %4933 = vadd.xlane.f32.xlu0 %v4932
        %v4934 = vpop.xlane.xlu0 %4933
        %v4935 = vsel %vm298, %v4871, 0.0
        %4936 = vadd.xlane.f32.xlu0 %v4935
        %v4937 = vpop.xlane.xlu0 %4936
        %v4938 = vsel %vm298, %v4872, 0.0
        %4939 = vadd.xlane.f32.xlu0 %v4938
        %v4940 = vpop.xlane.xlu0 %4939
        %v4941 = vsel %vm298, %v4873, 0.0
        %4942 = vadd.xlane.f32.xlu0 %v4941
        %v4943 = vpop.xlane.xlu0 %4942
        %v4944 = vsel %vm298, %v4874, 0.0
        %4945 = vadd.xlane.f32.xlu0 %v4944
        %v4946 = vpop.xlane.xlu0 %4945
        %v4947 = vsel %vm298, %v4875, 0.0
        %4948 = vadd.xlane.f32.xlu0 %v4947
        %v4949 = vpop.xlane.xlu0 %4948
        %v4950 = vsel %vm298, %v4876, 0.0
        %4951 = vadd.xlane.f32.xlu0 %v4950
        %v4952 = vpop.xlane.xlu0 %4951
        %v4953 = vsel %vm298, %v4877, 0.0
        %4954 = vadd.xlane.f32.xlu0 %v4953
        %v4955 = vpop.xlane.xlu0 %4954
        %v4956 = vsel %vm298, %v4878, 0.0
        %4957 = vadd.xlane.f32.xlu0 %v4956
        %v4958 = vpop.xlane.xlu0 %4957
        %v4959 = vsel %vm298, %v4879, 0.0
        %4960 = vadd.xlane.f32.xlu0 %v4959
        %v4961 = vpop.xlane.xlu0 %4960
        %v4962 = vsel %vm298, %v4880, 0.0
        %4963 = vadd.xlane.f32.xlu0 %v4962
        %v4964 = vpop.xlane.xlu0 %4963
        %v4965 = vsel %vm298, %v4881, 0.0
        %4966 = vadd.xlane.f32.xlu0 %v4965
        %v4967 = vpop.xlane.xlu0 %4966
        %v4968 = vsel %vm298, %v4882, 0.0
        %4969 = vadd.xlane.f32.xlu0 %v4968
        %v4970 = vpop.xlane.xlu0 %4969
        %v4971 = vsel %vm298, %v4883, 0.0
        %4972 = vadd.xlane.f32.xlu0 %v4971
        %v4973 = vpop.xlane.xlu0 %4972
        %v4974 = vsel %vm298, %v4884, 0.0
        %4975 = vadd.xlane.f32.xlu0 %v4974
        %v4976 = vpop.xlane.xlu0 %4975
        %v4977 = vsel %vm298, %v4885, 0.0
        %4978 = vadd.xlane.f32.xlu0 %v4977
        %v4979 = vpop.xlane.xlu0 %4978
        %v4980 = vsel %vm298, %v4886, 0.0
        %4981 = vadd.xlane.f32.xlu0 %v4980
        %v4982 = vpop.xlane.xlu0 %4981
        %v4983 = vmul.f32 %v4889, %v3736
        %v4984 = vmul.f32 %v4892, %v3736
        %v4985 = vmul.f32 %v4895, %v3736
        %v4986 = vmul.f32 %v4898, %v3736
        %v4987 = vmul.f32 %v4901, %v3736
        %v4988 = vmul.f32 %v4904, %v3736
        %v4989 = vmul.f32 %v4907, %v3736
        %v4990 = vmul.f32 %v4910, %v3736
        %v4991 = vmul.f32 %v4913, %v3736
        %v4992 = vmul.f32 %v4916, %v3736
        %v4993 = vmul.f32 %v4919, %v3736
        %v4994 = vmul.f32 %v4922, %v3736
        %v4995 = vmul.f32 %v4925, %v3736
        %v4996 = vmul.f32 %v4928, %v3736
        %v4997 = vmul.f32 %v4931, %v3736
        %v4998 = vmul.f32 %v4934, %v3736
        %v4999 = vmul.f32 %v4937, %v3736
        %v5000 = vmul.f32 %v4940, %v3736
        %v5001 = vmul.f32 %v4943, %v3736
        %v5002 = vmul.f32 %v4946, %v3736
        %v5003 = vmul.f32 %v4949, %v3736
        %v5004 = vmul.f32 %v4952, %v3736
        %v5005 = vmul.f32 %v4955, %v3736
        %v5006 = vmul.f32 %v4958, %v3736
        %v5007 = vmul.f32 %v4961, %v3736
        %v5008 = vmul.f32 %v4964, %v3736
        %v5009 = vmul.f32 %v4967, %v3736
        %v5010 = vmul.f32 %v4970, %v3736
        %v5011 = vmul.f32 %v4973, %v3736
        %v5012 = vmul.f32 %v4976, %v3736
        %v5013 = vmul.f32 %v4979, %v3736
        %v5014 = vmul.f32 %v4982, %v3736
        %v5015 = vadd.f32 %v4983, 1e-05
        %v5016 = vadd.f32 %v4984, 1e-05
        %v5017 = vadd.f32 %v4985, 1e-05
        %v5018 = vadd.f32 %v4986, 1e-05
        %v5019 = vadd.f32 %v4987, 1e-05
        %v5020 = vadd.f32 %v4988, 1e-05
        %v5021 = vadd.f32 %v4989, 1e-05
        %v5022 = vadd.f32 %v4990, 1e-05
        %v5023 = vadd.f32 %v4991, 1e-05
        %v5024 = vadd.f32 %v4992, 1e-05
        %v5025 = vadd.f32 %v4993, 1e-05
        %v5026 = vadd.f32 %v4994, 1e-05
        %v5027 = vadd.f32 %v4995, 1e-05
        %v5028 = vadd.f32 %v4996, 1e-05
        %v5029 = vadd.f32 %v4997, 1e-05
        %v5030 = vadd.f32 %v4998, 1e-05
        %v5031 = vadd.f32 %v4999, 1e-05
        %v5032 = vadd.f32 %v5000, 1e-05
        %v5033 = vadd.f32 %v5001, 1e-05
        %v5034 = vadd.f32 %v5002, 1e-05
        %v5035 = vadd.f32 %v5003, 1e-05
        %v5036 = vadd.f32 %v5004, 1e-05
        %v5037 = vadd.f32 %v5005, 1e-05
        %v5038 = vadd.f32 %v5006, 1e-05
        %v5039 = vadd.f32 %v5007, 1e-05
        %v5040 = vadd.f32 %v5008, 1e-05
        %v5041 = vadd.f32 %v5009, 1e-05
        %v5042 = vadd.f32 %v5010, 1e-05
        %v5043 = vadd.f32 %v5011, 1e-05
        %v5044 = vadd.f32 %v5012, 1e-05
        %v5045 = vadd.f32 %v5013, 1e-05
        %v5046 = vadd.f32 %v5014, 1e-05
        %v5047 = vrsqrt.pop %v5015
        %v5048 = vrsqrt.pop %v5016
        %v5049 = vrsqrt.pop %v5017
        %v5050 = vrsqrt.pop %v5018
        %v5051 = vrsqrt.pop %v5019
        %v5052 = vrsqrt.pop %v5020
        %v5053 = vrsqrt.pop %v5021
        %v5054 = vrsqrt.pop %v5022
        %v5055 = vrsqrt.pop %v5023
        %v5056 = vrsqrt.pop %v5024
        %v5057 = vrsqrt.pop %v5025
        %v5058 = vrsqrt.pop %v5026
        %v5059 = vrsqrt.pop %v5027
        %v5060 = vrsqrt.pop %v5028
        %v5061 = vrsqrt.pop %v5029
        %v5062 = vrsqrt.pop %v5030
        %v5063 = vrsqrt.pop %v5031
        %v5064 = vrsqrt.pop %v5032
        %v5065 = vrsqrt.pop %v5033
        %v5066 = vrsqrt.pop %v5034
        %v5067 = vrsqrt.pop %v5035
        %v5068 = vrsqrt.pop %v5036
        %v5069 = vrsqrt.pop %v5037
        %v5070 = vrsqrt.pop %v5038
        %v5071 = vrsqrt.pop %v5039
        %v5072 = vrsqrt.pop %v5040
        %v5073 = vrsqrt.pop %v5041
        %v5074 = vrsqrt.pop %v5042
        %v5075 = vrsqrt.pop %v5043
        %v5076 = vrsqrt.pop %v5044
        %v5077 = vrsqrt.pop %v5045
        %v5078 = vrsqrt.pop %v5046
        %v5079 = vmul.f32 %v4823, %v5047
        %v5080 = vmul.f32 %v4824, %v5048
        %v5081 = vmul.f32 %v4825, %v5049
        %v5082 = vmul.f32 %v4826, %v5050
        %v5083 = vmul.f32 %v4827, %v5051
        %v5084 = vmul.f32 %v4828, %v5052
        %v5085 = vmul.f32 %v4829, %v5053
        %v5086 = vmul.f32 %v4830, %v5054
        %v5087 = vmul.f32 %v4831, %v5055
        %v5088 = vmul.f32 %v4832, %v5056
        %v5089 = vmul.f32 %v4833, %v5057
        %v5090 = vmul.f32 %v4834, %v5058
        %v5091 = vmul.f32 %v4835, %v5059
        %v5092 = vmul.f32 %v4836, %v5060
        %v5093 = vmul.f32 %v4837, %v5061
        %v5094 = vmul.f32 %v4838, %v5062
        %v5095 = vmul.f32 %v4839, %v5063
        %v5096 = vmul.f32 %v4840, %v5064
        %v5097 = vmul.f32 %v4841, %v5065
        %v5098 = vmul.f32 %v4842, %v5066
        %v5099 = vmul.f32 %v4843, %v5067
        %v5100 = vmul.f32 %v4844, %v5068
        %v5101 = vmul.f32 %v4845, %v5069
        %v5102 = vmul.f32 %v4846, %v5070
        %v5103 = vmul.f32 %v4847, %v5071
        %v5104 = vmul.f32 %v4848, %v5072
        %v5105 = vmul.f32 %v4849, %v5073
        %v5106 = vmul.f32 %v4850, %v5074
        %v5107 = vmul.f32 %v4851, %v5075
        %v5108 = vmul.f32 %v4852, %v5076
        %v5109 = vmul.f32 %v4853, %v5077
        %v5110 = vmul.f32 %v4854, %v5078
        %v5111 = vld [vmem:[%s3 + $0xe] sm:$0x1]
        %v5113 = vlaneseq
        %v5114 = vshrl.u32 %v5113, 7
        %v5115 = vsub.s32 0, %v5114
        %v5116 = vrot.slane %v5111, %v5115
        %v5118 = vmul.f32 %v5079, %v5116
        %v5119 = vmul.f32 %v5080, %v5116
        %v5120 = vmul.f32 %v5081, %v5116
        %v5121 = vmul.f32 %v5082, %v5116
        %v5122 = vmul.f32 %v5083, %v5116
        %v5123 = vmul.f32 %v5084, %v5116
        %v5124 = vmul.f32 %v5085, %v5116
        %v5125 = vmul.f32 %v5086, %v5116
        %v5126 = vmul.f32 %v5087, %v5116
        %v5127 = vmul.f32 %v5088, %v5116
        %v5128 = vmul.f32 %v5089, %v5116
        %v5129 = vmul.f32 %v5090, %v5116
        %v5130 = vmul.f32 %v5091, %v5116
        %v5131 = vmul.f32 %v5092, %v5116
        %v5132 = vmul.f32 %v5093, %v5116
        %v5133 = vmul.f32 %v5094, %v5116
        %v5134 = vmul.f32 %v5095, %v5116
        %v5135 = vmul.f32 %v5096, %v5116
        %v5136 = vmul.f32 %v5097, %v5116
        %v5137 = vmul.f32 %v5098, %v5116
        %v5138 = vmul.f32 %v5099, %v5116
        %v5139 = vmul.f32 %v5100, %v5116
        %v5140 = vmul.f32 %v5101, %v5116
        %v5141 = vmul.f32 %v5102, %v5116
        %v5142 = vmul.f32 %v5103, %v5116
        %v5143 = vmul.f32 %v5104, %v5116
        %v5144 = vmul.f32 %v5105, %v5116
        %v5145 = vmul.f32 %v5106, %v5116
        %v5146 = vmul.f32 %v5107, %v5116
        %v5147 = vmul.f32 %v5108, %v5116
        %v5148 = vmul.f32 %v5109, %v5116
        %v5149 = vmul.f32 %v5110, %v5116
        %v5150 = vld [vmem:[%s3 + $0xf] sm:$0x1]
        %v5152 = vlaneseq
        %v5153 = vshrl.u32 %v5152, 7
        %v5154 = vsub.s32 0, %v5153
        %v5155 = vrot.slane %v5150, %v5154
        %v5157 = vadd.f32 %v5118, %v5155
        %v5158 = vadd.f32 %v5119, %v5155
        %v5159 = vadd.f32 %v5120, %v5155
        %v5160 = vadd.f32 %v5121, %v5155
        %v5161 = vadd.f32 %v5122, %v5155
        %v5162 = vadd.f32 %v5123, %v5155
        %v5163 = vadd.f32 %v5124, %v5155
        %v5164 = vadd.f32 %v5125, %v5155
        %v5165 = vadd.f32 %v5126, %v5155
        %v5166 = vadd.f32 %v5127, %v5155
        %v5167 = vadd.f32 %v5128, %v5155
        %v5168 = vadd.f32 %v5129, %v5155
        %v5169 = vadd.f32 %v5130, %v5155
        %v5170 = vadd.f32 %v5131, %v5155
        %v5171 = vadd.f32 %v5132, %v5155
        %v5172 = vadd.f32 %v5133, %v5155
        %v5173 = vadd.f32 %v5134, %v5155
        %v5174 = vadd.f32 %v5135, %v5155
        %v5175 = vadd.f32 %v5136, %v5155
        %v5176 = vadd.f32 %v5137, %v5155
        %v5177 = vadd.f32 %v5138, %v5155
        %v5178 = vadd.f32 %v5139, %v5155
        %v5179 = vadd.f32 %v5140, %v5155
        %v5180 = vadd.f32 %v5141, %v5155
        %v5181 = vadd.f32 %v5142, %v5155
        %v5182 = vadd.f32 %v5143, %v5155
        %v5183 = vadd.f32 %v5144, %v5155
        %v5184 = vadd.f32 %v5145, %v5155
        %v5185 = vadd.f32 %v5146, %v5155
        %v5186 = vadd.f32 %v5147, %v5155
        %v5187 = vadd.f32 %v5148, %v5155
        %v5188 = vadd.f32 %v5149, %v5155
        %v5189 = vmax.f32 %v5157, 0.0
        %v5190 = vmax.f32 %v5158, 0.0
        %v5191 = vmax.f32 %v5159, 0.0
        %v5192 = vmax.f32 %v5160, 0.0
        %v5193 = vmax.f32 %v5161, 0.0
        %v5194 = vmax.f32 %v5162, 0.0
        %v5195 = vmax.f32 %v5163, 0.0
        %v5196 = vmax.f32 %v5164, 0.0
        %v5197 = vmax.f32 %v5165, 0.0
        %v5198 = vmax.f32 %v5166, 0.0
        %v5199 = vmax.f32 %v5167, 0.0
        %v5200 = vmax.f32 %v5168, 0.0
        %v5201 = vmax.f32 %v5169, 0.0
        %v5202 = vmax.f32 %v5170, 0.0
        %v5203 = vmax.f32 %v5171, 0.0
        %v5204 = vmax.f32 %v5172, 0.0
        %v5205 = vmax.f32 %v5173, 0.0
        %v5206 = vmax.f32 %v5174, 0.0
        %v5207 = vmax.f32 %v5175, 0.0
        %v5208 = vmax.f32 %v5176, 0.0
        %v5209 = vmax.f32 %v5177, 0.0
        %v5210 = vmax.f32 %v5178, 0.0
        %v5211 = vmax.f32 %v5179, 0.0
        %v5212 = vmax.f32 %v5180, 0.0
        %v5213 = vmax.f32 %v5181, 0.0
        %v5214 = vmax.f32 %v5182, 0.0
        %v5215 = vmax.f32 %v5183, 0.0
        %v5216 = vmax.f32 %v5184, 0.0
        %v5217 = vmax.f32 %v5185, 0.0
        %v5218 = vmax.f32 %v5186, 0.0
        %v5219 = vmax.f32 %v5187, 0.0
        %v5220 = vmax.f32 %v5188, 0.0
        %v5221 = vld [vmem:[%s3 + $0x10] sm:$0x1]
        %v5222 = vpack.c.bf16 %v5221, %v5221
        %v5223 = vpack.c.bf16 %v5190, %v5189
        %v5224 = vpack.c.bf16 %v5192, %v5191
        %v5225 = vpack.c.bf16 %v5194, %v5193
        %v5226 = vpack.c.bf16 %v5196, %v5195
        %v5227 = vpack.c.bf16 %v5198, %v5197
        %v5228 = vpack.c.bf16 %v5200, %v5199
        %v5229 = vpack.c.bf16 %v5202, %v5201
        %v5230 = vpack.c.bf16 %v5204, %v5203
        %v5231 = vpack.c.bf16 %v5206, %v5205
        %v5232 = vpack.c.bf16 %v5208, %v5207
        %v5233 = vpack.c.bf16 %v5210, %v5209
        %v5234 = vpack.c.bf16 %v5212, %v5211
        %v5235 = vpack.c.bf16 %v5214, %v5213
        %v5236 = vpack.c.bf16 %v5216, %v5215
        %v5237 = vpack.c.bf16 %v5218, %v5217
        %v5238 = vpack.c.bf16 %v5220, %v5219
        %v5239 = vld [vmem:[%s3 + $0x11] sm:$0x1]
        %5241 = vset.pattern.permute.xlu0 0
        %5242 = vperm.xlu0 %5241, %v5239
        %v5243 = vpop.permute.xlu0 %5242
        %v5245 = vlaneseq
        %v5246 = vshrl.u32 %v5245, 7
        %v5247 = vsub.s32 0, %v5246
        %v5248 = vrot.slane %v5243, %v5247
        %v5250 = vsel %vm298, %v5222, 0
        %v5253 = vsel %vm298, %v5223, 0
        %v5256 = vsel %vm298, %v5224, 0
        %v5259 = vsel %vm298, %v5225, 0
        %v5262 = vsel %vm298, %v5226, 0
        %v5265 = vsel %vm298, %v5227, 0
        %v5268 = vsel %vm298, %v5228, 0
        %v5271 = vsel %vm298, %v5229, 0
        %v5274 = vsel %vm298, %v5230, 0
        %v5277 = vsel %vm298, %v5231, 0
        %v5280 = vsel %vm298, %v5232, 0
        %v5283 = vsel %vm298, %v5233, 0
        %v5286 = vsel %vm298, %v5234, 0
        %v5289 = vsel %vm298, %v5235, 0
        %v5292 = vsel %vm298, %v5236, 0
        %v5295 = vsel %vm298, %v5237, 0
        %v5298 = vsel %vm298, %v5238, 0
        %5300 = vmatprep.subr.bf16.mxu0 0
        %5301 = vmatpush1.bf16.xpose.msra.mxu0 %v5253
        %5302 = vmatprep.subr.bf16.mxu0 0
        %5303 = vmatpush1.bf16.xpose.msra.mxu0 %v5256
        %5304 = vmatprep.subr.bf16.mxu0 0
        %5305 = vmatpush1.bf16.xpose.msra.mxu0 %v5259
        %5306 = vmatprep.subr.bf16.mxu0 0
        %5307 = vmatpush1.bf16.xpose.msra.mxu0 %v5262
        %5308 = vmatprep.subr.bf16.mxu0 0
        %5309 = vmatpush1.bf16.xpose.msra.mxu0 %v5265
        %5310 = vmatprep.subr.bf16.mxu0 0
        %5311 = vmatpush1.bf16.xpose.msra.mxu0 %v5268
        %5312 = vmatprep.subr.bf16.mxu0 0
        %5313 = vmatpush1.bf16.xpose.msra.mxu0 %v5271
        %5314 = vmatprep.subr.bf16.mxu0 0
        %5315 = vmatpush1.bf16.xpose.msra.mxu0 %v5274
        %5316 = vmatprep.subr.bf16.mxu0 0
        %5317 = vmatpush1.bf16.xpose.msra.mxu0 %v5277
        %5318 = vmatprep.subr.bf16.mxu0 0
        %5319 = vmatpush1.bf16.xpose.msra.mxu0 %v5280
        %5320 = vmatprep.subr.bf16.mxu0 0
        %5321 = vmatpush1.bf16.xpose.msra.mxu0 %v5283
        %5322 = vmatprep.subr.bf16.mxu0 0
        %5323 = vmatpush1.bf16.xpose.msra.mxu0 %v5286
        %5324 = vmatprep.subr.bf16.mxu0 0
        %5325 = vmatpush1.bf16.xpose.msra.mxu0 %v5289
        %5326 = vmatprep.subr.bf16.mxu0 0
        %5327 = vmatpush1.bf16.xpose.msra.mxu0 %v5292
        %5328 = vmatprep.subr.bf16.mxu0 0
        %5329 = vmatpush1.bf16.xpose.msra.mxu0 %v5295
        %5330 = vmatprep.subr.bf16.mxu0 0
        %5331 = vmatpush1.bf16.xpose.msra.mxu0 %v5298
        %5332 = vmatprep.mubr.bf16.mxu0 0
        %5333 = vmatmul.mubr.bf16.gmra.mrb[0].mxu0 %v5250
        %v5334 = vpop.f32.mrb[0].mxu0
        %v5335 = vadd.f32 %v5248, %v5334
        %v5336 = vpop.f32.mrb[0].mxu0
        %v5337 = vadd.f32 %v5248, %v5336
        %v5338 = vpop.f32.mrb[0].mxu0
        %v5339 = vpop.f32.mrb[0].mxu0
        %5340 = vdwg.mxu0
        %v5343 = vcombine.low %v5335, %v5337
        %v5345 = vunpack.c.l.s4 1966171168
        %v5346 = vunpack.c.0.s8 %v5345
        %v5347 = vlaneseq
        %v5348 = vshrl.u32 %v5347, 7
        %v5349 = vsub.s32 %v5346, %v5348
        %v5350 = vrot.slane %v5343, %v5349
        %v5352 = vunpack.c.l.s4 1966171168
        %v5353 = vunpack.c.0.s8 %v5352
        %v5354 = vlaneseq
        %v5355 = vshrl.u32 %v5354, 7
        %v5356 = vsub.s32 %v5353, %v5355
        %v5357 = vrot.slane %v5350, %v5356
        %v5359 = vlaneseq
        %vm5360 = vcmp.ge.s32.totalorder %v5359, 0
        %vm5361 = vcmp.lt.s32.totalorder %v5359, 256
        %vm5362 = vmand %vm5360, %vm5361
        %5363 = vst.msk [vmem:[%s206] sm:$0x3] %vm5362, %v5357
        %s5364 = sand.u32 %s116, 1
        %s5365 = scalar_lea.sflag [#allocation4], %s5364
        %s5366 = sand.u32 %s116, 1
        %s5367 = smul.addr %s5366, 2
        %s5368 = scalar_lea.vmem [#allocation5], %s5367
        // Predicated region
        $region41: #{tpu_custom_call.1} parent=35 // pred_check
          %p5369 = pneg %p126
        $region42: #{tpu_custom_call.1} parent=35 // pred_check_branch
          %5371 = sbr.rel (%p5369) target = $region44
        $region43: #{tpu_custom_call.1} parent=35 // pred_region
          %s5373 = ssub.s32 32, 32
          %5374 = vsyncadd %s5365, %s5373
          %s5375 = smul.addr %s19, 2
          %s5376 = smul.addr %s5375, 16
          %s5377 = scalar_lea.hbm %s4, %s5376
          %s5379 = sshll.u32 %s5368, 4
          %s5380 = int_to_ptr.vmem [resolvable:$true] %s5379
          %5382 = dma.vmem_to_hbm [thread:$0]  %s5380, 32, %s5377, %s5365
        $region44: #{tpu_custom_call.1} parent=35 // pred_fallthru
          _
      $region36: #{tpu_custom_call.1} parent=5 // pred_fallthru
        _
      %p5383 = scmp.le.s32.totalorder 2, %s14
      // Predicated region
      $region45: #{tpu_custom_call.1} parent=5 // pred_check
        %p5384 = pneg %p5383
      $region46: #{tpu_custom_call.1} parent=5 // pred_check_branch
        %5386 = sbr.rel (%p5384) target = $region48
      $region47: #{tpu_custom_call.1} parent=5 // pred_region
        %s5387 = ssub.s32 %s14, 2
        // Predicated region
        $region49: #{tpu_custom_call.1} parent=47 // pred_check
          %p5388 = pneg %p132
        $region50: #{tpu_custom_call.1} parent=47 // pred_check_branch
          %5390 = sbr.rel (%p5388) target = $region52
        $region51: #{tpu_custom_call.1} parent=47 // pred_region
          %s5391 = sand.u32 %s117, 1
          %s5392 = scalar_lea.sflag [#allocation4], %s5391
          %s5393 = sand.u32 %s117, 1
          %s5394 = smul.addr %s5393, 2
          %s5395 = scalar_lea.vmem [#allocation5], %s5394
          %5396 = dma.done %s5392, 32
        $region52: #{tpu_custom_call.1} parent=47 // pred_fallthru
          _
      $region48: #{tpu_custom_call.1} parent=5 // pred_fallthru
        _
    $region6: #{tpu_custom_call.1} parent=1 // loop_footer
      %s18 = sadd.s32 1, %s14
    $region7: #{tpu_custom_call.1} parent=1 // loop_footer_branch
      %13 = sbr.rel target = $region3
    $region8: #{tpu_custom_call.1} parent=1 // loop_exit
      _
    %5397 = vsyncpa [#allocation3], 1
    %s5398 = scalar_lea.sflag [#allocation3], 1
    %5399 = vsyncpa %s5398, 1
    %5400 = vsyncpa [#allocation4], 1
    %s5401 = scalar_lea.sflag [#allocation4], 1
    %5402 = vsyncpa %s5401, 1

</llo_original>
